<compile_context>
chip_gen: v5e
topology: v5e:2x2
jax: 0.10.0
libtpu: 0.0.40
codegen_flags: <defaults>
</compile_context>

<pallas_src>
import jax
import jax.numpy as jnp
from jax.experimental import pallas as pl
from jax.experimental.pallas import tpu as pltpu


def _visual_extractor_kernel(x_ref, w_ref, b_ref,
                             att_ref, patch_ref, avgf_ref, avgit_ref):
    # x_ref   : (1, C, P)  backbone features, native NCHW (spatial flattened), f32
    # w_ref   : (NH, C)    1x1 conv weight (torch (NH, C, 1, 1) squeezed), bf16
    # b_ref   : (NH, 1)    1x1 conv bias as a column, f32
    x_cp = x_ref[0]                                   # (C, P)  f32
    w_nc = w_ref[...]                                 # (NH, C) bf16
    b_col = b_ref[...]                                # (NH, 1) f32

    # 1x1 conv == channel matmul on the MXU: att[n, p] = sum_c w[n, c] x[c, p] + b[n]
    # M = NH, K = C, N = P; bf16 operands, f32 accumulation.  Result is already
    # in (NH, P) == NCHW layout, so att_feat_it needs only a free reshape.
    att_np = jnp.dot(w_nc, x_cp.astype(jnp.bfloat16),
                     preferred_element_type=jnp.float32) + b_col       # (NH, P)
    att_ref[0] = att_np.astype(att_ref.dtype)

    # patch_feats: fused NCHW -> (P, C) layout change (in-VMEM XLU transpose,
    # overlaps with the MXU work), kept in full f32 precision.
    x_pc = x_cp.T                                                      # (P, C)
    patch_ref[0] = x_pc.astype(patch_ref.dtype)

    # AvgPool2d(kernel=7, stride=1, padding=0) on a 7x7 map == global mean over P.
    # avg_feats: sublane reduction of the already-transposed tile -> lane-dense
    # (1, C) row (unmasked stores).
    avgf_ref[0] = jnp.mean(x_pc, axis=0, keepdims=True).astype(avgf_ref.dtype)       # (1, C)

    # avg_feat_it: lane reduction of the live att tile (already in vregs); tiny
    # (NH, 1) column output.
    avgit_ref[0] = jnp.mean(att_np, axis=1, keepdims=True).astype(avgit_ref.dtype)   # (NH, 1)


def visual_extractor_forward(patch_feats_nchw, w_nc, bias_n):
    """patch_feats_nchw: (B, C, H, W) backbone output (torch NCHW convention).
       w_nc:             (NH, C)  == torch conv weight (NH, C, 1, 1) squeezed.
       bias_n:           (NH,)
    Returns (patch_feats, avg_feats, att_feat_it, avg_feat_it) with the same
    shapes/semantics as the PyTorch module."""
    B, C, H, W = patch_feats_nchw.shape
    P = H * W
    NH = w_nc.shape[0]

    # AvgPool2d(kernel_size=7, stride=1, padding=0) collapses to a single 1x1
    # output (== global mean) only for a 7x7 map; anything else would silently
    # diverge from the PyTorch module.
    if (H, W) != (7, 7):
        raise ValueError(f"VisualExtractor expects a 7x7 backbone map, got {(H, W)}")

    x_bcp = patch_feats_nchw.reshape(B, C, P)          # free reshape, stays NCHW
    w_bf16 = w_nc.astype(jnp.bfloat16)                 # one-time parameter cast
    b_col = bias_n.astype(jnp.float32).reshape(NH, 1)

    flops = 2 * B * NH * C * P
    bytes_accessed = (B * C * P * 4                    # x (f32, read)
                      + NH * C * 2 + NH * 4            # weight (bf16) + bias
                      + B * P * C * 4                  # patch_feats (write)
                      + B * NH * P * 4                 # att (write)
                      + B * C * 4 + B * NH * 4)        # spatial means (write)

    att_bnp, patch_bpc, avgf_b1c, avgit_bn1 = pl.pallas_call(
        _visual_extractor_kernel,
        out_shape=(
            jax.ShapeDtypeStruct((B, NH, P), jnp.float32),   # att (NCHW-flat)
            jax.ShapeDtypeStruct((B, P, C), jnp.float32),    # patch_feats
            jax.ShapeDtypeStruct((B, 1, C), jnp.float32),    # avg_feats (lane-dense)
            jax.ShapeDtypeStruct((B, NH, 1), jnp.float32),   # avg_feat_it
        ),
        grid_spec=pltpu.PrefetchScalarGridSpec(
            num_scalar_prefetch=0,
            grid=(B,),
            in_specs=[
                pl.BlockSpec((1, C, P), lambda b: (b, 0, 0)),
                pl.BlockSpec((NH, C), lambda b: (0, 0)),     # constant -> DMA'd once, VMEM-resident
                pl.BlockSpec((NH, 1), lambda b: (0, 0)),     # constant -> DMA'd once
            ],
            out_specs=[
                pl.BlockSpec((1, NH, P), lambda b: (b, 0, 0)),
                pl.BlockSpec((1, P, C), lambda b: (b, 0, 0)),
                pl.BlockSpec((1, 1, C), lambda b: (b, 0, 0)),
                pl.BlockSpec((1, NH, 1), lambda b: (b, 0, 0)),
            ],
        ),
        compiler_params=pltpu.CompilerParams(
            dimension_semantics=("parallel",),   # batch steps can land on both v7x TCs
        ),
        cost_estimate=pl.CostEstimate(
            flops=flops, transcendentals=0, bytes_accessed=bytes_accessed),
    )(x_bcp, w_bf16, b_col)

    patch_feats = patch_bpc                              # (B, P, C)
    avg_feats = avgf_b1c.reshape(B, C)                   # (B, C)
    att_feat_it = att_bnp.reshape(B, NH, H, W)           # NCHW, reshape only (no transpose)
    avg_feat_it = avgit_bn1.reshape(B, NH)               # (B, NH)
    return patch_feats, avg_feats, att_feat_it, avg_feat_it


if __name__ == "__main__":
    # Shapes fixed by the module: resnet backbone output is (B, 2048, 7, 7);
    # args.nhidden -> 128 here.
    B, C, H, W = 2, 2048, 7, 7
    NH = 128
    P = H * W

    key = jax.random.PRNGKey(0)
    k_feat, k_w, k_b = jax.random.split(key, 3)

    # Stand-in for self.model(images) output (backbone not implemented, see TODO).
    patch_feats_nchw = jax.random.normal(k_feat, (B, C, H, W), dtype=jnp.float32)

    # cov1x1 parameters: torch weight (NH, C, 1, 1) squeezed to (NH, C).
    w_nc = jax.random.normal(k_w, (NH, C), dtype=jnp.float32) * 0.02
    bias_n = jax.random.normal(k_b, (NH,), dtype=jnp.float32) * 0.01

    fwd = jax.jit(visual_extractor_forward)
    outs = jax.block_until_ready(fwd(patch_feats_nchw, w_nc, bias_n))
    patch_feats, avg_feats, att_feat_it, avg_feat_it = outs

    # Pure-JAX f32 reference (module semantics).
    x_bpc = jnp.transpose(patch_feats_nchw.reshape(B, C, P), (0, 2, 1))
    ref_att_bnp = (jnp.einsum("nc,bcp->bnp", w_nc, patch_feats_nchw.reshape(B, C, P))
                   + bias_n[None, :, None])
    ref_patch = x_bpc
    ref_avg_feats = jnp.mean(x_bpc, axis=1)
    ref_att_it = ref_att_bnp.reshape(B, NH, H, W)
    ref_avg_it = jnp.mean(ref_att_bnp, axis=2)

    assert patch_feats.shape == (B, P, C)
    assert avg_feats.shape == (B, C)
    assert att_feat_it.shape == (B, NH, H, W)
    assert avg_feat_it.shape == (B, NH)

    # patch_feats / avg_feats stay f32 end-to-end -> tight tolerance.
    assert jnp.allclose(patch_feats, ref_patch, rtol=1e-6, atol=1e-6), "patch_feats mismatch"
    assert jnp.allclose(avg_feats, ref_avg_feats, rtol=1e-5, atol=1e-5), "avg_feats mismatch"
    # att path uses bf16 MXU operands with f32 accumulation -> bf16-level tolerance.
    assert jnp.allclose(att_feat_it, ref_att_it, rtol=3e-2, atol=3e-2), "att_feat_it mismatch"
    assert jnp.allclose(avg_feat_it, ref_avg_it, rtol=3e-2, atol=3e-2), "avg_feat_it mismatch"

    print("KERNEL_OK")
</pallas_src>

<mosaic_0001>
module attributes {stable_mosaic.version = 11 : i64} {
  func.func @_visual_extractor_kernel(%arg0: i32, %arg1: memref<1x2048x49xf32, #tpu.memory_space<vmem>>, %arg2: memref<128x2048xbf16, #tpu.memory_space<vmem>>, %arg3: memref<128x1xf32, #tpu.memory_space<vmem>>, %arg4: memref<1x128x49xf32, #tpu.memory_space<vmem>>, %arg5: memref<1x49x2048xf32, #tpu.memory_space<vmem>>, %arg6: memref<1x1x2048xf32, #tpu.memory_space<vmem>>, %arg7: memref<1x128x1xf32, #tpu.memory_space<vmem>>) attributes {dimension_semantics = [#tpu.dimension_semantics<parallel>], iteration_bounds = array<i64: 2>, scalar_prefetch = 0 : i64, scratch_operands = 0 : i64, tpu.core_type = #tpu.core_type<tc>, window_params = [{transform_indices = @transform_0, window_bounds = array<i64: 1, 2048, 49>}, {pipeline_mode = #tpu.pipeline_mode<synchronous>, transform_indices = @transform_1, window_bounds = array<i64: 128, 2048>}, {pipeline_mode = #tpu.pipeline_mode<synchronous>, transform_indices = @transform_2, window_bounds = array<i64: 128, 1>}, {transform_indices = @transform_3, window_bounds = array<i64: 1, 128, 49>}, {transform_indices = @transform_4, window_bounds = array<i64: 1, 49, 2048>}, {transform_indices = @transform_5, window_bounds = array<i64: 1, 1, 2048>}, {transform_indices = @transform_6, window_bounds = array<i64: 1, 128, 1>}]} {
    %c0 = arith.constant 0 : index
    %c0_0 = arith.constant 0 : index
    %c0_1 = arith.constant 0 : index
    %0 = vector.load %arg1[%c0, %c0_0, %c0_1] : memref<1x2048x49xf32, #tpu.memory_space<vmem>>, vector<1x2048x49xf32>
    %1 = vector.shape_cast %0 : vector<1x2048x49xf32> to vector<2048x49xf32>
    %c0_2 = arith.constant 0 : index
    %c0_3 = arith.constant 0 : index
    %2 = vector.load %arg2[%c0_2, %c0_3] : memref<128x2048xbf16, #tpu.memory_space<vmem>>, vector<128x2048xbf16>
    %c0_4 = arith.constant 0 : index
    %c0_5 = arith.constant 0 : index
    %3 = vector.load %arg3[%c0_4, %c0_5] : memref<128x1xf32, #tpu.memory_space<vmem>>, vector<128x1xf32>
    %4 = arith.truncf %1 : vector<2048x49xf32> to vector<2048x49xbf16>
    %cst = arith.constant dense<0.000000e+00> : vector<128x49xf32>
    %5 = tpu.matmul %2, %4, %cst {dimension_numbers = #tpu.dot_dimension_numbers<[1], [0], [0], [1], [0, 0, 1, 1], [], []>} : vector<128x2048xbf16>, vector<2048x49xbf16>, vector<128x49xf32> -> vector<128x49xf32>
    %6 = vector.broadcast %3 : vector<128x1xf32> to vector<128x49xf32>
    %7 = arith.addf %5, %6 : vector<128x49xf32>
    %c0_6 = arith.constant 0 : index
    %c0_7 = arith.constant 0 : index
    %c0_8 = arith.constant 0 : index
    %8 = vector.load %arg4[%c0_6, %c0_7, %c0_8] : memref<1x128x49xf32, #tpu.memory_space<vmem>>, vector<1x128x49xf32>
    %9 = vector.shape_cast %8 : vector<1x128x49xf32> to vector<128x49xf32>
    %10 = vector.shape_cast %7 : vector<128x49xf32> to vector<1x128x49xf32>
    tpu.vector_store %arg4[%c0_6, %c0_7, %c0_8], %10 {strides = array<i32>} : memref<1x128x49xf32, #tpu.memory_space<vmem>>, vector<1x128x49xf32>,
    %11 = tpu.transpose %1, [1, 0] : vector<2048x49xf32> -> vector<49x2048xf32>
    %c0_9 = arith.constant 0 : index
    %c0_10 = arith.constant 0 : index
    %c0_11 = arith.constant 0 : index
    %12 = vector.load %arg5[%c0_9, %c0_10, %c0_11] : memref<1x49x2048xf32, #tpu.memory_space<vmem>>, vector<1x49x2048xf32>
    %13 = vector.shape_cast %12 : vector<1x49x2048xf32> to vector<49x2048xf32>
    %14 = vector.shape_cast %11 : vector<49x2048xf32> to vector<1x49x2048xf32>
    tpu.vector_store %arg5[%c0_9, %c0_10, %c0_11], %14 {strides = array<i32>} : memref<1x49x2048xf32, #tpu.memory_space<vmem>>, vector<1x49x2048xf32>,
    %cst_12 = arith.constant dense<0.000000e+00> : vector<2048xf32>
    %15 = vector.multi_reduction <add>, %11, %cst_12 [0] : vector<49x2048xf32> to vector<2048xf32>
    %16 = vector.shape_cast %15 : vector<2048xf32> to vector<1x2048xf32>
    %cst_13 = arith.constant 4.900000e+01 : f32
    %17 = vector.broadcast %cst_13 : f32 to vector<1x2048xf32>
    %18 = arith.divf %16, %17 : vector<1x2048xf32>
    %c0_14 = arith.constant 0 : index
    %c0_15 = arith.constant 0 : index
    %c0_16 = arith.constant 0 : index
    %19 = vector.load %arg6[%c0_14, %c0_15, %c0_16] : memref<1x1x2048xf32, #tpu.memory_space<vmem>>, vector<1x1x2048xf32>
    %20 = vector.shape_cast %19 : vector<1x1x2048xf32> to vector<1x2048xf32>
    %21 = vector.shape_cast %18 : vector<1x2048xf32> to vector<1x1x2048xf32>
    tpu.vector_store %arg6[%c0_14, %c0_15, %c0_16], %21 {strides = array<i32>} : memref<1x1x2048xf32, #tpu.memory_space<vmem>>, vector<1x1x2048xf32>,
    %cst_17 = arith.constant dense<0.000000e+00> : vector<128xf32>
    %22 = vector.multi_reduction <add>, %7, %cst_17 [1] : vector<128x49xf32> to vector<128xf32>
    %23 = vector.shape_cast %22 : vector<128xf32> to vector<128x1xf32>
    %cst_18 = arith.constant 4.900000e+01 : f32
    %24 = vector.broadcast %cst_18 : f32 to vector<128x1xf32>
    %25 = arith.divf %23, %24 : vector<128x1xf32>
    %c0_19 = arith.constant 0 : index
    %c0_20 = arith.constant 0 : index
    %c0_21 = arith.constant 0 : index
    %26 = vector.load %arg7[%c0_19, %c0_20, %c0_21] : memref<1x128x1xf32, #tpu.memory_space<vmem>>, vector<1x128x1xf32>
    %27 = vector.shape_cast %26 : vector<1x128x1xf32> to vector<128x1xf32>
    %28 = vector.shape_cast %25 : vector<128x1xf32> to vector<1x128x1xf32>
    tpu.vector_store %arg7[%c0_19, %c0_20, %c0_21], %28 {strides = array<i32>} : memref<1x128x1xf32, #tpu.memory_space<vmem>>, vector<1x128x1xf32>,
    return
  }
  func.func @transform_0(%arg0: i32) -> (i32, i32, i32) {
    %c0_i32 = arith.constant 0 : i32
    %c0_i32_0 = arith.constant 0 : i32
    %c0_i32_1 = arith.constant 0 : i32
    return %arg0, %c0_i32, %c0_i32_0 : i32, i32, i32
  }
  func.func @transform_1(%arg0: i32) -> (i32, i32) {
    %c0_i32 = arith.constant 0 : i32
    %c0_i32_0 = arith.constant 0 : i32
    %c0_i32_1 = arith.constant 0 : i32
    return %c0_i32, %c0_i32_0 : i32, i32
  }
  func.func @transform_2(%arg0: i32) -> (i32, i32) {
    %c0_i32 = arith.constant 0 : i32
    %c0_i32_0 = arith.constant 0 : i32
    %c0_i32_1 = arith.constant 0 : i32
    return %c0_i32, %c0_i32_0 : i32, i32
  }
  func.func @transform_3(%arg0: i32) -> (i32, i32, i32) {
    %c0_i32 = arith.constant 0 : i32
    %c0_i32_0 = arith.constant 0 : i32
    %c0_i32_1 = arith.constant 0 : i32
    return %arg0, %c0_i32, %c0_i32_0 : i32, i32, i32
  }
  func.func @transform_4(%arg0: i32) -> (i32, i32, i32) {
    %c0_i32 = arith.constant 0 : i32
    %c0_i32_0 = arith.constant 0 : i32
    %c0_i32_1 = arith.constant 0 : i32
    return %arg0, %c0_i32, %c0_i32_0 : i32, i32, i32
  }
  func.func @transform_5(%arg0: i32) -> (i32, i32, i32) {
    %c0_i32 = arith.constant 0 : i32
    %c0_i32_0 = arith.constant 0 : i32
    %c0_i32_1 = arith.constant 0 : i32
    return %arg0, %c0_i32, %c0_i32_0 : i32, i32, i32
  }
  func.func @transform_6(%arg0: i32) -> (i32, i32, i32) {
    %c0_i32 = arith.constant 0 : i32
    %c0_i32_0 = arith.constant 0 : i32
    %c0_i32_1 = arith.constant 0 : i32
    return %arg0, %c0_i32, %c0_i32_0 : i32, i32, i32
  }
}

</mosaic_0001>

<llo_original>
// kernel: visual_extractor_forward.1
$region0: #{visual_extractor_forward.1}
  #allocation0 [shape = 'u32[]', space=smem, size = 0x4, offset = 0x4, fixed_abs, tag = 'smem constant byte address 0x4 - core index']
  #allocation1 [shape = 'u32[72,128]{1,0:T(1,128)}', space=vmem, size = 0x9000, scoped, tag = 'internal scratch']
  %s0 = inlined_call_operand.vmem [shape: f32[2,2048,49], index: 0, kind: input, shape index: {}]
  %s1 = inlined_call_operand.vmem [shape: bf16[128,2048], index: 1, kind: input, shape index: {}]
  %s2 = inlined_call_operand.vmem [shape: f32[128,1], index: 2, kind: input, shape index: {}]
  %s3 = inlined_call_operand.vmem [shape: f32[2,128,49], index: 3, kind: output, shape index: {0}]
  %s4 = inlined_call_operand.vmem [shape: f32[2,49,2048], index: 4, kind: output, shape index: {1}]
  %s5 = inlined_call_operand.vmem [shape: f32[2,1,2048], index: 5, kind: output, shape index: {2}]
  %s6 = inlined_call_operand.vmem [shape: f32[2,128,1], index: 6, kind: output, shape index: {3}]
  %7 = xla_tuple %s3, %s4, %s5, %s6
  %s8 = sld [smem:[#allocation0]]
  $region69: #{visual_extractor_forward.1} parent=0
    _
  %s10 = ssub.s32 1, %s8
  %s11 = scalar_select 0, %s10, %s8
  loop: start=0, step=1, limit=4
  $region2: #{visual_extractor_forward.1} parent=0 // loop_pre_header
    _
  $region3: #{visual_extractor_forward.1} parent=0 // loop_header
    %s13 = sphi 0, %s17
    %p14 = scmp.ge.s32.totalorder %s13, 4
    %s23 = sphi 0, %s25
    %s26 = sphi 0, %s23
    %s27 = sphi 0, %s26
    %s43 = sphi 0, %s27
    %s47 = sphi 0, %s47
    %s49 = sphi 0, %s47
    %s50 = sphi 0, %s49
    %s64 = sphi 0, %s50
    %s68 = sphi 0, %s68
    %s70 = sphi 0, %s68
    %s71 = sphi 0, %s70
    %s85 = sphi 0, %s71
    %s91 = sphi 0, %s93
    %s94 = sphi 0, %s91
    %s95 = sphi 0, %s94
    %s111 = sphi 0, %s95
    %s117 = sphi 0, %s119
    %s120 = sphi 0, %s117
    %s121 = sphi 0, %s120
    %s137 = sphi 0, %s121
    %s143 = sphi 0, %s145
    %s146 = sphi 0, %s143
    %s147 = sphi 0, %s146
    %s163 = sphi 0, %s147
    %s169 = sphi 0, %s171
    %s172 = sphi 0, %s169
    %s173 = sphi 0, %s172
    %s189 = sphi 0, %s173
  $region4: #{visual_extractor_forward.1} parent=0 // loop_header_branch
    %16 = sbr.rel (%p14) target = $region8
  $region5: #{visual_extractor_forward.1} parent=0 // loop_body
    %s18 = ssub.s32 %s13, 1
    %s19 = ssub.s32 %s13, 2
    %s20 = sadd.s32 %s13, 1
    %s21 = ssub.s32 %s13, %s20
    %p22 = scmp.eq.s32.totalorder %s21, 0
    %s24 = sadd.s32 %s23, 1
    %s25 = scalar_select %p22, %s23, %s24
    %p28 = pneg %p22
    %p29 = scmp.eq.s32.totalorder %s13, 1
    %p30 = por %p28, %p29
    %p31 = scmp.ne.s32.totalorder %s23, %s26
    %p32 = scmp.eq.s32.totalorder %s13, 0
    %p33 = por %p31, %p32
    %p34 = scmp.ne.s32.totalorder %s23, %s26
    %p35 = scmp.eq.s32.totalorder %s18, 1
    %p36 = por %p34, %p35
    %p37 = scmp.ne.s32.totalorder %s26, %s27
    %p38 = scmp.eq.s32.totalorder %s18, 0
    %p39 = por %p37, %p38
    %p40 = scmp.ne.s32.totalorder %s26, %s27
    %p41 = scmp.eq.s32.totalorder %s19, 1
    %p42 = por %p40, %p41
    %p44 = scmp.ne.s32.totalorder %s27, %s43
    %p45 = scmp.eq.s32.totalorder %s19, 0
    %p46 = por %p44, %p45
    %s48 = sadd.s32 %s47, 1
    %p51 = scmp.eq.s32.totalorder %s13, 1
    %p52 = scmp.ne.s32.totalorder %s47, %s49
    %p53 = scmp.eq.s32.totalorder %s13, 0
    %p54 = por %p52, %p53
    %p55 = scmp.ne.s32.totalorder %s47, %s49
    %p56 = scmp.eq.s32.totalorder %s18, 1
    %p57 = por %p55, %p56
    %p58 = scmp.ne.s32.totalorder %s49, %s50
    %p59 = scmp.eq.s32.totalorder %s18, 0
    %p60 = por %p58, %p59
    %p61 = scmp.ne.s32.totalorder %s49, %s50
    %p62 = scmp.eq.s32.totalorder %s19, 1
    %p63 = por %p61, %p62
    %p65 = scmp.ne.s32.totalorder %s50, %s64
    %p66 = scmp.eq.s32.totalorder %s19, 0
    %p67 = por %p65, %p66
    %s69 = sadd.s32 %s68, 1
    %p72 = scmp.eq.s32.totalorder %s13, 1
    %p73 = scmp.ne.s32.totalorder %s68, %s70
    %p74 = scmp.eq.s32.totalorder %s13, 0
    %p75 = por %p73, %p74
    %p76 = scmp.ne.s32.totalorder %s68, %s70
    %p77 = scmp.eq.s32.totalorder %s18, 1
    %p78 = por %p76, %p77
    %p79 = scmp.ne.s32.totalorder %s70, %s71
    %p80 = scmp.eq.s32.totalorder %s18, 0
    %p81 = por %p79, %p80
    %p82 = scmp.ne.s32.totalorder %s70, %s71
    %p83 = scmp.eq.s32.totalorder %s19, 1
    %p84 = por %p82, %p83
    %p86 = scmp.ne.s32.totalorder %s71, %s85
    %p87 = scmp.eq.s32.totalorder %s19, 0
    %p88 = por %p86, %p87
    %s89 = ssub.s32 %s13, %s20
    %p90 = scmp.eq.s32.totalorder %s89, 0
    %s92 = sadd.s32 %s91, 1
    %s93 = scalar_select %p90, %s91, %s92
    %p96 = pneg %p90
    %p97 = scmp.eq.s32.totalorder %s13, 1
    %p98 = por %p96, %p97
    %p99 = scmp.ne.s32.totalorder %s91, %s94
    %p100 = scmp.eq.s32.totalorder %s13, 0
    %p101 = por %p99, %p100
    %p102 = scmp.ne.s32.totalorder %s91, %s94
    %p103 = scmp.eq.s32.totalorder %s18, 1
    %p104 = por %p102, %p103
    %p105 = scmp.ne.s32.totalorder %s94, %s95
    %p106 = scmp.eq.s32.totalorder %s18, 0
    %p107 = por %p105, %p106
    %p108 = scmp.ne.s32.totalorder %s94, %s95
    %p109 = scmp.eq.s32.totalorder %s19, 1
    %p110 = por %p108, %p109
    %p112 = scmp.ne.s32.totalorder %s95, %s111
    %p113 = scmp.eq.s32.totalorder %s19, 0
    %p114 = por %p112, %p113
    %s115 = ssub.s32 %s13, %s20
    %p116 = scmp.eq.s32.totalorder %s115, 0
    %s118 = sadd.s32 %s117, 1
    %s119 = scalar_select %p116, %s117, %s118
    %p122 = pneg %p116
    %p123 = scmp.eq.s32.totalorder %s13, 1
    %p124 = por %p122, %p123
    %p125 = scmp.ne.s32.totalorder %s117, %s120
    %p126 = scmp.eq.s32.totalorder %s13, 0
    %p127 = por %p125, %p126
    %p128 = scmp.ne.s32.totalorder %s117, %s120
    %p129 = scmp.eq.s32.totalorder %s18, 1
    %p130 = por %p128, %p129
    %p131 = scmp.ne.s32.totalorder %s120, %s121
    %p132 = scmp.eq.s32.totalorder %s18, 0
    %p133 = por %p131, %p132
    %p134 = scmp.ne.s32.totalorder %s120, %s121
    %p135 = scmp.eq.s32.totalorder %s19, 1
    %p136 = por %p134, %p135
    %p138 = scmp.ne.s32.totalorder %s121, %s137
    %p139 = scmp.eq.s32.totalorder %s19, 0
    %p140 = por %p138, %p139
    %s141 = ssub.s32 %s13, %s20
    %p142 = scmp.eq.s32.totalorder %s141, 0
    %s144 = sadd.s32 %s143, 1
    %s145 = scalar_select %p142, %s143, %s144
    %p148 = pneg %p142
    %p149 = scmp.eq.s32.totalorder %s13, 1
    %p150 = por %p148, %p149
    %p151 = scmp.ne.s32.totalorder %s143, %s146
    %p152 = scmp.eq.s32.totalorder %s13, 0
    %p153 = por %p151, %p152
    %p154 = scmp.ne.s32.totalorder %s143, %s146
    %p155 = scmp.eq.s32.totalorder %s18, 1
    %p156 = por %p154, %p155
    %p157 = scmp.ne.s32.totalorder %s146, %s147
    %p158 = scmp.eq.s32.totalorder %s18, 0
    %p159 = por %p157, %p158
    %p160 = scmp.ne.s32.totalorder %s146, %s147
    %p161 = scmp.eq.s32.totalorder %s19, 1
    %p162 = por %p160, %p161
    %p164 = scmp.ne.s32.totalorder %s147, %s163
    %p165 = scmp.eq.s32.totalorder %s19, 0
    %p166 = por %p164, %p165
    %s167 = ssub.s32 %s13, %s20
    %p168 = scmp.eq.s32.totalorder %s167, 0
    %s170 = sadd.s32 %s169, 1
    %s171 = scalar_select %p168, %s169, %s170
    %p174 = pneg %p168
    %p175 = scmp.eq.s32.totalorder %s13, 1
    %p176 = por %p174, %p175
    %p177 = scmp.ne.s32.totalorder %s169, %s172
    %p178 = scmp.eq.s32.totalorder %s13, 0
    %p179 = por %p177, %p178
    %p180 = scmp.ne.s32.totalorder %s169, %s172
    %p181 = scmp.eq.s32.totalorder %s18, 1
    %p182 = por %p180, %p181
    %p183 = scmp.ne.s32.totalorder %s172, %s173
    %p184 = scmp.eq.s32.totalorder %s18, 0
    %p185 = por %p183, %p184
    %p186 = scmp.ne.s32.totalorder %s172, %s173
    %p187 = scmp.eq.s32.totalorder %s19, 1
    %p188 = por %p186, %p187
    %p190 = scmp.ne.s32.totalorder %s173, %s189
    %p191 = scmp.eq.s32.totalorder %s19, 0
    %p192 = por %p190, %p191
    %p193 = scmp.le.s32.totalorder 1, %s13
    %p194 = scmp.lt.s32.totalorder %s13, 3
    %p195 = pnand %p193, %p194
    %p196 = pneg %p195
    // Predicated region
    $region9: #{visual_extractor_forward.1} parent=5 // pred_check
      _
    $region10: #{visual_extractor_forward.1} parent=5 // pred_check_branch
      %198 = sbr.rel (%p195) target = $region12
    $region11: #{visual_extractor_forward.1} parent=5 // pred_region
      %s199 = ssub.s32 %s13, 1
      // Predicated region
      $region13: #{visual_extractor_forward.1} parent=11 // pred_check
        %p200 = pneg %p60
      $region14: #{visual_extractor_forward.1} parent=11 // pred_check_branch
        %202 = sbr.rel (%p200) target = $region16
      $region15: #{visual_extractor_forward.1} parent=11 // pred_region
        _
      $region16: #{visual_extractor_forward.1} parent=11 // pred_fallthru
        _
      // Predicated region
      $region17: #{visual_extractor_forward.1} parent=11 // pred_check
        %p203 = pneg %p81
      $region18: #{visual_extractor_forward.1} parent=11 // pred_check_branch
        %205 = sbr.rel (%p203) target = $region20
      $region19: #{visual_extractor_forward.1} parent=11 // pred_region
        _
      $region20: #{visual_extractor_forward.1} parent=11 // pred_fallthru
        _
    $region12: #{visual_extractor_forward.1} parent=5 // pred_fallthru
      _
    %p206 = scmp.lt.s32.totalorder %s13, 2
    // Predicated region
    $region21: #{visual_extractor_forward.1} parent=5 // pred_check
      %p207 = pneg %p206
    $region22: #{visual_extractor_forward.1} parent=5 // pred_check_branch
      %209 = sbr.rel (%p207) target = $region24
    $region23: #{visual_extractor_forward.1} parent=5 // pred_region
      // Predicated region
      $region25: #{visual_extractor_forward.1} parent=23 // pred_check
        %p210 = pneg %p33
      $region26: #{visual_extractor_forward.1} parent=23 // pred_check_branch
        %212 = sbr.rel (%p210) target = $region28
      $region27: #{visual_extractor_forward.1} parent=23 // pred_region
        %p213 = scmp.lt.s32.totalorder %s13, 1
        %s214 = scalar_select %p213, %s13, 1
        %s215 = smul.addr %s214, 256
        %s216 = smul.addr %s215, 8
        %s217 = scalar_lea.vmem %s0, %s216
      $region28: #{visual_extractor_forward.1} parent=23 // pred_fallthru
        _
    $region24: #{visual_extractor_forward.1} parent=5 // pred_fallthru
      _
    %p218 = scmp.le.s32.totalorder 1, %s13
    %p219 = scmp.lt.s32.totalorder %s13, 3
    %p220 = pnand %p218, %p219
    %p221 = pneg %p220
    // Predicated region
    $region29: #{visual_extractor_forward.1} parent=5 // pred_check
      _
    $region30: #{visual_extractor_forward.1} parent=5 // pred_check_branch
      %223 = sbr.rel (%p220) target = $region32
    $region31: #{visual_extractor_forward.1} parent=5 // pred_region
      %s224 = ssub.s32 %s13, 1
      %p225 = scmp.lt.s32.totalorder %s18, 1
      %s226 = scalar_select %p225, %s18, 1
      %s227 = smul.addr %s226, 256
      %s228 = smul.addr %s227, 8
      %s229 = scalar_lea.vmem %s0, %s228
      %p230 = pneg %p39
      %p231 = pneg %p36
      %p232 = pneg %p60
      %p233 = pneg %p57
      %p234 = pneg %p81
      %p235 = pneg %p78
      %p236 = pneg %p107
      %p237 = pneg %p104
      %p238 = scmp.lt.s32.totalorder %s18, 1
      %s239 = scalar_select %p238, %s18, 1
      %s240 = smul.addr %s239, 16
      %s241 = smul.addr %s240, 8
      %s242 = scalar_lea.vmem %s3, %s241
      %p243 = pneg %p133
      %p244 = pneg %p130
      %p245 = scmp.lt.s32.totalorder %s18, 1
      %s246 = scalar_select %p245, %s18, 1
      %s247 = smul.addr %s246, 112
      %s248 = smul.addr %s247, 8
      %s249 = scalar_lea.vmem %s4, %s248
      %p250 = pneg %p159
      %p251 = pneg %p156
      %p252 = scmp.lt.s32.totalorder %s18, 1
      %s253 = scalar_select %p252, %s18, 1
      %s254 = smul.addr %s253, 16
      %s255 = scalar_lea.vmem %s5, %s254
      %p256 = pneg %p185
      %p257 = pneg %p182
      %p258 = scmp.lt.s32.totalorder %s18, 1
      %s259 = scalar_select %p258, %s18, 1
      %s260 = smul.addr %s259, 16
      %s261 = smul.addr %s260, 8
      %s262 = scalar_lea.vmem %s6, %s261
      %p263 = scmp.lt.s32.totalorder %s18, 1
      %s264 = scalar_select %p263, %s18, 1
      %s265 = smul.addr %s264, 256
      %s266 = smul.addr %s265, 8
      %s267 = scalar_lea.vmem %s0, %s266
      %p268 = scmp.lt.s32.totalorder %s18, 1
      %s269 = scalar_select %p268, %s18, 1
      %s270 = smul.addr %s269, 16
      %s271 = smul.addr %s270, 8
      %s272 = scalar_lea.vmem %s3, %s271
      %p273 = scmp.lt.s32.totalorder %s18, 1
      %s274 = scalar_select %p273, %s18, 1
      %s275 = smul.addr %s274, 112
      %s276 = smul.addr %s275, 8
      %s277 = scalar_lea.vmem %s4, %s276
      %p278 = scmp.lt.s32.totalorder %s18, 1
      %s279 = scalar_select %p278, %s18, 1
      %s280 = smul.addr %s279, 16
      %s281 = scalar_lea.vmem %s5, %s280
      %p282 = scmp.lt.s32.totalorder %s18, 1
      %s283 = scalar_select %p282, %s18, 1
      %s284 = smul.addr %s283, 16
      %s285 = smul.addr %s284, 8
      %s286 = scalar_lea.vmem %s6, %s285
      %v287 = vld [vmem:[%s267] sm:$0xff]
      %v288 = vld [vmem:[%s267 + $0x8] sm:$0xff]
      %v289 = vld [vmem:[%s267 + $0x10] sm:$0xff]
      %v290 = vld [vmem:[%s267 + $0x18] sm:$0xff]
      %v291 = vld [vmem:[%s267 + $0x20] sm:$0xff]
      %v292 = vld [vmem:[%s267 + $0x28] sm:$0xff]
      %v293 = vld [vmem:[%s267 + $0x30] sm:$0xff]
      %v294 = vld [vmem:[%s267 + $0x38] sm:$0xff]
      %v295 = vld [vmem:[%s267 + $0x40] sm:$0xff]
      %v296 = vld [vmem:[%s267 + $0x48] sm:$0xff]
      %v297 = vld [vmem:[%s267 + $0x50] sm:$0xff]
      %v298 = vld [vmem:[%s267 + $0x58] sm:$0xff]
      %v299 = vld [vmem:[%s267 + $0x60] sm:$0xff]
      %v300 = vld [vmem:[%s267 + $0x68] sm:$0xff]
      %v301 = vld [vmem:[%s267 + $0x70] sm:$0xff]
      %v302 = vld [vmem:[%s267 + $0x78] sm:$0xff]
      %v303 = vld [vmem:[%s267 + $0x80] sm:$0xff]
      %v304 = vld [vmem:[%s267 + $0x88] sm:$0xff]
      %v305 = vld [vmem:[%s267 + $0x90] sm:$0xff]
      %v306 = vld [vmem:[%s267 + $0x98] sm:$0xff]
      %v307 = vld [vmem:[%s267 + $0xa0] sm:$0xff]
      %v308 = vld [vmem:[%s267 + $0xa8] sm:$0xff]
      %v309 = vld [vmem:[%s267 + $0xb0] sm:$0xff]
      %v310 = vld [vmem:[%s267 + $0xb8] sm:$0xff]
      %v311 = vld [vmem:[%s267 + $0xc0] sm:$0xff]
      %v312 = vld [vmem:[%s267 + $0xc8] sm:$0xff]
      %v313 = vld [vmem:[%s267 + $0xd0] sm:$0xff]
      %v314 = vld [vmem:[%s267 + $0xd8] sm:$0xff]
      %v315 = vld [vmem:[%s267 + $0xe0] sm:$0xff]
      %v316 = vld [vmem:[%s267 + $0xe8] sm:$0xff]
      %v317 = vld [vmem:[%s267 + $0xf0] sm:$0xff]
      %v318 = vld [vmem:[%s267 + $0xf8] sm:$0xff]
      %v319 = vld [vmem:[%s267 + $0x100] sm:$0xff]
      %v320 = vld [vmem:[%s267 + $0x108] sm:$0xff]
      %v321 = vld [vmem:[%s267 + $0x110] sm:$0xff]
      %v322 = vld [vmem:[%s267 + $0x118] sm:$0xff]
      %v323 = vld [vmem:[%s267 + $0x120] sm:$0xff]
      %v324 = vld [vmem:[%s267 + $0x128] sm:$0xff]
      %v325 = vld [vmem:[%s267 + $0x130] sm:$0xff]
      %v326 = vld [vmem:[%s267 + $0x138] sm:$0xff]
      %v327 = vld [vmem:[%s267 + $0x140] sm:$0xff]
      %v328 = vld [vmem:[%s267 + $0x148] sm:$0xff]
      %v329 = vld [vmem:[%s267 + $0x150] sm:$0xff]
      %v330 = vld [vmem:[%s267 + $0x158] sm:$0xff]
      %v331 = vld [vmem:[%s267 + $0x160] sm:$0xff]
      %v332 = vld [vmem:[%s267 + $0x168] sm:$0xff]
      %v333 = vld [vmem:[%s267 + $0x170] sm:$0xff]
      %v334 = vld [vmem:[%s267 + $0x178] sm:$0xff]
      %v335 = vld [vmem:[%s267 + $0x180] sm:$0xff]
      %v336 = vld [vmem:[%s267 + $0x188] sm:$0xff]
      %v337 = vld [vmem:[%s267 + $0x190] sm:$0xff]
      %v338 = vld [vmem:[%s267 + $0x198] sm:$0xff]
      %v339 = vld [vmem:[%s267 + $0x1a0] sm:$0xff]
      %v340 = vld [vmem:[%s267 + $0x1a8] sm:$0xff]
      %v341 = vld [vmem:[%s267 + $0x1b0] sm:$0xff]
      %v342 = vld [vmem:[%s267 + $0x1b8] sm:$0xff]
      %v343 = vld [vmem:[%s267 + $0x1c0] sm:$0xff]
      %v344 = vld [vmem:[%s267 + $0x1c8] sm:$0xff]
      %v345 = vld [vmem:[%s267 + $0x1d0] sm:$0xff]
      %v346 = vld [vmem:[%s267 + $0x1d8] sm:$0xff]
      %v347 = vld [vmem:[%s267 + $0x1e0] sm:$0xff]
      %v348 = vld [vmem:[%s267 + $0x1e8] sm:$0xff]
      %v349 = vld [vmem:[%s267 + $0x1f0] sm:$0xff]
      %v350 = vld [vmem:[%s267 + $0x1f8] sm:$0xff]
      %v351 = vld [vmem:[%s267 + $0x200] sm:$0xff]
      %v352 = vld [vmem:[%s267 + $0x208] sm:$0xff]
      %v353 = vld [vmem:[%s267 + $0x210] sm:$0xff]
      %v354 = vld [vmem:[%s267 + $0x218] sm:$0xff]
      %v355 = vld [vmem:[%s267 + $0x220] sm:$0xff]
      %v356 = vld [vmem:[%s267 + $0x228] sm:$0xff]
      %v357 = vld [vmem:[%s267 + $0x230] sm:$0xff]
      %v358 = vld [vmem:[%s267 + $0x238] sm:$0xff]
      %v359 = vld [vmem:[%s267 + $0x240] sm:$0xff]
      %v360 = vld [vmem:[%s267 + $0x248] sm:$0xff]
      %v361 = vld [vmem:[%s267 + $0x250] sm:$0xff]
      %v362 = vld [vmem:[%s267 + $0x258] sm:$0xff]
      %v363 = vld [vmem:[%s267 + $0x260] sm:$0xff]
      %v364 = vld [vmem:[%s267 + $0x268] sm:$0xff]
      %v365 = vld [vmem:[%s267 + $0x270] sm:$0xff]
      %v366 = vld [vmem:[%s267 + $0x278] sm:$0xff]
      %v367 = vld [vmem:[%s267 + $0x280] sm:$0xff]
      %v368 = vld [vmem:[%s267 + $0x288] sm:$0xff]
      %v369 = vld [vmem:[%s267 + $0x290] sm:$0xff]
      %v370 = vld [vmem:[%s267 + $0x298] sm:$0xff]
      %v371 = vld [vmem:[%s267 + $0x2a0] sm:$0xff]
      %v372 = vld [vmem:[%s267 + $0x2a8] sm:$0xff]
      %v373 = vld [vmem:[%s267 + $0x2b0] sm:$0xff]
      %v374 = vld [vmem:[%s267 + $0x2b8] sm:$0xff]
      %v375 = vld [vmem:[%s267 + $0x2c0] sm:$0xff]
      %v376 = vld [vmem:[%s267 + $0x2c8] sm:$0xff]
      %v377 = vld [vmem:[%s267 + $0x2d0] sm:$0xff]
      %v378 = vld [vmem:[%s267 + $0x2d8] sm:$0xff]
      %v379 = vld [vmem:[%s267 + $0x2e0] sm:$0xff]
      %v380 = vld [vmem:[%s267 + $0x2e8] sm:$0xff]
      %v381 = vld [vmem:[%s267 + $0x2f0] sm:$0xff]
      %v382 = vld [vmem:[%s267 + $0x2f8] sm:$0xff]
      %v383 = vld [vmem:[%s267 + $0x300] sm:$0xff]
      %v384 = vld [vmem:[%s267 + $0x308] sm:$0xff]
      %v385 = vld [vmem:[%s267 + $0x310] sm:$0xff]
      %v386 = vld [vmem:[%s267 + $0x318] sm:$0xff]
      %v387 = vld [vmem:[%s267 + $0x320] sm:$0xff]
      %v388 = vld [vmem:[%s267 + $0x328] sm:$0xff]
      %v389 = vld [vmem:[%s267 + $0x330] sm:$0xff]
      %v390 = vld [vmem:[%s267 + $0x338] sm:$0xff]
      %v391 = vld [vmem:[%s267 + $0x340] sm:$0xff]
      %v392 = vld [vmem:[%s267 + $0x348] sm:$0xff]
      %v393 = vld [vmem:[%s267 + $0x350] sm:$0xff]
      %v394 = vld [vmem:[%s267 + $0x358] sm:$0xff]
      %v395 = vld [vmem:[%s267 + $0x360] sm:$0xff]
      %v396 = vld [vmem:[%s267 + $0x368] sm:$0xff]
      %v397 = vld [vmem:[%s267 + $0x370] sm:$0xff]
      %v398 = vld [vmem:[%s267 + $0x378] sm:$0xff]
      %v399 = vld [vmem:[%s267 + $0x380] sm:$0xff]
      %v400 = vld [vmem:[%s267 + $0x388] sm:$0xff]
      %v401 = vld [vmem:[%s267 + $0x390] sm:$0xff]
      %v402 = vld [vmem:[%s267 + $0x398] sm:$0xff]
      %v403 = vld [vmem:[%s267 + $0x3a0] sm:$0xff]
      %v404 = vld [vmem:[%s267 + $0x3a8] sm:$0xff]
      %v405 = vld [vmem:[%s267 + $0x3b0] sm:$0xff]
      %v406 = vld [vmem:[%s267 + $0x3b8] sm:$0xff]
      %v407 = vld [vmem:[%s267 + $0x3c0] sm:$0xff]
      %v408 = vld [vmem:[%s267 + $0x3c8] sm:$0xff]
      %v409 = vld [vmem:[%s267 + $0x3d0] sm:$0xff]
      %v410 = vld [vmem:[%s267 + $0x3d8] sm:$0xff]
      %v411 = vld [vmem:[%s267 + $0x3e0] sm:$0xff]
      %v412 = vld [vmem:[%s267 + $0x3e8] sm:$0xff]
      %v413 = vld [vmem:[%s267 + $0x3f0] sm:$0xff]
      %v414 = vld [vmem:[%s267 + $0x3f8] sm:$0xff]
      %v415 = vld [vmem:[%s267 + $0x400] sm:$0xff]
      %v416 = vld [vmem:[%s267 + $0x408] sm:$0xff]
      %v417 = vld [vmem:[%s267 + $0x410] sm:$0xff]
      %v418 = vld [vmem:[%s267 + $0x418] sm:$0xff]
      %v419 = vld [vmem:[%s267 + $0x420] sm:$0xff]
      %v420 = vld [vmem:[%s267 + $0x428] sm:$0xff]
      %v421 = vld [vmem:[%s267 + $0x430] sm:$0xff]
      %v422 = vld [vmem:[%s267 + $0x438] sm:$0xff]
      %v423 = vld [vmem:[%s267 + $0x440] sm:$0xff]
      %v424 = vld [vmem:[%s267 + $0x448] sm:$0xff]
      %v425 = vld [vmem:[%s267 + $0x450] sm:$0xff]
      %v426 = vld [vmem:[%s267 + $0x458] sm:$0xff]
      %v427 = vld [vmem:[%s267 + $0x460] sm:$0xff]
      %v428 = vld [vmem:[%s267 + $0x468] sm:$0xff]
      %v429 = vld [vmem:[%s267 + $0x470] sm:$0xff]
      %v430 = vld [vmem:[%s267 + $0x478] sm:$0xff]
      %v431 = vld [vmem:[%s267 + $0x480] sm:$0xff]
      %v432 = vld [vmem:[%s267 + $0x488] sm:$0xff]
      %v433 = vld [vmem:[%s267 + $0x490] sm:$0xff]
      %v434 = vld [vmem:[%s267 + $0x498] sm:$0xff]
      %v435 = vld [vmem:[%s267 + $0x4a0] sm:$0xff]
      %v436 = vld [vmem:[%s267 + $0x4a8] sm:$0xff]
      %v437 = vld [vmem:[%s267 + $0x4b0] sm:$0xff]
      %v438 = vld [vmem:[%s267 + $0x4b8] sm:$0xff]
      %v439 = vld [vmem:[%s267 + $0x4c0] sm:$0xff]
      %v440 = vld [vmem:[%s267 + $0x4c8] sm:$0xff]
      %v441 = vld [vmem:[%s267 + $0x4d0] sm:$0xff]
      %v442 = vld [vmem:[%s267 + $0x4d8] sm:$0xff]
      %v443 = vld [vmem:[%s267 + $0x4e0] sm:$0xff]
      %v444 = vld [vmem:[%s267 + $0x4e8] sm:$0xff]
      %v445 = vld [vmem:[%s267 + $0x4f0] sm:$0xff]
      %v446 = vld [vmem:[%s267 + $0x4f8] sm:$0xff]
      %v447 = vld [vmem:[%s267 + $0x500] sm:$0xff]
      %v448 = vld [vmem:[%s267 + $0x508] sm:$0xff]
      %v449 = vld [vmem:[%s267 + $0x510] sm:$0xff]
      %v450 = vld [vmem:[%s267 + $0x518] sm:$0xff]
      %v451 = vld [vmem:[%s267 + $0x520] sm:$0xff]
      %v452 = vld [vmem:[%s267 + $0x528] sm:$0xff]
      %v453 = vld [vmem:[%s267 + $0x530] sm:$0xff]
      %v454 = vld [vmem:[%s267 + $0x538] sm:$0xff]
      %v455 = vld [vmem:[%s267 + $0x540] sm:$0xff]
      %v456 = vld [vmem:[%s267 + $0x548] sm:$0xff]
      %v457 = vld [vmem:[%s267 + $0x550] sm:$0xff]
      %v458 = vld [vmem:[%s267 + $0x558] sm:$0xff]
      %v459 = vld [vmem:[%s267 + $0x560] sm:$0xff]
      %v460 = vld [vmem:[%s267 + $0x568] sm:$0xff]
      %v461 = vld [vmem:[%s267 + $0x570] sm:$0xff]
      %v462 = vld [vmem:[%s267 + $0x578] sm:$0xff]
      %v463 = vld [vmem:[%s267 + $0x580] sm:$0xff]
      %v464 = vld [vmem:[%s267 + $0x588] sm:$0xff]
      %v465 = vld [vmem:[%s267 + $0x590] sm:$0xff]
      %v466 = vld [vmem:[%s267 + $0x598] sm:$0xff]
      %v467 = vld [vmem:[%s267 + $0x5a0] sm:$0xff]
      %v468 = vld [vmem:[%s267 + $0x5a8] sm:$0xff]
      %v469 = vld [vmem:[%s267 + $0x5b0] sm:$0xff]
      %v470 = vld [vmem:[%s267 + $0x5b8] sm:$0xff]
      %v471 = vld [vmem:[%s267 + $0x5c0] sm:$0xff]
      %v472 = vld [vmem:[%s267 + $0x5c8] sm:$0xff]
      %v473 = vld [vmem:[%s267 + $0x5d0] sm:$0xff]
      %v474 = vld [vmem:[%s267 + $0x5d8] sm:$0xff]
      %v475 = vld [vmem:[%s267 + $0x5e0] sm:$0xff]
      %v476 = vld [vmem:[%s267 + $0x5e8] sm:$0xff]
      %v477 = vld [vmem:[%s267 + $0x5f0] sm:$0xff]
      %v478 = vld [vmem:[%s267 + $0x5f8] sm:$0xff]
      %v479 = vld [vmem:[%s267 + $0x600] sm:$0xff]
      %v480 = vld [vmem:[%s267 + $0x608] sm:$0xff]
      %v481 = vld [vmem:[%s267 + $0x610] sm:$0xff]
      %v482 = vld [vmem:[%s267 + $0x618] sm:$0xff]
      %v483 = vld [vmem:[%s267 + $0x620] sm:$0xff]
      %v484 = vld [vmem:[%s267 + $0x628] sm:$0xff]
      %v485 = vld [vmem:[%s267 + $0x630] sm:$0xff]
      %v486 = vld [vmem:[%s267 + $0x638] sm:$0xff]
      %v487 = vld [vmem:[%s267 + $0x640] sm:$0xff]
      %v488 = vld [vmem:[%s267 + $0x648] sm:$0xff]
      %v489 = vld [vmem:[%s267 + $0x650] sm:$0xff]
      %v490 = vld [vmem:[%s267 + $0x658] sm:$0xff]
      %v491 = vld [vmem:[%s267 + $0x660] sm:$0xff]
      %v492 = vld [vmem:[%s267 + $0x668] sm:$0xff]
      %v493 = vld [vmem:[%s267 + $0x670] sm:$0xff]
      %v494 = vld [vmem:[%s267 + $0x678] sm:$0xff]
      %v495 = vld [vmem:[%s267 + $0x680] sm:$0xff]
      %v496 = vld [vmem:[%s267 + $0x688] sm:$0xff]
      %v497 = vld [vmem:[%s267 + $0x690] sm:$0xff]
      %v498 = vld [vmem:[%s267 + $0x698] sm:$0xff]
      %v499 = vld [vmem:[%s267 + $0x6a0] sm:$0xff]
      %v500 = vld [vmem:[%s267 + $0x6a8] sm:$0xff]
      %v501 = vld [vmem:[%s267 + $0x6b0] sm:$0xff]
      %v502 = vld [vmem:[%s267 + $0x6b8] sm:$0xff]
      %v503 = vld [vmem:[%s267 + $0x6c0] sm:$0xff]
      %v504 = vld [vmem:[%s267 + $0x6c8] sm:$0xff]
      %v505 = vld [vmem:[%s267 + $0x6d0] sm:$0xff]
      %v506 = vld [vmem:[%s267 + $0x6d8] sm:$0xff]
      %v507 = vld [vmem:[%s267 + $0x6e0] sm:$0xff]
      %v508 = vld [vmem:[%s267 + $0x6e8] sm:$0xff]
      %v509 = vld [vmem:[%s267 + $0x6f0] sm:$0xff]
      %v510 = vld [vmem:[%s267 + $0x6f8] sm:$0xff]
      %v511 = vld [vmem:[%s267 + $0x700] sm:$0xff]
      %v512 = vld [vmem:[%s267 + $0x708] sm:$0xff]
      %v513 = vld [vmem:[%s267 + $0x710] sm:$0xff]
      %v514 = vld [vmem:[%s267 + $0x718] sm:$0xff]
      %v515 = vld [vmem:[%s267 + $0x720] sm:$0xff]
      %v516 = vld [vmem:[%s267 + $0x728] sm:$0xff]
      %v517 = vld [vmem:[%s267 + $0x730] sm:$0xff]
      %v518 = vld [vmem:[%s267 + $0x738] sm:$0xff]
      %v519 = vld [vmem:[%s267 + $0x740] sm:$0xff]
      %v520 = vld [vmem:[%s267 + $0x748] sm:$0xff]
      %v521 = vld [vmem:[%s267 + $0x750] sm:$0xff]
      %v522 = vld [vmem:[%s267 + $0x758] sm:$0xff]
      %v523 = vld [vmem:[%s267 + $0x760] sm:$0xff]
      %v524 = vld [vmem:[%s267 + $0x768] sm:$0xff]
      %v525 = vld [vmem:[%s267 + $0x770] sm:$0xff]
      %v526 = vld [vmem:[%s267 + $0x778] sm:$0xff]
      %v527 = vld [vmem:[%s267 + $0x780] sm:$0xff]
      %v528 = vld [vmem:[%s267 + $0x788] sm:$0xff]
      %v529 = vld [vmem:[%s267 + $0x790] sm:$0xff]
      %v530 = vld [vmem:[%s267 + $0x798] sm:$0xff]
      %v531 = vld [vmem:[%s267 + $0x7a0] sm:$0xff]
      %v532 = vld [vmem:[%s267 + $0x7a8] sm:$0xff]
      %v533 = vld [vmem:[%s267 + $0x7b0] sm:$0xff]
      %v534 = vld [vmem:[%s267 + $0x7b8] sm:$0xff]
      %v535 = vld [vmem:[%s267 + $0x7c0] sm:$0xff]
      %v536 = vld [vmem:[%s267 + $0x7c8] sm:$0xff]
      %v537 = vld [vmem:[%s267 + $0x7d0] sm:$0xff]
      %v538 = vld [vmem:[%s267 + $0x7d8] sm:$0xff]
      %v539 = vld [vmem:[%s267 + $0x7e0] sm:$0xff]
      %v540 = vld [vmem:[%s267 + $0x7e8] sm:$0xff]
      %v541 = vld [vmem:[%s267 + $0x7f0] sm:$0xff]
      %v542 = vld [vmem:[%s267 + $0x7f8] sm:$0xff]
      %v543 = vld [vmem:[%s1] sm:$0xff]
      %v544 = vld [vmem:[%s1 + $0x8] sm:$0xff]
      %v545 = vld [vmem:[%s1 + $0x10] sm:$0xff]
      %v546 = vld [vmem:[%s1 + $0x18] sm:$0xff]
      %v547 = vld [vmem:[%s1 + $0x20] sm:$0xff]
      %v548 = vld [vmem:[%s1 + $0x28] sm:$0xff]
      %v549 = vld [vmem:[%s1 + $0x30] sm:$0xff]
      %v550 = vld [vmem:[%s1 + $0x38] sm:$0xff]
      %v551 = vld [vmem:[%s1 + $0x40] sm:$0xff]
      %v552 = vld [vmem:[%s1 + $0x48] sm:$0xff]
      %v553 = vld [vmem:[%s1 + $0x50] sm:$0xff]
      %v554 = vld [vmem:[%s1 + $0x58] sm:$0xff]
      %v555 = vld [vmem:[%s1 + $0x60] sm:$0xff]
      %v556 = vld [vmem:[%s1 + $0x68] sm:$0xff]
      %v557 = vld [vmem:[%s1 + $0x70] sm:$0xff]
      %v558 = vld [vmem:[%s1 + $0x78] sm:$0xff]
      %v559 = vld [vmem:[%s1 + $0x80] sm:$0xff]
      %v560 = vld [vmem:[%s1 + $0x88] sm:$0xff]
      %v561 = vld [vmem:[%s1 + $0x90] sm:$0xff]
      %v562 = vld [vmem:[%s1 + $0x98] sm:$0xff]
      %v563 = vld [vmem:[%s1 + $0xa0] sm:$0xff]
      %v564 = vld [vmem:[%s1 + $0xa8] sm:$0xff]
      %v565 = vld [vmem:[%s1 + $0xb0] sm:$0xff]
      %v566 = vld [vmem:[%s1 + $0xb8] sm:$0xff]
      %v567 = vld [vmem:[%s1 + $0xc0] sm:$0xff]
      %v568 = vld [vmem:[%s1 + $0xc8] sm:$0xff]
      %v569 = vld [vmem:[%s1 + $0xd0] sm:$0xff]
      %v570 = vld [vmem:[%s1 + $0xd8] sm:$0xff]
      %v571 = vld [vmem:[%s1 + $0xe0] sm:$0xff]
      %v572 = vld [vmem:[%s1 + $0xe8] sm:$0xff]
      %v573 = vld [vmem:[%s1 + $0xf0] sm:$0xff]
      %v574 = vld [vmem:[%s1 + $0xf8] sm:$0xff]
      %v575 = vld [vmem:[%s1 + $0x100] sm:$0xff]
      %v576 = vld [vmem:[%s1 + $0x108] sm:$0xff]
      %v577 = vld [vmem:[%s1 + $0x110] sm:$0xff]
      %v578 = vld [vmem:[%s1 + $0x118] sm:$0xff]
      %v579 = vld [vmem:[%s1 + $0x120] sm:$0xff]
      %v580 = vld [vmem:[%s1 + $0x128] sm:$0xff]
      %v581 = vld [vmem:[%s1 + $0x130] sm:$0xff]
      %v582 = vld [vmem:[%s1 + $0x138] sm:$0xff]
      %v583 = vld [vmem:[%s1 + $0x140] sm:$0xff]
      %v584 = vld [vmem:[%s1 + $0x148] sm:$0xff]
      %v585 = vld [vmem:[%s1 + $0x150] sm:$0xff]
      %v586 = vld [vmem:[%s1 + $0x158] sm:$0xff]
      %v587 = vld [vmem:[%s1 + $0x160] sm:$0xff]
      %v588 = vld [vmem:[%s1 + $0x168] sm:$0xff]
      %v589 = vld [vmem:[%s1 + $0x170] sm:$0xff]
      %v590 = vld [vmem:[%s1 + $0x178] sm:$0xff]
      %v591 = vld [vmem:[%s1 + $0x180] sm:$0xff]
      %v592 = vld [vmem:[%s1 + $0x188] sm:$0xff]
      %v593 = vld [vmem:[%s1 + $0x190] sm:$0xff]
      %v594 = vld [vmem:[%s1 + $0x198] sm:$0xff]
      %v595 = vld [vmem:[%s1 + $0x1a0] sm:$0xff]
      %v596 = vld [vmem:[%s1 + $0x1a8] sm:$0xff]
      %v597 = vld [vmem:[%s1 + $0x1b0] sm:$0xff]
      %v598 = vld [vmem:[%s1 + $0x1b8] sm:$0xff]
      %v599 = vld [vmem:[%s1 + $0x1c0] sm:$0xff]
      %v600 = vld [vmem:[%s1 + $0x1c8] sm:$0xff]
      %v601 = vld [vmem:[%s1 + $0x1d0] sm:$0xff]
      %v602 = vld [vmem:[%s1 + $0x1d8] sm:$0xff]
      %v603 = vld [vmem:[%s1 + $0x1e0] sm:$0xff]
      %v604 = vld [vmem:[%s1 + $0x1e8] sm:$0xff]
      %v605 = vld [vmem:[%s1 + $0x1f0] sm:$0xff]
      %v606 = vld [vmem:[%s1 + $0x1f8] sm:$0xff]
      %v607 = vld [vmem:[%s1 + $0x200] sm:$0xff]
      %v608 = vld [vmem:[%s1 + $0x208] sm:$0xff]
      %v609 = vld [vmem:[%s1 + $0x210] sm:$0xff]
      %v610 = vld [vmem:[%s1 + $0x218] sm:$0xff]
      %v611 = vld [vmem:[%s1 + $0x220] sm:$0xff]
      %v612 = vld [vmem:[%s1 + $0x228] sm:$0xff]
      %v613 = vld [vmem:[%s1 + $0x230] sm:$0xff]
      %v614 = vld [vmem:[%s1 + $0x238] sm:$0xff]
      %v615 = vld [vmem:[%s1 + $0x240] sm:$0xff]
      %v616 = vld [vmem:[%s1 + $0x248] sm:$0xff]
      %v617 = vld [vmem:[%s1 + $0x250] sm:$0xff]
      %v618 = vld [vmem:[%s1 + $0x258] sm:$0xff]
      %v619 = vld [vmem:[%s1 + $0x260] sm:$0xff]
      %v620 = vld [vmem:[%s1 + $0x268] sm:$0xff]
      %v621 = vld [vmem:[%s1 + $0x270] sm:$0xff]
      %v622 = vld [vmem:[%s1 + $0x278] sm:$0xff]
      %v623 = vld [vmem:[%s1 + $0x280] sm:$0xff]
      %v624 = vld [vmem:[%s1 + $0x288] sm:$0xff]
      %v625 = vld [vmem:[%s1 + $0x290] sm:$0xff]
      %v626 = vld [vmem:[%s1 + $0x298] sm:$0xff]
      %v627 = vld [vmem:[%s1 + $0x2a0] sm:$0xff]
      %v628 = vld [vmem:[%s1 + $0x2a8] sm:$0xff]
      %v629 = vld [vmem:[%s1 + $0x2b0] sm:$0xff]
      %v630 = vld [vmem:[%s1 + $0x2b8] sm:$0xff]
      %v631 = vld [vmem:[%s1 + $0x2c0] sm:$0xff]
      %v632 = vld [vmem:[%s1 + $0x2c8] sm:$0xff]
      %v633 = vld [vmem:[%s1 + $0x2d0] sm:$0xff]
      %v634 = vld [vmem:[%s1 + $0x2d8] sm:$0xff]
      %v635 = vld [vmem:[%s1 + $0x2e0] sm:$0xff]
      %v636 = vld [vmem:[%s1 + $0x2e8] sm:$0xff]
      %v637 = vld [vmem:[%s1 + $0x2f0] sm:$0xff]
      %v638 = vld [vmem:[%s1 + $0x2f8] sm:$0xff]
      %v639 = vld [vmem:[%s1 + $0x300] sm:$0xff]
      %v640 = vld [vmem:[%s1 + $0x308] sm:$0xff]
      %v641 = vld [vmem:[%s1 + $0x310] sm:$0xff]
      %v642 = vld [vmem:[%s1 + $0x318] sm:$0xff]
      %v643 = vld [vmem:[%s1 + $0x320] sm:$0xff]
      %v644 = vld [vmem:[%s1 + $0x328] sm:$0xff]
      %v645 = vld [vmem:[%s1 + $0x330] sm:$0xff]
      %v646 = vld [vmem:[%s1 + $0x338] sm:$0xff]
      %v647 = vld [vmem:[%s1 + $0x340] sm:$0xff]
      %v648 = vld [vmem:[%s1 + $0x348] sm:$0xff]
      %v649 = vld [vmem:[%s1 + $0x350] sm:$0xff]
      %v650 = vld [vmem:[%s1 + $0x358] sm:$0xff]
      %v651 = vld [vmem:[%s1 + $0x360] sm:$0xff]
      %v652 = vld [vmem:[%s1 + $0x368] sm:$0xff]
      %v653 = vld [vmem:[%s1 + $0x370] sm:$0xff]
      %v654 = vld [vmem:[%s1 + $0x378] sm:$0xff]
      %v655 = vld [vmem:[%s1 + $0x380] sm:$0xff]
      %v656 = vld [vmem:[%s1 + $0x388] sm:$0xff]
      %v657 = vld [vmem:[%s1 + $0x390] sm:$0xff]
      %v658 = vld [vmem:[%s1 + $0x398] sm:$0xff]
      %v659 = vld [vmem:[%s1 + $0x3a0] sm:$0xff]
      %v660 = vld [vmem:[%s1 + $0x3a8] sm:$0xff]
      %v661 = vld [vmem:[%s1 + $0x3b0] sm:$0xff]
      %v662 = vld [vmem:[%s1 + $0x3b8] sm:$0xff]
      %v663 = vld [vmem:[%s1 + $0x3c0] sm:$0xff]
      %v664 = vld [vmem:[%s1 + $0x3c8] sm:$0xff]
      %v665 = vld [vmem:[%s1 + $0x3d0] sm:$0xff]
      %v666 = vld [vmem:[%s1 + $0x3d8] sm:$0xff]
      %v667 = vld [vmem:[%s1 + $0x3e0] sm:$0xff]
      %v668 = vld [vmem:[%s1 + $0x3e8] sm:$0xff]
      %v669 = vld [vmem:[%s1 + $0x3f0] sm:$0xff]
      %v670 = vld [vmem:[%s1 + $0x3f8] sm:$0xff]
      %v671 = vld [vmem:[%s2] sm:$0xff]
      %v672 = vld [vmem:[%s2 + $0x8] sm:$0xff]
      %v673 = vld [vmem:[%s2 + $0x10] sm:$0xff]
      %v674 = vld [vmem:[%s2 + $0x18] sm:$0xff]
      %v675 = vld [vmem:[%s2 + $0x20] sm:$0xff]
      %v676 = vld [vmem:[%s2 + $0x28] sm:$0xff]
      %v677 = vld [vmem:[%s2 + $0x30] sm:$0xff]
      %v678 = vld [vmem:[%s2 + $0x38] sm:$0xff]
      %v679 = vld [vmem:[%s2 + $0x40] sm:$0xff]
      %v680 = vld [vmem:[%s2 + $0x48] sm:$0xff]
      %v681 = vld [vmem:[%s2 + $0x50] sm:$0xff]
      %v682 = vld [vmem:[%s2 + $0x58] sm:$0xff]
      %v683 = vld [vmem:[%s2 + $0x60] sm:$0xff]
      %v684 = vld [vmem:[%s2 + $0x68] sm:$0xff]
      %v685 = vld [vmem:[%s2 + $0x70] sm:$0xff]
      %v686 = vld [vmem:[%s2 + $0x78] sm:$0xff]
      %v687 = vpack.c.bf16 %v288, %v287
      %v688 = vpack.c.bf16 %v290, %v289
      %v689 = vpack.c.bf16 %v292, %v291
      %v690 = vpack.c.bf16 %v294, %v293
      %v691 = vpack.c.bf16 %v296, %v295
      %v692 = vpack.c.bf16 %v298, %v297
      %v693 = vpack.c.bf16 %v300, %v299
      %v694 = vpack.c.bf16 %v302, %v301
      %v695 = vpack.c.bf16 %v304, %v303
      %v696 = vpack.c.bf16 %v306, %v305
      %v697 = vpack.c.bf16 %v308, %v307
      %v698 = vpack.c.bf16 %v310, %v309
      %v699 = vpack.c.bf16 %v312, %v311
      %v700 = vpack.c.bf16 %v314, %v313
      %v701 = vpack.c.bf16 %v316, %v315
      %v702 = vpack.c.bf16 %v318, %v317
      %v703 = vpack.c.bf16 %v320, %v319
      %v704 = vpack.c.bf16 %v322, %v321
      %v705 = vpack.c.bf16 %v324, %v323
      %v706 = vpack.c.bf16 %v326, %v325
      %v707 = vpack.c.bf16 %v328, %v327
      %v708 = vpack.c.bf16 %v330, %v329
      %v709 = vpack.c.bf16 %v332, %v331
      %v710 = vpack.c.bf16 %v334, %v333
      %v711 = vpack.c.bf16 %v336, %v335
      %v712 = vpack.c.bf16 %v338, %v337
      %v713 = vpack.c.bf16 %v340, %v339
      %v714 = vpack.c.bf16 %v342, %v341
      %v715 = vpack.c.bf16 %v344, %v343
      %v716 = vpack.c.bf16 %v346, %v345
      %v717 = vpack.c.bf16 %v348, %v347
      %v718 = vpack.c.bf16 %v350, %v349
      %v719 = vpack.c.bf16 %v352, %v351
      %v720 = vpack.c.bf16 %v354, %v353
      %v721 = vpack.c.bf16 %v356, %v355
      %v722 = vpack.c.bf16 %v358, %v357
      %v723 = vpack.c.bf16 %v360, %v359
      %v724 = vpack.c.bf16 %v362, %v361
      %v725 = vpack.c.bf16 %v364, %v363
      %v726 = vpack.c.bf16 %v366, %v365
      %v727 = vpack.c.bf16 %v368, %v367
      %v728 = vpack.c.bf16 %v370, %v369
      %v729 = vpack.c.bf16 %v372, %v371
      %v730 = vpack.c.bf16 %v374, %v373
      %v731 = vpack.c.bf16 %v376, %v375
      %v732 = vpack.c.bf16 %v378, %v377
      %v733 = vpack.c.bf16 %v380, %v379
      %v734 = vpack.c.bf16 %v382, %v381
      %v735 = vpack.c.bf16 %v384, %v383
      %v736 = vpack.c.bf16 %v386, %v385
      %v737 = vpack.c.bf16 %v388, %v387
      %v738 = vpack.c.bf16 %v390, %v389
      %v739 = vpack.c.bf16 %v392, %v391
      %v740 = vpack.c.bf16 %v394, %v393
      %v741 = vpack.c.bf16 %v396, %v395
      %v742 = vpack.c.bf16 %v398, %v397
      %v743 = vpack.c.bf16 %v400, %v399
      %v744 = vpack.c.bf16 %v402, %v401
      %v745 = vpack.c.bf16 %v404, %v403
      %v746 = vpack.c.bf16 %v406, %v405
      %v747 = vpack.c.bf16 %v408, %v407
      %v748 = vpack.c.bf16 %v410, %v409
      %v749 = vpack.c.bf16 %v412, %v411
      %v750 = vpack.c.bf16 %v414, %v413
      %v751 = vpack.c.bf16 %v416, %v415
      %v752 = vpack.c.bf16 %v418, %v417
      %v753 = vpack.c.bf16 %v420, %v419
      %v754 = vpack.c.bf16 %v422, %v421
      %v755 = vpack.c.bf16 %v424, %v423
      %v756 = vpack.c.bf16 %v426, %v425
      %v757 = vpack.c.bf16 %v428, %v427
      %v758 = vpack.c.bf16 %v430, %v429
      %v759 = vpack.c.bf16 %v432, %v431
      %v760 = vpack.c.bf16 %v434, %v433
      %v761 = vpack.c.bf16 %v436, %v435
      %v762 = vpack.c.bf16 %v438, %v437
      %v763 = vpack.c.bf16 %v440, %v439
      %v764 = vpack.c.bf16 %v442, %v441
      %v765 = vpack.c.bf16 %v444, %v443
      %v766 = vpack.c.bf16 %v446, %v445
      %v767 = vpack.c.bf16 %v448, %v447
      %v768 = vpack.c.bf16 %v450, %v449
      %v769 = vpack.c.bf16 %v452, %v451
      %v770 = vpack.c.bf16 %v454, %v453
      %v771 = vpack.c.bf16 %v456, %v455
      %v772 = vpack.c.bf16 %v458, %v457
      %v773 = vpack.c.bf16 %v460, %v459
      %v774 = vpack.c.bf16 %v462, %v461
      %v775 = vpack.c.bf16 %v464, %v463
      %v776 = vpack.c.bf16 %v466, %v465
      %v777 = vpack.c.bf16 %v468, %v467
      %v778 = vpack.c.bf16 %v470, %v469
      %v779 = vpack.c.bf16 %v472, %v471
      %v780 = vpack.c.bf16 %v474, %v473
      %v781 = vpack.c.bf16 %v476, %v475
      %v782 = vpack.c.bf16 %v478, %v477
      %v783 = vpack.c.bf16 %v480, %v479
      %v784 = vpack.c.bf16 %v482, %v481
      %v785 = vpack.c.bf16 %v484, %v483
      %v786 = vpack.c.bf16 %v486, %v485
      %v787 = vpack.c.bf16 %v488, %v487
      %v788 = vpack.c.bf16 %v490, %v489
      %v789 = vpack.c.bf16 %v492, %v491
      %v790 = vpack.c.bf16 %v494, %v493
      %v791 = vpack.c.bf16 %v496, %v495
      %v792 = vpack.c.bf16 %v498, %v497
      %v793 = vpack.c.bf16 %v500, %v499
      %v794 = vpack.c.bf16 %v502, %v501
      %v795 = vpack.c.bf16 %v504, %v503
      %v796 = vpack.c.bf16 %v506, %v505
      %v797 = vpack.c.bf16 %v508, %v507
      %v798 = vpack.c.bf16 %v510, %v509
      %v799 = vpack.c.bf16 %v512, %v511
      %v800 = vpack.c.bf16 %v514, %v513
      %v801 = vpack.c.bf16 %v516, %v515
      %v802 = vpack.c.bf16 %v518, %v517
      %v803 = vpack.c.bf16 %v520, %v519
      %v804 = vpack.c.bf16 %v522, %v521
      %v805 = vpack.c.bf16 %v524, %v523
      %v806 = vpack.c.bf16 %v526, %v525
      %v807 = vpack.c.bf16 %v528, %v527
      %v808 = vpack.c.bf16 %v530, %v529
      %v809 = vpack.c.bf16 %v532, %v531
      %v810 = vpack.c.bf16 %v534, %v533
      %v811 = vpack.c.bf16 %v536, %v535
      %v812 = vpack.c.bf16 %v538, %v537
      %v813 = vpack.c.bf16 %v540, %v539
      %v814 = vpack.c.bf16 %v542, %v541
      %816 = vset.pattern.permute.xlu0 0
      %817 = vperm.xlu0 %816, %v671
      %v818 = vpop.permute.xlu0 %817
      %821 = vset.pattern.permute.xlu0 0
      %822 = vperm.xlu0 %821, %v672
      %v823 = vpop.permute.xlu0 %822
      %826 = vset.pattern.permute.xlu0 0
      %827 = vperm.xlu0 %826, %v673
      %v828 = vpop.permute.xlu0 %827
      %831 = vset.pattern.permute.xlu0 0
      %832 = vperm.xlu0 %831, %v674
      %v833 = vpop.permute.xlu0 %832
      %836 = vset.pattern.permute.xlu0 0
      %837 = vperm.xlu0 %836, %v675
      %v838 = vpop.permute.xlu0 %837
      %841 = vset.pattern.permute.xlu0 0
      %842 = vperm.xlu0 %841, %v676
      %v843 = vpop.permute.xlu0 %842
      %846 = vset.pattern.permute.xlu0 0
      %847 = vperm.xlu0 %846, %v677
      %v848 = vpop.permute.xlu0 %847
      %851 = vset.pattern.permute.xlu0 0
      %852 = vperm.xlu0 %851, %v678
      %v853 = vpop.permute.xlu0 %852
      %856 = vset.pattern.permute.xlu0 0
      %857 = vperm.xlu0 %856, %v679
      %v858 = vpop.permute.xlu0 %857
      %861 = vset.pattern.permute.xlu0 0
      %862 = vperm.xlu0 %861, %v680
      %v863 = vpop.permute.xlu0 %862
      %866 = vset.pattern.permute.xlu0 0
      %867 = vperm.xlu0 %866, %v681
      %v868 = vpop.permute.xlu0 %867
      %871 = vset.pattern.permute.xlu0 0
      %872 = vperm.xlu0 %871, %v682
      %v873 = vpop.permute.xlu0 %872
      %876 = vset.pattern.permute.xlu0 0
      %877 = vperm.xlu0 %876, %v683
      %v878 = vpop.permute.xlu0 %877
      %881 = vset.pattern.permute.xlu0 0
      %882 = vperm.xlu0 %881, %v684
      %v883 = vpop.permute.xlu0 %882
      %886 = vset.pattern.permute.xlu0 0
      %887 = vperm.xlu0 %886, %v685
      %v888 = vpop.permute.xlu0 %887
      %891 = vset.pattern.permute.xlu0 0
      %892 = vperm.xlu0 %891, %v686
      %v893 = vpop.permute.xlu0 %892
      %v1023 = vunpack.c.l.b16 %v543
      %v1024 = vunpack.c.h.b16 %v543
      %v1025 = vunpack.c.l.b16 %v544
      %v1026 = vunpack.c.h.b16 %v544
      %v1027 = vunpack.c.l.b16 %v545
      %v1028 = vunpack.c.h.b16 %v545
      %v1029 = vunpack.c.l.b16 %v546
      %v1030 = vunpack.c.h.b16 %v546
      %v1031 = vunpack.c.l.b16 %v547
      %v1032 = vunpack.c.h.b16 %v547
      %v1033 = vunpack.c.l.b16 %v548
      %v1034 = vunpack.c.h.b16 %v548
      %v1035 = vunpack.c.l.b16 %v549
      %v1036 = vunpack.c.h.b16 %v549
      %v1037 = vunpack.c.l.b16 %v550
      %v1038 = vunpack.c.h.b16 %v550
      %v1039 = vunpack.c.l.b16 %v551
      %v1040 = vunpack.c.h.b16 %v551
      %v1041 = vunpack.c.l.b16 %v552
      %v1042 = vunpack.c.h.b16 %v552
      %v1043 = vunpack.c.l.b16 %v553
      %v1044 = vunpack.c.h.b16 %v553
      %v1045 = vunpack.c.l.b16 %v554
      %v1046 = vunpack.c.h.b16 %v554
      %v1047 = vunpack.c.l.b16 %v555
      %v1048 = vunpack.c.h.b16 %v555
      %v1049 = vunpack.c.l.b16 %v556
      %v1050 = vunpack.c.h.b16 %v556
      %v1051 = vunpack.c.l.b16 %v557
      %v1052 = vunpack.c.h.b16 %v557
      %v1053 = vunpack.c.l.b16 %v558
      %v1054 = vunpack.c.h.b16 %v558
      %v1055 = vunpack.c.l.b16 %v559
      %v1056 = vunpack.c.h.b16 %v559
      %v1057 = vunpack.c.l.b16 %v560
      %v1058 = vunpack.c.h.b16 %v560
      %v1059 = vunpack.c.l.b16 %v561
      %v1060 = vunpack.c.h.b16 %v561
      %v1061 = vunpack.c.l.b16 %v562
      %v1062 = vunpack.c.h.b16 %v562
      %v1063 = vunpack.c.l.b16 %v563
      %v1064 = vunpack.c.h.b16 %v563
      %v1065 = vunpack.c.l.b16 %v564
      %v1066 = vunpack.c.h.b16 %v564
      %v1067 = vunpack.c.l.b16 %v565
      %v1068 = vunpack.c.h.b16 %v565
      %v1069 = vunpack.c.l.b16 %v566
      %v1070 = vunpack.c.h.b16 %v566
      %v1071 = vunpack.c.l.b16 %v567
      %v1072 = vunpack.c.h.b16 %v567
      %v1073 = vunpack.c.l.b16 %v568
      %v1074 = vunpack.c.h.b16 %v568
      %v1075 = vunpack.c.l.b16 %v569
      %v1076 = vunpack.c.h.b16 %v569
      %v1077 = vunpack.c.l.b16 %v570
      %v1078 = vunpack.c.h.b16 %v570
      %v1079 = vunpack.c.l.b16 %v571
      %v1080 = vunpack.c.h.b16 %v571
      %v1081 = vunpack.c.l.b16 %v572
      %v1082 = vunpack.c.h.b16 %v572
      %v1083 = vunpack.c.l.b16 %v573
      %v1084 = vunpack.c.h.b16 %v573
      %v1085 = vunpack.c.l.b16 %v574
      %v1086 = vunpack.c.h.b16 %v574
      %v1087 = vunpack.c.l.b16 %v575
      %v1088 = vunpack.c.h.b16 %v575
      %v1089 = vunpack.c.l.b16 %v576
      %v1090 = vunpack.c.h.b16 %v576
      %v1091 = vunpack.c.l.b16 %v577
      %v1092 = vunpack.c.h.b16 %v577
      %v1093 = vunpack.c.l.b16 %v578
      %v1094 = vunpack.c.h.b16 %v578
      %v1095 = vunpack.c.l.b16 %v579
      %v1096 = vunpack.c.h.b16 %v579
      %v1097 = vunpack.c.l.b16 %v580
      %v1098 = vunpack.c.h.b16 %v580
      %v1099 = vunpack.c.l.b16 %v581
      %v1100 = vunpack.c.h.b16 %v581
      %v1101 = vunpack.c.l.b16 %v582
      %v1102 = vunpack.c.h.b16 %v582
      %v1103 = vunpack.c.l.b16 %v583
      %v1104 = vunpack.c.h.b16 %v583
      %v1105 = vunpack.c.l.b16 %v584
      %v1106 = vunpack.c.h.b16 %v584
      %v1107 = vunpack.c.l.b16 %v585
      %v1108 = vunpack.c.h.b16 %v585
      %v1109 = vunpack.c.l.b16 %v586
      %v1110 = vunpack.c.h.b16 %v586
      %v1111 = vunpack.c.l.b16 %v587
      %v1112 = vunpack.c.h.b16 %v587
      %v1113 = vunpack.c.l.b16 %v588
      %v1114 = vunpack.c.h.b16 %v588
      %v1115 = vunpack.c.l.b16 %v589
      %v1116 = vunpack.c.h.b16 %v589
      %v1117 = vunpack.c.l.b16 %v590
      %v1118 = vunpack.c.h.b16 %v590
      %v1119 = vunpack.c.l.b16 %v591
      %v1120 = vunpack.c.h.b16 %v591
      %v1121 = vunpack.c.l.b16 %v592
      %v1122 = vunpack.c.h.b16 %v592
      %v1123 = vunpack.c.l.b16 %v593
      %v1124 = vunpack.c.h.b16 %v593
      %v1125 = vunpack.c.l.b16 %v594
      %v1126 = vunpack.c.h.b16 %v594
      %v1127 = vunpack.c.l.b16 %v595
      %v1128 = vunpack.c.h.b16 %v595
      %v1129 = vunpack.c.l.b16 %v596
      %v1130 = vunpack.c.h.b16 %v596
      %v1131 = vunpack.c.l.b16 %v597
      %v1132 = vunpack.c.h.b16 %v597
      %v1133 = vunpack.c.l.b16 %v598
      %v1134 = vunpack.c.h.b16 %v598
      %v1135 = vunpack.c.l.b16 %v599
      %v1136 = vunpack.c.h.b16 %v599
      %v1137 = vunpack.c.l.b16 %v600
      %v1138 = vunpack.c.h.b16 %v600
      %v1139 = vunpack.c.l.b16 %v601
      %v1140 = vunpack.c.h.b16 %v601
      %v1141 = vunpack.c.l.b16 %v602
      %v1142 = vunpack.c.h.b16 %v602
      %v1143 = vunpack.c.l.b16 %v603
      %v1144 = vunpack.c.h.b16 %v603
      %v1145 = vunpack.c.l.b16 %v604
      %v1146 = vunpack.c.h.b16 %v604
      %v1147 = vunpack.c.l.b16 %v605
      %v1148 = vunpack.c.h.b16 %v605
      %v1149 = vunpack.c.l.b16 %v606
      %v1150 = vunpack.c.h.b16 %v606
      %v1151 = vunpack.c.l.b16 %v607
      %v1152 = vunpack.c.h.b16 %v607
      %v1153 = vunpack.c.l.b16 %v608
      %v1154 = vunpack.c.h.b16 %v608
      %v1155 = vunpack.c.l.b16 %v609
      %v1156 = vunpack.c.h.b16 %v609
      %v1157 = vunpack.c.l.b16 %v610
      %v1158 = vunpack.c.h.b16 %v610
      %v1159 = vunpack.c.l.b16 %v611
      %v1160 = vunpack.c.h.b16 %v611
      %v1161 = vunpack.c.l.b16 %v612
      %v1162 = vunpack.c.h.b16 %v612
      %v1163 = vunpack.c.l.b16 %v613
      %v1164 = vunpack.c.h.b16 %v613
      %v1165 = vunpack.c.l.b16 %v614
      %v1166 = vunpack.c.h.b16 %v614
      %v1167 = vunpack.c.l.b16 %v615
      %v1168 = vunpack.c.h.b16 %v615
      %v1169 = vunpack.c.l.b16 %v616
      %v1170 = vunpack.c.h.b16 %v616
      %v1171 = vunpack.c.l.b16 %v617
      %v1172 = vunpack.c.h.b16 %v617
      %v1173 = vunpack.c.l.b16 %v618
      %v1174 = vunpack.c.h.b16 %v618
      %v1175 = vunpack.c.l.b16 %v619
      %v1176 = vunpack.c.h.b16 %v619
      %v1177 = vunpack.c.l.b16 %v620
      %v1178 = vunpack.c.h.b16 %v620
      %v1179 = vunpack.c.l.b16 %v621
      %v1180 = vunpack.c.h.b16 %v621
      %v1181 = vunpack.c.l.b16 %v622
      %v1182 = vunpack.c.h.b16 %v622
      %v1183 = vunpack.c.l.b16 %v623
      %v1184 = vunpack.c.h.b16 %v623
      %v1185 = vunpack.c.l.b16 %v624
      %v1186 = vunpack.c.h.b16 %v624
      %v1187 = vunpack.c.l.b16 %v625
      %v1188 = vunpack.c.h.b16 %v625
      %v1189 = vunpack.c.l.b16 %v626
      %v1190 = vunpack.c.h.b16 %v626
      %v1191 = vunpack.c.l.b16 %v627
      %v1192 = vunpack.c.h.b16 %v627
      %v1193 = vunpack.c.l.b16 %v628
      %v1194 = vunpack.c.h.b16 %v628
      %v1195 = vunpack.c.l.b16 %v629
      %v1196 = vunpack.c.h.b16 %v629
      %v1197 = vunpack.c.l.b16 %v630
      %v1198 = vunpack.c.h.b16 %v630
      %v1199 = vunpack.c.l.b16 %v631
      %v1200 = vunpack.c.h.b16 %v631
      %v1201 = vunpack.c.l.b16 %v632
      %v1202 = vunpack.c.h.b16 %v632
      %v1203 = vunpack.c.l.b16 %v633
      %v1204 = vunpack.c.h.b16 %v633
      %v1205 = vunpack.c.l.b16 %v634
      %v1206 = vunpack.c.h.b16 %v634
      %v1207 = vunpack.c.l.b16 %v635
      %v1208 = vunpack.c.h.b16 %v635
      %v1209 = vunpack.c.l.b16 %v636
      %v1210 = vunpack.c.h.b16 %v636
      %v1211 = vunpack.c.l.b16 %v637
      %v1212 = vunpack.c.h.b16 %v637
      %v1213 = vunpack.c.l.b16 %v638
      %v1214 = vunpack.c.h.b16 %v638
      %v1215 = vunpack.c.l.b16 %v639
      %v1216 = vunpack.c.h.b16 %v639
      %v1217 = vunpack.c.l.b16 %v640
      %v1218 = vunpack.c.h.b16 %v640
      %v1219 = vunpack.c.l.b16 %v641
      %v1220 = vunpack.c.h.b16 %v641
      %v1221 = vunpack.c.l.b16 %v642
      %v1222 = vunpack.c.h.b16 %v642
      %v1223 = vunpack.c.l.b16 %v643
      %v1224 = vunpack.c.h.b16 %v643
      %v1225 = vunpack.c.l.b16 %v644
      %v1226 = vunpack.c.h.b16 %v644
      %v1227 = vunpack.c.l.b16 %v645
      %v1228 = vunpack.c.h.b16 %v645
      %v1229 = vunpack.c.l.b16 %v646
      %v1230 = vunpack.c.h.b16 %v646
      %v1231 = vunpack.c.l.b16 %v647
      %v1232 = vunpack.c.h.b16 %v647
      %v1233 = vunpack.c.l.b16 %v648
      %v1234 = vunpack.c.h.b16 %v648
      %v1235 = vunpack.c.l.b16 %v649
      %v1236 = vunpack.c.h.b16 %v649
      %v1237 = vunpack.c.l.b16 %v650
      %v1238 = vunpack.c.h.b16 %v650
      %v1239 = vunpack.c.l.b16 %v651
      %v1240 = vunpack.c.h.b16 %v651
      %v1241 = vunpack.c.l.b16 %v652
      %v1242 = vunpack.c.h.b16 %v652
      %v1243 = vunpack.c.l.b16 %v653
      %v1244 = vunpack.c.h.b16 %v653
      %v1245 = vunpack.c.l.b16 %v654
      %v1246 = vunpack.c.h.b16 %v654
      %v1247 = vunpack.c.l.b16 %v655
      %v1248 = vunpack.c.h.b16 %v655
      %v1249 = vunpack.c.l.b16 %v656
      %v1250 = vunpack.c.h.b16 %v656
      %v1251 = vunpack.c.l.b16 %v657
      %v1252 = vunpack.c.h.b16 %v657
      %v1253 = vunpack.c.l.b16 %v658
      %v1254 = vunpack.c.h.b16 %v658
      %v1255 = vunpack.c.l.b16 %v659
      %v1256 = vunpack.c.h.b16 %v659
      %v1257 = vunpack.c.l.b16 %v660
      %v1258 = vunpack.c.h.b16 %v660
      %v1259 = vunpack.c.l.b16 %v661
      %v1260 = vunpack.c.h.b16 %v661
      %v1261 = vunpack.c.l.b16 %v662
      %v1262 = vunpack.c.h.b16 %v662
      %v1263 = vunpack.c.l.b16 %v663
      %v1264 = vunpack.c.h.b16 %v663
      %v1265 = vunpack.c.l.b16 %v664
      %v1266 = vunpack.c.h.b16 %v664
      %v1267 = vunpack.c.l.b16 %v665
      %v1268 = vunpack.c.h.b16 %v665
      %v1269 = vunpack.c.l.b16 %v666
      %v1270 = vunpack.c.h.b16 %v666
      %v1271 = vunpack.c.l.b16 %v667
      %v1272 = vunpack.c.h.b16 %v667
      %v1273 = vunpack.c.l.b16 %v668
      %v1274 = vunpack.c.h.b16 %v668
      %v1275 = vunpack.c.l.b16 %v669
      %v1276 = vunpack.c.h.b16 %v669
      %v1277 = vunpack.c.l.b16 %v670
      %v1278 = vunpack.c.h.b16 %v670
      %v1279 = vpack.c.b16 %v1039, %v1023
      %v1280 = vpack.c.b16 %v1040, %v1024
      %v1281 = vpack.c.b16 %v1041, %v1025
      %v1282 = vpack.c.b16 %v1042, %v1026
      %v1283 = vpack.c.b16 %v1043, %v1027
      %v1284 = vpack.c.b16 %v1044, %v1028
      %v1285 = vpack.c.b16 %v1045, %v1029
      %v1286 = vpack.c.b16 %v1046, %v1030
      %v1287 = vpack.c.b16 %v1047, %v1031
      %v1288 = vpack.c.b16 %v1048, %v1032
      %v1289 = vpack.c.b16 %v1049, %v1033
      %v1290 = vpack.c.b16 %v1050, %v1034
      %v1291 = vpack.c.b16 %v1051, %v1035
      %v1292 = vpack.c.b16 %v1052, %v1036
      %v1293 = vpack.c.b16 %v1053, %v1037
      %v1294 = vpack.c.b16 %v1054, %v1038
      %v1295 = vpack.c.b16 %v1071, %v1055
      %v1296 = vpack.c.b16 %v1072, %v1056
      %v1297 = vpack.c.b16 %v1073, %v1057
      %v1298 = vpack.c.b16 %v1074, %v1058
      %v1299 = vpack.c.b16 %v1075, %v1059
      %v1300 = vpack.c.b16 %v1076, %v1060
      %v1301 = vpack.c.b16 %v1077, %v1061
      %v1302 = vpack.c.b16 %v1078, %v1062
      %v1303 = vpack.c.b16 %v1079, %v1063
      %v1304 = vpack.c.b16 %v1080, %v1064
      %v1305 = vpack.c.b16 %v1081, %v1065
      %v1306 = vpack.c.b16 %v1082, %v1066
      %v1307 = vpack.c.b16 %v1083, %v1067
      %v1308 = vpack.c.b16 %v1084, %v1068
      %v1309 = vpack.c.b16 %v1085, %v1069
      %v1310 = vpack.c.b16 %v1086, %v1070
      %v1311 = vpack.c.b16 %v1103, %v1087
      %v1312 = vpack.c.b16 %v1104, %v1088
      %v1313 = vpack.c.b16 %v1105, %v1089
      %v1314 = vpack.c.b16 %v1106, %v1090
      %v1315 = vpack.c.b16 %v1107, %v1091
      %v1316 = vpack.c.b16 %v1108, %v1092
      %v1317 = vpack.c.b16 %v1109, %v1093
      %v1318 = vpack.c.b16 %v1110, %v1094
      %v1319 = vpack.c.b16 %v1111, %v1095
      %v1320 = vpack.c.b16 %v1112, %v1096
      %v1321 = vpack.c.b16 %v1113, %v1097
      %v1322 = vpack.c.b16 %v1114, %v1098
      %v1323 = vpack.c.b16 %v1115, %v1099
      %v1324 = vpack.c.b16 %v1116, %v1100
      %v1325 = vpack.c.b16 %v1117, %v1101
      %v1326 = vpack.c.b16 %v1118, %v1102
      %v1327 = vpack.c.b16 %v1135, %v1119
      %v1328 = vpack.c.b16 %v1136, %v1120
      %v1329 = vpack.c.b16 %v1137, %v1121
      %v1330 = vpack.c.b16 %v1138, %v1122
      %v1331 = vpack.c.b16 %v1139, %v1123
      %v1332 = vpack.c.b16 %v1140, %v1124
      %v1333 = vpack.c.b16 %v1141, %v1125
      %v1334 = vpack.c.b16 %v1142, %v1126
      %v1335 = vpack.c.b16 %v1143, %v1127
      %v1336 = vpack.c.b16 %v1144, %v1128
      %v1337 = vpack.c.b16 %v1145, %v1129
      %v1338 = vpack.c.b16 %v1146, %v1130
      %v1339 = vpack.c.b16 %v1147, %v1131
      %v1340 = vpack.c.b16 %v1148, %v1132
      %v1341 = vpack.c.b16 %v1149, %v1133
      %v1342 = vpack.c.b16 %v1150, %v1134
      %v1343 = vpack.c.b16 %v1167, %v1151
      %v1344 = vpack.c.b16 %v1168, %v1152
      %v1345 = vpack.c.b16 %v1169, %v1153
      %v1346 = vpack.c.b16 %v1170, %v1154
      %v1347 = vpack.c.b16 %v1171, %v1155
      %v1348 = vpack.c.b16 %v1172, %v1156
      %v1349 = vpack.c.b16 %v1173, %v1157
      %v1350 = vpack.c.b16 %v1174, %v1158
      %v1351 = vpack.c.b16 %v1175, %v1159
      %v1352 = vpack.c.b16 %v1176, %v1160
      %v1353 = vpack.c.b16 %v1177, %v1161
      %v1354 = vpack.c.b16 %v1178, %v1162
      %v1355 = vpack.c.b16 %v1179, %v1163
      %v1356 = vpack.c.b16 %v1180, %v1164
      %v1357 = vpack.c.b16 %v1181, %v1165
      %v1358 = vpack.c.b16 %v1182, %v1166
      %v1359 = vpack.c.b16 %v1199, %v1183
      %v1360 = vpack.c.b16 %v1200, %v1184
      %v1361 = vpack.c.b16 %v1201, %v1185
      %v1362 = vpack.c.b16 %v1202, %v1186
      %v1363 = vpack.c.b16 %v1203, %v1187
      %v1364 = vpack.c.b16 %v1204, %v1188
      %v1365 = vpack.c.b16 %v1205, %v1189
      %v1366 = vpack.c.b16 %v1206, %v1190
      %v1367 = vpack.c.b16 %v1207, %v1191
      %v1368 = vpack.c.b16 %v1208, %v1192
      %v1369 = vpack.c.b16 %v1209, %v1193
      %v1370 = vpack.c.b16 %v1210, %v1194
      %v1371 = vpack.c.b16 %v1211, %v1195
      %v1372 = vpack.c.b16 %v1212, %v1196
      %v1373 = vpack.c.b16 %v1213, %v1197
      %v1374 = vpack.c.b16 %v1214, %v1198
      %v1375 = vpack.c.b16 %v1231, %v1215
      %v1376 = vpack.c.b16 %v1232, %v1216
      %v1377 = vpack.c.b16 %v1233, %v1217
      %v1378 = vpack.c.b16 %v1234, %v1218
      %v1379 = vpack.c.b16 %v1235, %v1219
      %v1380 = vpack.c.b16 %v1236, %v1220
      %v1381 = vpack.c.b16 %v1237, %v1221
      %v1382 = vpack.c.b16 %v1238, %v1222
      %v1383 = vpack.c.b16 %v1239, %v1223
      %v1384 = vpack.c.b16 %v1240, %v1224
      %v1385 = vpack.c.b16 %v1241, %v1225
      %v1386 = vpack.c.b16 %v1242, %v1226
      %v1387 = vpack.c.b16 %v1243, %v1227
      %v1388 = vpack.c.b16 %v1244, %v1228
      %v1389 = vpack.c.b16 %v1245, %v1229
      %v1390 = vpack.c.b16 %v1246, %v1230
      %v1391 = vpack.c.b16 %v1263, %v1247
      %v1392 = vpack.c.b16 %v1264, %v1248
      %v1393 = vpack.c.b16 %v1265, %v1249
      %v1394 = vpack.c.b16 %v1266, %v1250
      %v1395 = vpack.c.b16 %v1267, %v1251
      %v1396 = vpack.c.b16 %v1268, %v1252
      %v1397 = vpack.c.b16 %v1269, %v1253
      %v1398 = vpack.c.b16 %v1270, %v1254
      %v1399 = vpack.c.b16 %v1271, %v1255
      %v1400 = vpack.c.b16 %v1272, %v1256
      %v1401 = vpack.c.b16 %v1273, %v1257
      %v1402 = vpack.c.b16 %v1274, %v1258
      %v1403 = vpack.c.b16 %v1275, %v1259
      %v1404 = vpack.c.b16 %v1276, %v1260
      %v1405 = vpack.c.b16 %v1277, %v1261
      %v1406 = vpack.c.b16 %v1278, %v1262
      %1535 = vmatpush.bf16.msra.mxu0 %v694
      %1536 = vmatpush.bf16.msra.mxu0 %v693
      %1537 = vmatpush.bf16.msra.mxu0 %v692
      %1538 = vmatpush.bf16.msra.mxu0 %v691
      %1539 = vmatpush.bf16.msra.mxu0 %v690
      %1540 = vmatpush.bf16.msra.mxu0 %v689
      %1541 = vmatpush.bf16.msra.mxu0 %v688
      %1542 = vmatpush.bf16.msra.mxu0 %v687
      %1543 = vmatmul.bf16.gmra.mxu0 %v1279
      %v1544 = vpop.f32.mrf.mxu0
      %v1545 = vadd.f32 %v818, %v1544
      %v1546 = vpop.f32.mrf.mxu0
      %v1547 = vadd.f32 %v823, %v1546
      %1548 = vmatmul.bf16.gmra.mxu0 %v1295
      %v1549 = vpop.f32.mrf.mxu0
      %v1550 = vadd.f32 %v828, %v1549
      %v1551 = vpop.f32.mrf.mxu0
      %v1552 = vadd.f32 %v833, %v1551
      %1553 = vmatmul.bf16.gmra.mxu0 %v1311
      %v1554 = vpop.f32.mrf.mxu0
      %v1555 = vadd.f32 %v838, %v1554
      %v1556 = vpop.f32.mrf.mxu0
      %v1557 = vadd.f32 %v843, %v1556
      %1558 = vmatmul.bf16.gmra.mxu0 %v1327
      %v1559 = vpop.f32.mrf.mxu0
      %v1560 = vadd.f32 %v848, %v1559
      %v1561 = vpop.f32.mrf.mxu0
      %v1562 = vadd.f32 %v853, %v1561
      %1563 = vmatmul.bf16.gmra.mxu0 %v1343
      %v1564 = vpop.f32.mrf.mxu0
      %v1565 = vadd.f32 %v858, %v1564
      %v1566 = vpop.f32.mrf.mxu0
      %v1567 = vadd.f32 %v863, %v1566
      %1568 = vmatmul.bf16.gmra.mxu0 %v1359
      %v1569 = vpop.f32.mrf.mxu0
      %v1570 = vadd.f32 %v868, %v1569
      %v1571 = vpop.f32.mrf.mxu0
      %v1572 = vadd.f32 %v873, %v1571
      %1573 = vmatmul.bf16.gmra.mxu0 %v1375
      %v1574 = vpop.f32.mrf.mxu0
      %v1575 = vadd.f32 %v878, %v1574
      %v1576 = vpop.f32.mrf.mxu0
      %v1577 = vadd.f32 %v883, %v1576
      %1578 = vmatmul.bf16.gmra.mxu0 %v1391
      %v1579 = vpop.f32.mrf.mxu0
      %v1580 = vadd.f32 %v888, %v1579
      %v1581 = vpop.f32.mrf.mxu0
      %v1582 = vadd.f32 %v893, %v1581
      %1583 = vdwg.mxu0
      %1584 = vmatpush.bf16.msra.mxu0 %v702
      %1585 = vmatpush.bf16.msra.mxu0 %v701
      %1586 = vmatpush.bf16.msra.mxu0 %v700
      %1587 = vmatpush.bf16.msra.mxu0 %v699
      %1588 = vmatpush.bf16.msra.mxu0 %v698
      %1589 = vmatpush.bf16.msra.mxu0 %v697
      %1590 = vmatpush.bf16.msra.mxu0 %v696
      %1591 = vmatpush.bf16.msra.mxu0 %v695
      %1592 = vmatmul.bf16.gmra.mxu0 %v1280
      %v1593 = vpop.f32.mrf.mxu0
      %v1594 = vadd.f32 %v1545, %v1593
      %v1595 = vpop.f32.mrf.mxu0
      %v1596 = vadd.f32 %v1547, %v1595
      %1597 = vmatmul.bf16.gmra.mxu0 %v1296
      %v1598 = vpop.f32.mrf.mxu0
      %v1599 = vadd.f32 %v1550, %v1598
      %v1600 = vpop.f32.mrf.mxu0
      %v1601 = vadd.f32 %v1552, %v1600
      %1602 = vmatmul.bf16.gmra.mxu0 %v1312
      %v1603 = vpop.f32.mrf.mxu0
      %v1604 = vadd.f32 %v1555, %v1603
      %v1605 = vpop.f32.mrf.mxu0
      %v1606 = vadd.f32 %v1557, %v1605
      %1607 = vmatmul.bf16.gmra.mxu0 %v1328
      %v1608 = vpop.f32.mrf.mxu0
      %v1609 = vadd.f32 %v1560, %v1608
      %v1610 = vpop.f32.mrf.mxu0
      %v1611 = vadd.f32 %v1562, %v1610
      %1612 = vmatmul.bf16.gmra.mxu0 %v1344
      %v1613 = vpop.f32.mrf.mxu0
      %v1614 = vadd.f32 %v1565, %v1613
      %v1615 = vpop.f32.mrf.mxu0
      %v1616 = vadd.f32 %v1567, %v1615
      %1617 = vmatmul.bf16.gmra.mxu0 %v1360
      %v1618 = vpop.f32.mrf.mxu0
      %v1619 = vadd.f32 %v1570, %v1618
      %v1620 = vpop.f32.mrf.mxu0
      %v1621 = vadd.f32 %v1572, %v1620
      %1622 = vmatmul.bf16.gmra.mxu0 %v1376
      %v1623 = vpop.f32.mrf.mxu0
      %v1624 = vadd.f32 %v1575, %v1623
      %v1625 = vpop.f32.mrf.mxu0
      %v1626 = vadd.f32 %v1577, %v1625
      %1627 = vmatmul.bf16.gmra.mxu0 %v1392
      %v1628 = vpop.f32.mrf.mxu0
      %v1629 = vadd.f32 %v1580, %v1628
      %v1630 = vpop.f32.mrf.mxu0
      %v1631 = vadd.f32 %v1582, %v1630
      %1632 = vdwg.mxu0
      %1633 = vmatpush.bf16.msra.mxu0 %v710
      %1634 = vmatpush.bf16.msra.mxu0 %v709
      %1635 = vmatpush.bf16.msra.mxu0 %v708
      %1636 = vmatpush.bf16.msra.mxu0 %v707
      %1637 = vmatpush.bf16.msra.mxu0 %v706
      %1638 = vmatpush.bf16.msra.mxu0 %v705
      %1639 = vmatpush.bf16.msra.mxu0 %v704
      %1640 = vmatpush.bf16.msra.mxu0 %v703
      %1641 = vmatmul.bf16.gmra.mxu0 %v1281
      %v1642 = vpop.f32.mrf.mxu0
      %v1643 = vadd.f32 %v1594, %v1642
      %v1644 = vpop.f32.mrf.mxu0
      %v1645 = vadd.f32 %v1596, %v1644
      %1646 = vmatmul.bf16.gmra.mxu0 %v1297
      %v1647 = vpop.f32.mrf.mxu0
      %v1648 = vadd.f32 %v1599, %v1647
      %v1649 = vpop.f32.mrf.mxu0
      %v1650 = vadd.f32 %v1601, %v1649
      %1651 = vmatmul.bf16.gmra.mxu0 %v1313
      %v1652 = vpop.f32.mrf.mxu0
      %v1653 = vadd.f32 %v1604, %v1652
      %v1654 = vpop.f32.mrf.mxu0
      %v1655 = vadd.f32 %v1606, %v1654
      %1656 = vmatmul.bf16.gmra.mxu0 %v1329
      %v1657 = vpop.f32.mrf.mxu0
      %v1658 = vadd.f32 %v1609, %v1657
      %v1659 = vpop.f32.mrf.mxu0
      %v1660 = vadd.f32 %v1611, %v1659
      %1661 = vmatmul.bf16.gmra.mxu0 %v1345
      %v1662 = vpop.f32.mrf.mxu0
      %v1663 = vadd.f32 %v1614, %v1662
      %v1664 = vpop.f32.mrf.mxu0
      %v1665 = vadd.f32 %v1616, %v1664
      %1666 = vmatmul.bf16.gmra.mxu0 %v1361
      %v1667 = vpop.f32.mrf.mxu0
      %v1668 = vadd.f32 %v1619, %v1667
      %v1669 = vpop.f32.mrf.mxu0
      %v1670 = vadd.f32 %v1621, %v1669
      %1671 = vmatmul.bf16.gmra.mxu0 %v1377
      %v1672 = vpop.f32.mrf.mxu0
      %v1673 = vadd.f32 %v1624, %v1672
      %v1674 = vpop.f32.mrf.mxu0
      %v1675 = vadd.f32 %v1626, %v1674
      %1676 = vmatmul.bf16.gmra.mxu0 %v1393
      %v1677 = vpop.f32.mrf.mxu0
      %v1678 = vadd.f32 %v1629, %v1677
      %v1679 = vpop.f32.mrf.mxu0
      %v1680 = vadd.f32 %v1631, %v1679
      %1681 = vdwg.mxu0
      %1682 = vmatpush.bf16.msra.mxu0 %v718
      %1683 = vmatpush.bf16.msra.mxu0 %v717
      %1684 = vmatpush.bf16.msra.mxu0 %v716
      %1685 = vmatpush.bf16.msra.mxu0 %v715
      %1686 = vmatpush.bf16.msra.mxu0 %v714
      %1687 = vmatpush.bf16.msra.mxu0 %v713
      %1688 = vmatpush.bf16.msra.mxu0 %v712
      %1689 = vmatpush.bf16.msra.mxu0 %v711
      %1690 = vmatmul.bf16.gmra.mxu0 %v1282
      %v1691 = vpop.f32.mrf.mxu0
      %v1692 = vadd.f32 %v1643, %v1691
      %v1693 = vpop.f32.mrf.mxu0
      %v1694 = vadd.f32 %v1645, %v1693
      %1695 = vmatmul.bf16.gmra.mxu0 %v1298
      %v1696 = vpop.f32.mrf.mxu0
      %v1697 = vadd.f32 %v1648, %v1696
      %v1698 = vpop.f32.mrf.mxu0
      %v1699 = vadd.f32 %v1650, %v1698
      %1700 = vmatmul.bf16.gmra.mxu0 %v1314
      %v1701 = vpop.f32.mrf.mxu0
      %v1702 = vadd.f32 %v1653, %v1701
      %v1703 = vpop.f32.mrf.mxu0
      %v1704 = vadd.f32 %v1655, %v1703
      %1705 = vmatmul.bf16.gmra.mxu0 %v1330
      %v1706 = vpop.f32.mrf.mxu0
      %v1707 = vadd.f32 %v1658, %v1706
      %v1708 = vpop.f32.mrf.mxu0
      %v1709 = vadd.f32 %v1660, %v1708
      %1710 = vmatmul.bf16.gmra.mxu0 %v1346
      %v1711 = vpop.f32.mrf.mxu0
      %v1712 = vadd.f32 %v1663, %v1711
      %v1713 = vpop.f32.mrf.mxu0
      %v1714 = vadd.f32 %v1665, %v1713
      %1715 = vmatmul.bf16.gmra.mxu0 %v1362
      %v1716 = vpop.f32.mrf.mxu0
      %v1717 = vadd.f32 %v1668, %v1716
      %v1718 = vpop.f32.mrf.mxu0
      %v1719 = vadd.f32 %v1670, %v1718
      %1720 = vmatmul.bf16.gmra.mxu0 %v1378
      %v1721 = vpop.f32.mrf.mxu0
      %v1722 = vadd.f32 %v1673, %v1721
      %v1723 = vpop.f32.mrf.mxu0
      %v1724 = vadd.f32 %v1675, %v1723
      %1725 = vmatmul.bf16.gmra.mxu0 %v1394
      %v1726 = vpop.f32.mrf.mxu0
      %v1727 = vadd.f32 %v1678, %v1726
      %v1728 = vpop.f32.mrf.mxu0
      %v1729 = vadd.f32 %v1680, %v1728
      %1730 = vdwg.mxu0
      %1731 = vmatpush.bf16.msra.mxu0 %v726
      %1732 = vmatpush.bf16.msra.mxu0 %v725
      %1733 = vmatpush.bf16.msra.mxu0 %v724
      %1734 = vmatpush.bf16.msra.mxu0 %v723
      %1735 = vmatpush.bf16.msra.mxu0 %v722
      %1736 = vmatpush.bf16.msra.mxu0 %v721
      %1737 = vmatpush.bf16.msra.mxu0 %v720
      %1738 = vmatpush.bf16.msra.mxu0 %v719
      %1739 = vmatmul.bf16.gmra.mxu0 %v1283
      %v1740 = vpop.f32.mrf.mxu0
      %v1741 = vadd.f32 %v1692, %v1740
      %v1742 = vpop.f32.mrf.mxu0
      %v1743 = vadd.f32 %v1694, %v1742
      %1744 = vmatmul.bf16.gmra.mxu0 %v1299
      %v1745 = vpop.f32.mrf.mxu0
      %v1746 = vadd.f32 %v1697, %v1745
      %v1747 = vpop.f32.mrf.mxu0
      %v1748 = vadd.f32 %v1699, %v1747
      %1749 = vmatmul.bf16.gmra.mxu0 %v1315
      %v1750 = vpop.f32.mrf.mxu0
      %v1751 = vadd.f32 %v1702, %v1750
      %v1752 = vpop.f32.mrf.mxu0
      %v1753 = vadd.f32 %v1704, %v1752
      %1754 = vmatmul.bf16.gmra.mxu0 %v1331
      %v1755 = vpop.f32.mrf.mxu0
      %v1756 = vadd.f32 %v1707, %v1755
      %v1757 = vpop.f32.mrf.mxu0
      %v1758 = vadd.f32 %v1709, %v1757
      %1759 = vmatmul.bf16.gmra.mxu0 %v1347
      %v1760 = vpop.f32.mrf.mxu0
      %v1761 = vadd.f32 %v1712, %v1760
      %v1762 = vpop.f32.mrf.mxu0
      %v1763 = vadd.f32 %v1714, %v1762
      %1764 = vmatmul.bf16.gmra.mxu0 %v1363
      %v1765 = vpop.f32.mrf.mxu0
      %v1766 = vadd.f32 %v1717, %v1765
      %v1767 = vpop.f32.mrf.mxu0
      %v1768 = vadd.f32 %v1719, %v1767
      %1769 = vmatmul.bf16.gmra.mxu0 %v1379
      %v1770 = vpop.f32.mrf.mxu0
      %v1771 = vadd.f32 %v1722, %v1770
      %v1772 = vpop.f32.mrf.mxu0
      %v1773 = vadd.f32 %v1724, %v1772
      %1774 = vmatmul.bf16.gmra.mxu0 %v1395
      %v1775 = vpop.f32.mrf.mxu0
      %v1776 = vadd.f32 %v1727, %v1775
      %v1777 = vpop.f32.mrf.mxu0
      %v1778 = vadd.f32 %v1729, %v1777
      %1779 = vdwg.mxu0
      %1780 = vmatpush.bf16.msra.mxu0 %v734
      %1781 = vmatpush.bf16.msra.mxu0 %v733
      %1782 = vmatpush.bf16.msra.mxu0 %v732
      %1783 = vmatpush.bf16.msra.mxu0 %v731
      %1784 = vmatpush.bf16.msra.mxu0 %v730
      %1785 = vmatpush.bf16.msra.mxu0 %v729
      %1786 = vmatpush.bf16.msra.mxu0 %v728
      %1787 = vmatpush.bf16.msra.mxu0 %v727
      %1788 = vmatmul.bf16.gmra.mxu0 %v1284
      %v1789 = vpop.f32.mrf.mxu0
      %v1790 = vadd.f32 %v1741, %v1789
      %v1791 = vpop.f32.mrf.mxu0
      %v1792 = vadd.f32 %v1743, %v1791
      %1793 = vmatmul.bf16.gmra.mxu0 %v1300
      %v1794 = vpop.f32.mrf.mxu0
      %v1795 = vadd.f32 %v1746, %v1794
      %v1796 = vpop.f32.mrf.mxu0
      %v1797 = vadd.f32 %v1748, %v1796
      %1798 = vmatmul.bf16.gmra.mxu0 %v1316
      %v1799 = vpop.f32.mrf.mxu0
      %v1800 = vadd.f32 %v1751, %v1799
      %v1801 = vpop.f32.mrf.mxu0
      %v1802 = vadd.f32 %v1753, %v1801
      %1803 = vmatmul.bf16.gmra.mxu0 %v1332
      %v1804 = vpop.f32.mrf.mxu0
      %v1805 = vadd.f32 %v1756, %v1804
      %v1806 = vpop.f32.mrf.mxu0
      %v1807 = vadd.f32 %v1758, %v1806
      %1808 = vmatmul.bf16.gmra.mxu0 %v1348
      %v1809 = vpop.f32.mrf.mxu0
      %v1810 = vadd.f32 %v1761, %v1809
      %v1811 = vpop.f32.mrf.mxu0
      %v1812 = vadd.f32 %v1763, %v1811
      %1813 = vmatmul.bf16.gmra.mxu0 %v1364
      %v1814 = vpop.f32.mrf.mxu0
      %v1815 = vadd.f32 %v1766, %v1814
      %v1816 = vpop.f32.mrf.mxu0
      %v1817 = vadd.f32 %v1768, %v1816
      %1818 = vmatmul.bf16.gmra.mxu0 %v1380
      %v1819 = vpop.f32.mrf.mxu0
      %v1820 = vadd.f32 %v1771, %v1819
      %v1821 = vpop.f32.mrf.mxu0
      %v1822 = vadd.f32 %v1773, %v1821
      %1823 = vmatmul.bf16.gmra.mxu0 %v1396
      %v1824 = vpop.f32.mrf.mxu0
      %v1825 = vadd.f32 %v1776, %v1824
      %v1826 = vpop.f32.mrf.mxu0
      %v1827 = vadd.f32 %v1778, %v1826
      %1828 = vdwg.mxu0
      %1829 = vmatpush.bf16.msra.mxu0 %v742
      %1830 = vmatpush.bf16.msra.mxu0 %v741
      %1831 = vmatpush.bf16.msra.mxu0 %v740
      %1832 = vmatpush.bf16.msra.mxu0 %v739
      %1833 = vmatpush.bf16.msra.mxu0 %v738
      %1834 = vmatpush.bf16.msra.mxu0 %v737
      %1835 = vmatpush.bf16.msra.mxu0 %v736
      %1836 = vmatpush.bf16.msra.mxu0 %v735
      %1837 = vmatmul.bf16.gmra.mxu0 %v1285
      %v1838 = vpop.f32.mrf.mxu0
      %v1839 = vadd.f32 %v1790, %v1838
      %v1840 = vpop.f32.mrf.mxu0
      %v1841 = vadd.f32 %v1792, %v1840
      %1842 = vmatmul.bf16.gmra.mxu0 %v1301
      %v1843 = vpop.f32.mrf.mxu0
      %v1844 = vadd.f32 %v1795, %v1843
      %v1845 = vpop.f32.mrf.mxu0
      %v1846 = vadd.f32 %v1797, %v1845
      %1847 = vmatmul.bf16.gmra.mxu0 %v1317
      %v1848 = vpop.f32.mrf.mxu0
      %v1849 = vadd.f32 %v1800, %v1848
      %v1850 = vpop.f32.mrf.mxu0
      %v1851 = vadd.f32 %v1802, %v1850
      %1852 = vmatmul.bf16.gmra.mxu0 %v1333
      %v1853 = vpop.f32.mrf.mxu0
      %v1854 = vadd.f32 %v1805, %v1853
      %v1855 = vpop.f32.mrf.mxu0
      %v1856 = vadd.f32 %v1807, %v1855
      %1857 = vmatmul.bf16.gmra.mxu0 %v1349
      %v1858 = vpop.f32.mrf.mxu0
      %v1859 = vadd.f32 %v1810, %v1858
      %v1860 = vpop.f32.mrf.mxu0
      %v1861 = vadd.f32 %v1812, %v1860
      %1862 = vmatmul.bf16.gmra.mxu0 %v1365
      %v1863 = vpop.f32.mrf.mxu0
      %v1864 = vadd.f32 %v1815, %v1863
      %v1865 = vpop.f32.mrf.mxu0
      %v1866 = vadd.f32 %v1817, %v1865
      %1867 = vmatmul.bf16.gmra.mxu0 %v1381
      %v1868 = vpop.f32.mrf.mxu0
      %v1869 = vadd.f32 %v1820, %v1868
      %v1870 = vpop.f32.mrf.mxu0
      %v1871 = vadd.f32 %v1822, %v1870
      %1872 = vmatmul.bf16.gmra.mxu0 %v1397
      %v1873 = vpop.f32.mrf.mxu0
      %v1874 = vadd.f32 %v1825, %v1873
      %v1875 = vpop.f32.mrf.mxu0
      %v1876 = vadd.f32 %v1827, %v1875
      %1877 = vdwg.mxu0
      %1878 = vmatpush.bf16.msra.mxu0 %v750
      %1879 = vmatpush.bf16.msra.mxu0 %v749
      %1880 = vmatpush.bf16.msra.mxu0 %v748
      %1881 = vmatpush.bf16.msra.mxu0 %v747
      %1882 = vmatpush.bf16.msra.mxu0 %v746
      %1883 = vmatpush.bf16.msra.mxu0 %v745
      %1884 = vmatpush.bf16.msra.mxu0 %v744
      %1885 = vmatpush.bf16.msra.mxu0 %v743
      %1886 = vmatmul.bf16.gmra.mxu0 %v1286
      %v1887 = vpop.f32.mrf.mxu0
      %v1888 = vadd.f32 %v1839, %v1887
      %v1889 = vpop.f32.mrf.mxu0
      %v1890 = vadd.f32 %v1841, %v1889
      %1891 = vmatmul.bf16.gmra.mxu0 %v1302
      %v1892 = vpop.f32.mrf.mxu0
      %v1893 = vadd.f32 %v1844, %v1892
      %v1894 = vpop.f32.mrf.mxu0
      %v1895 = vadd.f32 %v1846, %v1894
      %1896 = vmatmul.bf16.gmra.mxu0 %v1318
      %v1897 = vpop.f32.mrf.mxu0
      %v1898 = vadd.f32 %v1849, %v1897
      %v1899 = vpop.f32.mrf.mxu0
      %v1900 = vadd.f32 %v1851, %v1899
      %1901 = vmatmul.bf16.gmra.mxu0 %v1334
      %v1902 = vpop.f32.mrf.mxu0
      %v1903 = vadd.f32 %v1854, %v1902
      %v1904 = vpop.f32.mrf.mxu0
      %v1905 = vadd.f32 %v1856, %v1904
      %1906 = vmatmul.bf16.gmra.mxu0 %v1350
      %v1907 = vpop.f32.mrf.mxu0
      %v1908 = vadd.f32 %v1859, %v1907
      %v1909 = vpop.f32.mrf.mxu0
      %v1910 = vadd.f32 %v1861, %v1909
      %1911 = vmatmul.bf16.gmra.mxu0 %v1366
      %v1912 = vpop.f32.mrf.mxu0
      %v1913 = vadd.f32 %v1864, %v1912
      %v1914 = vpop.f32.mrf.mxu0
      %v1915 = vadd.f32 %v1866, %v1914
      %1916 = vmatmul.bf16.gmra.mxu0 %v1382
      %v1917 = vpop.f32.mrf.mxu0
      %v1918 = vadd.f32 %v1869, %v1917
      %v1919 = vpop.f32.mrf.mxu0
      %v1920 = vadd.f32 %v1871, %v1919
      %1921 = vmatmul.bf16.gmra.mxu0 %v1398
      %v1922 = vpop.f32.mrf.mxu0
      %v1923 = vadd.f32 %v1874, %v1922
      %v1924 = vpop.f32.mrf.mxu0
      %v1925 = vadd.f32 %v1876, %v1924
      %1926 = vdwg.mxu0
      %1927 = vmatpush.bf16.msra.mxu0 %v758
      %1928 = vmatpush.bf16.msra.mxu0 %v757
      %1929 = vmatpush.bf16.msra.mxu0 %v756
      %1930 = vmatpush.bf16.msra.mxu0 %v755
      %1931 = vmatpush.bf16.msra.mxu0 %v754
      %1932 = vmatpush.bf16.msra.mxu0 %v753
      %1933 = vmatpush.bf16.msra.mxu0 %v752
      %1934 = vmatpush.bf16.msra.mxu0 %v751
      %1935 = vmatmul.bf16.gmra.mxu0 %v1287
      %v1936 = vpop.f32.mrf.mxu0
      %v1937 = vadd.f32 %v1888, %v1936
      %v1938 = vpop.f32.mrf.mxu0
      %v1939 = vadd.f32 %v1890, %v1938
      %1940 = vmatmul.bf16.gmra.mxu0 %v1303
      %v1941 = vpop.f32.mrf.mxu0
      %v1942 = vadd.f32 %v1893, %v1941
      %v1943 = vpop.f32.mrf.mxu0
      %v1944 = vadd.f32 %v1895, %v1943
      %1945 = vmatmul.bf16.gmra.mxu0 %v1319
      %v1946 = vpop.f32.mrf.mxu0
      %v1947 = vadd.f32 %v1898, %v1946
      %v1948 = vpop.f32.mrf.mxu0
      %v1949 = vadd.f32 %v1900, %v1948
      %1950 = vmatmul.bf16.gmra.mxu0 %v1335
      %v1951 = vpop.f32.mrf.mxu0
      %v1952 = vadd.f32 %v1903, %v1951
      %v1953 = vpop.f32.mrf.mxu0
      %v1954 = vadd.f32 %v1905, %v1953
      %1955 = vmatmul.bf16.gmra.mxu0 %v1351
      %v1956 = vpop.f32.mrf.mxu0
      %v1957 = vadd.f32 %v1908, %v1956
      %v1958 = vpop.f32.mrf.mxu0
      %v1959 = vadd.f32 %v1910, %v1958
      %1960 = vmatmul.bf16.gmra.mxu0 %v1367
      %v1961 = vpop.f32.mrf.mxu0
      %v1962 = vadd.f32 %v1913, %v1961
      %v1963 = vpop.f32.mrf.mxu0
      %v1964 = vadd.f32 %v1915, %v1963
      %1965 = vmatmul.bf16.gmra.mxu0 %v1383
      %v1966 = vpop.f32.mrf.mxu0
      %v1967 = vadd.f32 %v1918, %v1966
      %v1968 = vpop.f32.mrf.mxu0
      %v1969 = vadd.f32 %v1920, %v1968
      %1970 = vmatmul.bf16.gmra.mxu0 %v1399
      %v1971 = vpop.f32.mrf.mxu0
      %v1972 = vadd.f32 %v1923, %v1971
      %v1973 = vpop.f32.mrf.mxu0
      %v1974 = vadd.f32 %v1925, %v1973
      %1975 = vdwg.mxu0
      %1976 = vmatpush.bf16.msra.mxu0 %v766
      %1977 = vmatpush.bf16.msra.mxu0 %v765
      %1978 = vmatpush.bf16.msra.mxu0 %v764
      %1979 = vmatpush.bf16.msra.mxu0 %v763
      %1980 = vmatpush.bf16.msra.mxu0 %v762
      %1981 = vmatpush.bf16.msra.mxu0 %v761
      %1982 = vmatpush.bf16.msra.mxu0 %v760
      %1983 = vmatpush.bf16.msra.mxu0 %v759
      %1984 = vmatmul.bf16.gmra.mxu0 %v1288
      %v1985 = vpop.f32.mrf.mxu0
      %v1986 = vadd.f32 %v1937, %v1985
      %v1987 = vpop.f32.mrf.mxu0
      %v1988 = vadd.f32 %v1939, %v1987
      %1989 = vmatmul.bf16.gmra.mxu0 %v1304
      %v1990 = vpop.f32.mrf.mxu0
      %v1991 = vadd.f32 %v1942, %v1990
      %v1992 = vpop.f32.mrf.mxu0
      %v1993 = vadd.f32 %v1944, %v1992
      %1994 = vmatmul.bf16.gmra.mxu0 %v1320
      %v1995 = vpop.f32.mrf.mxu0
      %v1996 = vadd.f32 %v1947, %v1995
      %v1997 = vpop.f32.mrf.mxu0
      %v1998 = vadd.f32 %v1949, %v1997
      %1999 = vmatmul.bf16.gmra.mxu0 %v1336
      %v2000 = vpop.f32.mrf.mxu0
      %v2001 = vadd.f32 %v1952, %v2000
      %v2002 = vpop.f32.mrf.mxu0
      %v2003 = vadd.f32 %v1954, %v2002
      %2004 = vmatmul.bf16.gmra.mxu0 %v1352
      %v2005 = vpop.f32.mrf.mxu0
      %v2006 = vadd.f32 %v1957, %v2005
      %v2007 = vpop.f32.mrf.mxu0
      %v2008 = vadd.f32 %v1959, %v2007
      %2009 = vmatmul.bf16.gmra.mxu0 %v1368
      %v2010 = vpop.f32.mrf.mxu0
      %v2011 = vadd.f32 %v1962, %v2010
      %v2012 = vpop.f32.mrf.mxu0
      %v2013 = vadd.f32 %v1964, %v2012
      %2014 = vmatmul.bf16.gmra.mxu0 %v1384
      %v2015 = vpop.f32.mrf.mxu0
      %v2016 = vadd.f32 %v1967, %v2015
      %v2017 = vpop.f32.mrf.mxu0
      %v2018 = vadd.f32 %v1969, %v2017
      %2019 = vmatmul.bf16.gmra.mxu0 %v1400
      %v2020 = vpop.f32.mrf.mxu0
      %v2021 = vadd.f32 %v1972, %v2020
      %v2022 = vpop.f32.mrf.mxu0
      %v2023 = vadd.f32 %v1974, %v2022
      %2024 = vdwg.mxu0
      %2025 = vmatpush.bf16.msra.mxu0 %v774
      %2026 = vmatpush.bf16.msra.mxu0 %v773
      %2027 = vmatpush.bf16.msra.mxu0 %v772
      %2028 = vmatpush.bf16.msra.mxu0 %v771
      %2029 = vmatpush.bf16.msra.mxu0 %v770
      %2030 = vmatpush.bf16.msra.mxu0 %v769
      %2031 = vmatpush.bf16.msra.mxu0 %v768
      %2032 = vmatpush.bf16.msra.mxu0 %v767
      %2033 = vmatmul.bf16.gmra.mxu0 %v1289
      %v2034 = vpop.f32.mrf.mxu0
      %v2035 = vadd.f32 %v1986, %v2034
      %v2036 = vpop.f32.mrf.mxu0
      %v2037 = vadd.f32 %v1988, %v2036
      %2038 = vmatmul.bf16.gmra.mxu0 %v1305
      %v2039 = vpop.f32.mrf.mxu0
      %v2040 = vadd.f32 %v1991, %v2039
      %v2041 = vpop.f32.mrf.mxu0
      %v2042 = vadd.f32 %v1993, %v2041
      %2043 = vmatmul.bf16.gmra.mxu0 %v1321
      %v2044 = vpop.f32.mrf.mxu0
      %v2045 = vadd.f32 %v1996, %v2044
      %v2046 = vpop.f32.mrf.mxu0
      %v2047 = vadd.f32 %v1998, %v2046
      %2048 = vmatmul.bf16.gmra.mxu0 %v1337
      %v2049 = vpop.f32.mrf.mxu0
      %v2050 = vadd.f32 %v2001, %v2049
      %v2051 = vpop.f32.mrf.mxu0
      %v2052 = vadd.f32 %v2003, %v2051
      %2053 = vmatmul.bf16.gmra.mxu0 %v1353
      %v2054 = vpop.f32.mrf.mxu0
      %v2055 = vadd.f32 %v2006, %v2054
      %v2056 = vpop.f32.mrf.mxu0
      %v2057 = vadd.f32 %v2008, %v2056
      %2058 = vmatmul.bf16.gmra.mxu0 %v1369
      %v2059 = vpop.f32.mrf.mxu0
      %v2060 = vadd.f32 %v2011, %v2059
      %v2061 = vpop.f32.mrf.mxu0
      %v2062 = vadd.f32 %v2013, %v2061
      %2063 = vmatmul.bf16.gmra.mxu0 %v1385
      %v2064 = vpop.f32.mrf.mxu0
      %v2065 = vadd.f32 %v2016, %v2064
      %v2066 = vpop.f32.mrf.mxu0
      %v2067 = vadd.f32 %v2018, %v2066
      %2068 = vmatmul.bf16.gmra.mxu0 %v1401
      %v2069 = vpop.f32.mrf.mxu0
      %v2070 = vadd.f32 %v2021, %v2069
      %v2071 = vpop.f32.mrf.mxu0
      %v2072 = vadd.f32 %v2023, %v2071
      %2073 = vdwg.mxu0
      %2074 = vmatpush.bf16.msra.mxu0 %v782
      %2075 = vmatpush.bf16.msra.mxu0 %v781
      %2076 = vmatpush.bf16.msra.mxu0 %v780
      %2077 = vmatpush.bf16.msra.mxu0 %v779
      %2078 = vmatpush.bf16.msra.mxu0 %v778
      %2079 = vmatpush.bf16.msra.mxu0 %v777
      %2080 = vmatpush.bf16.msra.mxu0 %v776
      %2081 = vmatpush.bf16.msra.mxu0 %v775
      %2082 = vmatmul.bf16.gmra.mxu0 %v1290
      %v2083 = vpop.f32.mrf.mxu0
      %v2084 = vadd.f32 %v2035, %v2083
      %v2085 = vpop.f32.mrf.mxu0
      %v2086 = vadd.f32 %v2037, %v2085
      %2087 = vmatmul.bf16.gmra.mxu0 %v1306
      %v2088 = vpop.f32.mrf.mxu0
      %v2089 = vadd.f32 %v2040, %v2088
      %v2090 = vpop.f32.mrf.mxu0
      %v2091 = vadd.f32 %v2042, %v2090
      %2092 = vmatmul.bf16.gmra.mxu0 %v1322
      %v2093 = vpop.f32.mrf.mxu0
      %v2094 = vadd.f32 %v2045, %v2093
      %v2095 = vpop.f32.mrf.mxu0
      %v2096 = vadd.f32 %v2047, %v2095
      %2097 = vmatmul.bf16.gmra.mxu0 %v1338
      %v2098 = vpop.f32.mrf.mxu0
      %v2099 = vadd.f32 %v2050, %v2098
      %v2100 = vpop.f32.mrf.mxu0
      %v2101 = vadd.f32 %v2052, %v2100
      %2102 = vmatmul.bf16.gmra.mxu0 %v1354
      %v2103 = vpop.f32.mrf.mxu0
      %v2104 = vadd.f32 %v2055, %v2103
      %v2105 = vpop.f32.mrf.mxu0
      %v2106 = vadd.f32 %v2057, %v2105
      %2107 = vmatmul.bf16.gmra.mxu0 %v1370
      %v2108 = vpop.f32.mrf.mxu0
      %v2109 = vadd.f32 %v2060, %v2108
      %v2110 = vpop.f32.mrf.mxu0
      %v2111 = vadd.f32 %v2062, %v2110
      %2112 = vmatmul.bf16.gmra.mxu0 %v1386
      %v2113 = vpop.f32.mrf.mxu0
      %v2114 = vadd.f32 %v2065, %v2113
      %v2115 = vpop.f32.mrf.mxu0
      %v2116 = vadd.f32 %v2067, %v2115
      %2117 = vmatmul.bf16.gmra.mxu0 %v1402
      %v2118 = vpop.f32.mrf.mxu0
      %v2119 = vadd.f32 %v2070, %v2118
      %v2120 = vpop.f32.mrf.mxu0
      %v2121 = vadd.f32 %v2072, %v2120
      %2122 = vdwg.mxu0
      %2123 = vmatpush.bf16.msra.mxu0 %v790
      %2124 = vmatpush.bf16.msra.mxu0 %v789
      %2125 = vmatpush.bf16.msra.mxu0 %v788
      %2126 = vmatpush.bf16.msra.mxu0 %v787
      %2127 = vmatpush.bf16.msra.mxu0 %v786
      %2128 = vmatpush.bf16.msra.mxu0 %v785
      %2129 = vmatpush.bf16.msra.mxu0 %v784
      %2130 = vmatpush.bf16.msra.mxu0 %v783
      %2131 = vmatmul.bf16.gmra.mxu0 %v1291
      %v2132 = vpop.f32.mrf.mxu0
      %v2133 = vadd.f32 %v2084, %v2132
      %v2134 = vpop.f32.mrf.mxu0
      %v2135 = vadd.f32 %v2086, %v2134
      %2136 = vmatmul.bf16.gmra.mxu0 %v1307
      %v2137 = vpop.f32.mrf.mxu0
      %v2138 = vadd.f32 %v2089, %v2137
      %v2139 = vpop.f32.mrf.mxu0
      %v2140 = vadd.f32 %v2091, %v2139
      %2141 = vmatmul.bf16.gmra.mxu0 %v1323
      %v2142 = vpop.f32.mrf.mxu0
      %v2143 = vadd.f32 %v2094, %v2142
      %v2144 = vpop.f32.mrf.mxu0
      %v2145 = vadd.f32 %v2096, %v2144
      %2146 = vmatmul.bf16.gmra.mxu0 %v1339
      %v2147 = vpop.f32.mrf.mxu0
      %v2148 = vadd.f32 %v2099, %v2147
      %v2149 = vpop.f32.mrf.mxu0
      %v2150 = vadd.f32 %v2101, %v2149
      %2151 = vmatmul.bf16.gmra.mxu0 %v1355
      %v2152 = vpop.f32.mrf.mxu0
      %v2153 = vadd.f32 %v2104, %v2152
      %v2154 = vpop.f32.mrf.mxu0
      %v2155 = vadd.f32 %v2106, %v2154
      %2156 = vmatmul.bf16.gmra.mxu0 %v1371
      %v2157 = vpop.f32.mrf.mxu0
      %v2158 = vadd.f32 %v2109, %v2157
      %v2159 = vpop.f32.mrf.mxu0
      %v2160 = vadd.f32 %v2111, %v2159
      %2161 = vmatmul.bf16.gmra.mxu0 %v1387
      %v2162 = vpop.f32.mrf.mxu0
      %v2163 = vadd.f32 %v2114, %v2162
      %v2164 = vpop.f32.mrf.mxu0
      %v2165 = vadd.f32 %v2116, %v2164
      %2166 = vmatmul.bf16.gmra.mxu0 %v1403
      %v2167 = vpop.f32.mrf.mxu0
      %v2168 = vadd.f32 %v2119, %v2167
      %v2169 = vpop.f32.mrf.mxu0
      %v2170 = vadd.f32 %v2121, %v2169
      %2171 = vdwg.mxu0
      %2172 = vmatpush.bf16.msra.mxu0 %v798
      %2173 = vmatpush.bf16.msra.mxu0 %v797
      %2174 = vmatpush.bf16.msra.mxu0 %v796
      %2175 = vmatpush.bf16.msra.mxu0 %v795
      %2176 = vmatpush.bf16.msra.mxu0 %v794
      %2177 = vmatpush.bf16.msra.mxu0 %v793
      %2178 = vmatpush.bf16.msra.mxu0 %v792
      %2179 = vmatpush.bf16.msra.mxu0 %v791
      %2180 = vmatmul.bf16.gmra.mxu0 %v1292
      %v2181 = vpop.f32.mrf.mxu0
      %v2182 = vadd.f32 %v2133, %v2181
      %v2183 = vpop.f32.mrf.mxu0
      %v2184 = vadd.f32 %v2135, %v2183
      %2185 = vmatmul.bf16.gmra.mxu0 %v1308
      %v2186 = vpop.f32.mrf.mxu0
      %v2187 = vadd.f32 %v2138, %v2186
      %v2188 = vpop.f32.mrf.mxu0
      %v2189 = vadd.f32 %v2140, %v2188
      %2190 = vmatmul.bf16.gmra.mxu0 %v1324
      %v2191 = vpop.f32.mrf.mxu0
      %v2192 = vadd.f32 %v2143, %v2191
      %v2193 = vpop.f32.mrf.mxu0
      %v2194 = vadd.f32 %v2145, %v2193
      %2195 = vmatmul.bf16.gmra.mxu0 %v1340
      %v2196 = vpop.f32.mrf.mxu0
      %v2197 = vadd.f32 %v2148, %v2196
      %v2198 = vpop.f32.mrf.mxu0
      %v2199 = vadd.f32 %v2150, %v2198
      %2200 = vmatmul.bf16.gmra.mxu0 %v1356
      %v2201 = vpop.f32.mrf.mxu0
      %v2202 = vadd.f32 %v2153, %v2201
      %v2203 = vpop.f32.mrf.mxu0
      %v2204 = vadd.f32 %v2155, %v2203
      %2205 = vmatmul.bf16.gmra.mxu0 %v1372
      %v2206 = vpop.f32.mrf.mxu0
      %v2207 = vadd.f32 %v2158, %v2206
      %v2208 = vpop.f32.mrf.mxu0
      %v2209 = vadd.f32 %v2160, %v2208
      %2210 = vmatmul.bf16.gmra.mxu0 %v1388
      %v2211 = vpop.f32.mrf.mxu0
      %v2212 = vadd.f32 %v2163, %v2211
      %v2213 = vpop.f32.mrf.mxu0
      %v2214 = vadd.f32 %v2165, %v2213
      %2215 = vmatmul.bf16.gmra.mxu0 %v1404
      %v2216 = vpop.f32.mrf.mxu0
      %v2217 = vadd.f32 %v2168, %v2216
      %v2218 = vpop.f32.mrf.mxu0
      %v2219 = vadd.f32 %v2170, %v2218
      %2220 = vdwg.mxu0
      %2221 = vmatpush.bf16.msra.mxu0 %v806
      %2222 = vmatpush.bf16.msra.mxu0 %v805
      %2223 = vmatpush.bf16.msra.mxu0 %v804
      %2224 = vmatpush.bf16.msra.mxu0 %v803
      %2225 = vmatpush.bf16.msra.mxu0 %v802
      %2226 = vmatpush.bf16.msra.mxu0 %v801
      %2227 = vmatpush.bf16.msra.mxu0 %v800
      %2228 = vmatpush.bf16.msra.mxu0 %v799
      %2229 = vmatmul.bf16.gmra.mxu0 %v1293
      %v2230 = vpop.f32.mrf.mxu0
      %v2231 = vadd.f32 %v2182, %v2230
      %v2232 = vpop.f32.mrf.mxu0
      %v2233 = vadd.f32 %v2184, %v2232
      %2234 = vmatmul.bf16.gmra.mxu0 %v1309
      %v2235 = vpop.f32.mrf.mxu0
      %v2236 = vadd.f32 %v2187, %v2235
      %v2237 = vpop.f32.mrf.mxu0
      %v2238 = vadd.f32 %v2189, %v2237
      %2239 = vmatmul.bf16.gmra.mxu0 %v1325
      %v2240 = vpop.f32.mrf.mxu0
      %v2241 = vadd.f32 %v2192, %v2240
      %v2242 = vpop.f32.mrf.mxu0
      %v2243 = vadd.f32 %v2194, %v2242
      %2244 = vmatmul.bf16.gmra.mxu0 %v1341
      %v2245 = vpop.f32.mrf.mxu0
      %v2246 = vadd.f32 %v2197, %v2245
      %v2247 = vpop.f32.mrf.mxu0
      %v2248 = vadd.f32 %v2199, %v2247
      %2249 = vmatmul.bf16.gmra.mxu0 %v1357
      %v2250 = vpop.f32.mrf.mxu0
      %v2251 = vadd.f32 %v2202, %v2250
      %v2252 = vpop.f32.mrf.mxu0
      %v2253 = vadd.f32 %v2204, %v2252
      %2254 = vmatmul.bf16.gmra.mxu0 %v1373
      %v2255 = vpop.f32.mrf.mxu0
      %v2256 = vadd.f32 %v2207, %v2255
      %v2257 = vpop.f32.mrf.mxu0
      %v2258 = vadd.f32 %v2209, %v2257
      %2259 = vmatmul.bf16.gmra.mxu0 %v1389
      %v2260 = vpop.f32.mrf.mxu0
      %v2261 = vadd.f32 %v2212, %v2260
      %v2262 = vpop.f32.mrf.mxu0
      %v2263 = vadd.f32 %v2214, %v2262
      %2264 = vmatmul.bf16.gmra.mxu0 %v1405
      %v2265 = vpop.f32.mrf.mxu0
      %v2266 = vadd.f32 %v2217, %v2265
      %v2267 = vpop.f32.mrf.mxu0
      %v2268 = vadd.f32 %v2219, %v2267
      %2269 = vdwg.mxu0
      %2270 = vmatpush.bf16.msra.mxu0 %v814
      %2271 = vmatpush.bf16.msra.mxu0 %v813
      %2272 = vmatpush.bf16.msra.mxu0 %v812
      %2273 = vmatpush.bf16.msra.mxu0 %v811
      %2274 = vmatpush.bf16.msra.mxu0 %v810
      %2275 = vmatpush.bf16.msra.mxu0 %v809
      %2276 = vmatpush.bf16.msra.mxu0 %v808
      %2277 = vmatpush.bf16.msra.mxu0 %v807
      %2278 = vmatmul.bf16.gmra.mxu0 %v1294
      %v2279 = vpop.f32.mrf.mxu0
      %v2280 = vadd.f32 %v2231, %v2279
      %v2281 = vpop.f32.mrf.mxu0
      %v2282 = vadd.f32 %v2233, %v2281
      %2283 = vmatmul.bf16.gmra.mxu0 %v1310
      %v2284 = vpop.f32.mrf.mxu0
      %v2285 = vadd.f32 %v2236, %v2284
      %v2286 = vpop.f32.mrf.mxu0
      %v2287 = vadd.f32 %v2238, %v2286
      %2288 = vmatmul.bf16.gmra.mxu0 %v1326
      %v2289 = vpop.f32.mrf.mxu0
      %v2290 = vadd.f32 %v2241, %v2289
      %v2291 = vpop.f32.mrf.mxu0
      %v2292 = vadd.f32 %v2243, %v2291
      %2293 = vmatmul.bf16.gmra.mxu0 %v1342
      %v2294 = vpop.f32.mrf.mxu0
      %v2295 = vadd.f32 %v2246, %v2294
      %v2296 = vpop.f32.mrf.mxu0
      %v2297 = vadd.f32 %v2248, %v2296
      %2298 = vmatmul.bf16.gmra.mxu0 %v1358
      %v2299 = vpop.f32.mrf.mxu0
      %v2300 = vadd.f32 %v2251, %v2299
      %v2301 = vpop.f32.mrf.mxu0
      %v2302 = vadd.f32 %v2253, %v2301
      %2303 = vmatmul.bf16.gmra.mxu0 %v1374
      %v2304 = vpop.f32.mrf.mxu0
      %v2305 = vadd.f32 %v2256, %v2304
      %v2306 = vpop.f32.mrf.mxu0
      %v2307 = vadd.f32 %v2258, %v2306
      %2308 = vmatmul.bf16.gmra.mxu0 %v1390
      %v2309 = vpop.f32.mrf.mxu0
      %v2310 = vadd.f32 %v2261, %v2309
      %v2311 = vpop.f32.mrf.mxu0
      %v2312 = vadd.f32 %v2263, %v2311
      %2313 = vmatmul.bf16.gmra.mxu0 %v1406
      %v2314 = vpop.f32.mrf.mxu0
      %v2315 = vadd.f32 %v2266, %v2314
      %v2316 = vpop.f32.mrf.mxu0
      %v2317 = vadd.f32 %v2268, %v2316
      %2318 = vdwg.mxu0
      %vm2319 = vcmask 400384
      %2320 = vst.msk [vmem:[%s272] sm:$0xff] %vm2319, %v2280
      %2321 = vst.msk [vmem:[%s272 + $0x8] sm:$0xff] %vm2319, %v2282
      %2322 = vst.msk [vmem:[%s272 + $0x10] sm:$0xff] %vm2319, %v2285
      %2323 = vst.msk [vmem:[%s272 + $0x18] sm:$0xff] %vm2319, %v2287
      %2324 = vst.msk [vmem:[%s272 + $0x20] sm:$0xff] %vm2319, %v2290
      %2325 = vst.msk [vmem:[%s272 + $0x28] sm:$0xff] %vm2319, %v2292
      %2326 = vst.msk [vmem:[%s272 + $0x30] sm:$0xff] %vm2319, %v2295
      %2327 = vst.msk [vmem:[%s272 + $0x38] sm:$0xff] %vm2319, %v2297
      %2328 = vst.msk [vmem:[%s272 + $0x40] sm:$0xff] %vm2319, %v2300
      %2329 = vst.msk [vmem:[%s272 + $0x48] sm:$0xff] %vm2319, %v2302
      %2330 = vst.msk [vmem:[%s272 + $0x50] sm:$0xff] %vm2319, %v2305
      %2331 = vst.msk [vmem:[%s272 + $0x58] sm:$0xff] %vm2319, %v2307
      %2332 = vst.msk [vmem:[%s272 + $0x60] sm:$0xff] %vm2319, %v2310
      %2333 = vst.msk [vmem:[%s272 + $0x68] sm:$0xff] %vm2319, %v2312
      %2334 = vst.msk [vmem:[%s272 + $0x70] sm:$0xff] %vm2319, %v2315
      %2335 = vst.msk [vmem:[%s272 + $0x78] sm:$0xff] %vm2319, %v2317
      %2336 = vxpose.xlu0.b32.start [1/16] %v287, 128
      %2337 = vxpose.xlu0.b32.cont [2/16] %v288, 128
      %2338 = vxpose.xlu0.b32.cont [3/16] %v289, 128
      %2339 = vxpose.xlu0.b32.cont [4/16] %v290, 128
      %2340 = vxpose.xlu0.b32.cont [5/16] %v291, 128
      %2341 = vxpose.xlu0.b32.cont [6/16] %v292, 128
      %2342 = vxpose.xlu0.b32.cont [7/16] %v293, 128
      %2343 = vxpose.xlu0.b32.cont [8/16] %v294, 128
      %2344 = vxpose.xlu0.b32.cont [9/16] %v295, 128
      %2345 = vxpose.xlu0.b32.cont [10/16] %v296, 128
      %2346 = vxpose.xlu0.b32.cont [11/16] %v297, 128
      %2347 = vxpose.xlu0.b32.cont [12/16] %v298, 128
      %2348 = vxpose.xlu0.b32.cont [13/16] %v299, 128
      %2349 = vxpose.xlu0.b32.cont [14/16] %v300, 128
      %2350 = vxpose.xlu0.b32.cont [15/16] %v301, 128
      %2351 = vxpose.xlu0.b32.end [16/16] %v302, 128
      %v2352 = vpop.trf.xlu0
      %v2353 = vpop.trf.xlu0
      %v2354 = vpop.trf.xlu0
      %v2355 = vpop.trf.xlu0
      %v2356 = vpop.trf.xlu0
      %v2357 = vpop.trf.xlu0
      %v2358 = vpop.trf.xlu0
      %v2359 = vpop.trf.xlu0
      %v2360 = vpop.trf.xlu0
      %v2361 = vpop.trf.xlu0
      %v2362 = vpop.trf.xlu0
      %v2363 = vpop.trf.xlu0
      %v2364 = vpop.trf.xlu0
      %v2365 = vpop.trf.xlu0
      %v2366 = vpop.trf.xlu0
      %v2367 = vpop.trf.xlu0
      %2368 = vxpose.xlu0.b32.start [1/16] %v303, 128
      %2369 = vxpose.xlu0.b32.cont [2/16] %v304, 128
      %2370 = vxpose.xlu0.b32.cont [3/16] %v305, 128
      %2371 = vxpose.xlu0.b32.cont [4/16] %v306, 128
      %2372 = vxpose.xlu0.b32.cont [5/16] %v307, 128
      %2373 = vxpose.xlu0.b32.cont [6/16] %v308, 128
      %2374 = vxpose.xlu0.b32.cont [7/16] %v309, 128
      %2375 = vxpose.xlu0.b32.cont [8/16] %v310, 128
      %2376 = vxpose.xlu0.b32.cont [9/16] %v311, 128
      %2377 = vxpose.xlu0.b32.cont [10/16] %v312, 128
      %2378 = vxpose.xlu0.b32.cont [11/16] %v313, 128
      %2379 = vxpose.xlu0.b32.cont [12/16] %v314, 128
      %2380 = vxpose.xlu0.b32.cont [13/16] %v315, 128
      %2381 = vxpose.xlu0.b32.cont [14/16] %v316, 128
      %2382 = vxpose.xlu0.b32.cont [15/16] %v317, 128
      %2383 = vxpose.xlu0.b32.end [16/16] %v318, 128
      %v2384 = vpop.trf.xlu0
      %v2385 = vpop.trf.xlu0
      %v2386 = vpop.trf.xlu0
      %v2387 = vpop.trf.xlu0
      %v2388 = vpop.trf.xlu0
      %v2389 = vpop.trf.xlu0
      %v2390 = vpop.trf.xlu0
      %v2391 = vpop.trf.xlu0
      %v2392 = vpop.trf.xlu0
      %v2393 = vpop.trf.xlu0
      %v2394 = vpop.trf.xlu0
      %v2395 = vpop.trf.xlu0
      %v2396 = vpop.trf.xlu0
      %v2397 = vpop.trf.xlu0
      %v2398 = vpop.trf.xlu0
      %v2399 = vpop.trf.xlu0
      %2400 = vxpose.xlu0.b32.start [1/16] %v319, 128
      %2401 = vxpose.xlu0.b32.cont [2/16] %v320, 128
      %2402 = vxpose.xlu0.b32.cont [3/16] %v321, 128
      %2403 = vxpose.xlu0.b32.cont [4/16] %v322, 128
      %2404 = vxpose.xlu0.b32.cont [5/16] %v323, 128
      %2405 = vxpose.xlu0.b32.cont [6/16] %v324, 128
      %2406 = vxpose.xlu0.b32.cont [7/16] %v325, 128
      %2407 = vxpose.xlu0.b32.cont [8/16] %v326, 128
      %2408 = vxpose.xlu0.b32.cont [9/16] %v327, 128
      %2409 = vxpose.xlu0.b32.cont [10/16] %v328, 128
      %2410 = vxpose.xlu0.b32.cont [11/16] %v329, 128
      %2411 = vxpose.xlu0.b32.cont [12/16] %v330, 128
      %2412 = vxpose.xlu0.b32.cont [13/16] %v331, 128
      %2413 = vxpose.xlu0.b32.cont [14/16] %v332, 128
      %2414 = vxpose.xlu0.b32.cont [15/16] %v333, 128
      %2415 = vxpose.xlu0.b32.end [16/16] %v334, 128
      %v2416 = vpop.trf.xlu0
      %v2417 = vpop.trf.xlu0
      %v2418 = vpop.trf.xlu0
      %v2419 = vpop.trf.xlu0
      %v2420 = vpop.trf.xlu0
      %v2421 = vpop.trf.xlu0
      %v2422 = vpop.trf.xlu0
      %v2423 = vpop.trf.xlu0
      %v2424 = vpop.trf.xlu0
      %v2425 = vpop.trf.xlu0
      %v2426 = vpop.trf.xlu0
      %v2427 = vpop.trf.xlu0
      %v2428 = vpop.trf.xlu0
      %v2429 = vpop.trf.xlu0
      %v2430 = vpop.trf.xlu0
      %v2431 = vpop.trf.xlu0
      %2432 = vxpose.xlu0.b32.start [1/16] %v335, 128
      %2433 = vxpose.xlu0.b32.cont [2/16] %v336, 128
      %2434 = vxpose.xlu0.b32.cont [3/16] %v337, 128
      %2435 = vxpose.xlu0.b32.cont [4/16] %v338, 128
      %2436 = vxpose.xlu0.b32.cont [5/16] %v339, 128
      %2437 = vxpose.xlu0.b32.cont [6/16] %v340, 128
      %2438 = vxpose.xlu0.b32.cont [7/16] %v341, 128
      %2439 = vxpose.xlu0.b32.cont [8/16] %v342, 128
      %2440 = vxpose.xlu0.b32.cont [9/16] %v343, 128
      %2441 = vxpose.xlu0.b32.cont [10/16] %v344, 128
      %2442 = vxpose.xlu0.b32.cont [11/16] %v345, 128
      %2443 = vxpose.xlu0.b32.cont [12/16] %v346, 128
      %2444 = vxpose.xlu0.b32.cont [13/16] %v347, 128
      %2445 = vxpose.xlu0.b32.cont [14/16] %v348, 128
      %2446 = vxpose.xlu0.b32.cont [15/16] %v349, 128
      %2447 = vxpose.xlu0.b32.end [16/16] %v350, 128
      %v2448 = vpop.trf.xlu0
      %v2449 = vpop.trf.xlu0
      %v2450 = vpop.trf.xlu0
      %v2451 = vpop.trf.xlu0
      %v2452 = vpop.trf.xlu0
      %v2453 = vpop.trf.xlu0
      %v2454 = vpop.trf.xlu0
      %v2455 = vpop.trf.xlu0
      %v2456 = vpop.trf.xlu0
      %v2457 = vpop.trf.xlu0
      %v2458 = vpop.trf.xlu0
      %v2459 = vpop.trf.xlu0
      %v2460 = vpop.trf.xlu0
      %v2461 = vpop.trf.xlu0
      %v2462 = vpop.trf.xlu0
      %v2463 = vpop.trf.xlu0
      %2464 = vxpose.xlu0.b32.start [1/16] %v351, 128
      %2465 = vxpose.xlu0.b32.cont [2/16] %v352, 128
      %2466 = vxpose.xlu0.b32.cont [3/16] %v353, 128
      %2467 = vxpose.xlu0.b32.cont [4/16] %v354, 128
      %2468 = vxpose.xlu0.b32.cont [5/16] %v355, 128
      %2469 = vxpose.xlu0.b32.cont [6/16] %v356, 128
      %2470 = vxpose.xlu0.b32.cont [7/16] %v357, 128
      %2471 = vxpose.xlu0.b32.cont [8/16] %v358, 128
      %2472 = vxpose.xlu0.b32.cont [9/16] %v359, 128
      %2473 = vxpose.xlu0.b32.cont [10/16] %v360, 128
      %2474 = vxpose.xlu0.b32.cont [11/16] %v361, 128
      %2475 = vxpose.xlu0.b32.cont [12/16] %v362, 128
      %2476 = vxpose.xlu0.b32.cont [13/16] %v363, 128
      %2477 = vxpose.xlu0.b32.cont [14/16] %v364, 128
      %2478 = vxpose.xlu0.b32.cont [15/16] %v365, 128
      %2479 = vxpose.xlu0.b32.end [16/16] %v366, 128
      %v2480 = vpop.trf.xlu0
      %v2481 = vpop.trf.xlu0
      %v2482 = vpop.trf.xlu0
      %v2483 = vpop.trf.xlu0
      %v2484 = vpop.trf.xlu0
      %v2485 = vpop.trf.xlu0
      %v2486 = vpop.trf.xlu0
      %v2487 = vpop.trf.xlu0
      %v2488 = vpop.trf.xlu0
      %v2489 = vpop.trf.xlu0
      %v2490 = vpop.trf.xlu0
      %v2491 = vpop.trf.xlu0
      %v2492 = vpop.trf.xlu0
      %v2493 = vpop.trf.xlu0
      %v2494 = vpop.trf.xlu0
      %v2495 = vpop.trf.xlu0
      %2496 = vxpose.xlu0.b32.start [1/16] %v367, 128
      %2497 = vxpose.xlu0.b32.cont [2/16] %v368, 128
      %2498 = vxpose.xlu0.b32.cont [3/16] %v369, 128
      %2499 = vxpose.xlu0.b32.cont [4/16] %v370, 128
      %2500 = vxpose.xlu0.b32.cont [5/16] %v371, 128
      %2501 = vxpose.xlu0.b32.cont [6/16] %v372, 128
      %2502 = vxpose.xlu0.b32.cont [7/16] %v373, 128
      %2503 = vxpose.xlu0.b32.cont [8/16] %v374, 128
      %2504 = vxpose.xlu0.b32.cont [9/16] %v375, 128
      %2505 = vxpose.xlu0.b32.cont [10/16] %v376, 128
      %2506 = vxpose.xlu0.b32.cont [11/16] %v377, 128
      %2507 = vxpose.xlu0.b32.cont [12/16] %v378, 128
      %2508 = vxpose.xlu0.b32.cont [13/16] %v379, 128
      %2509 = vxpose.xlu0.b32.cont [14/16] %v380, 128
      %2510 = vxpose.xlu0.b32.cont [15/16] %v381, 128
      %2511 = vxpose.xlu0.b32.end [16/16] %v382, 128
      %v2512 = vpop.trf.xlu0
      %v2513 = vpop.trf.xlu0
      %v2514 = vpop.trf.xlu0
      %v2515 = vpop.trf.xlu0
      %v2516 = vpop.trf.xlu0
      %v2517 = vpop.trf.xlu0
      %v2518 = vpop.trf.xlu0
      %v2519 = vpop.trf.xlu0
      %v2520 = vpop.trf.xlu0
      %v2521 = vpop.trf.xlu0
      %v2522 = vpop.trf.xlu0
      %v2523 = vpop.trf.xlu0
      %v2524 = vpop.trf.xlu0
      %v2525 = vpop.trf.xlu0
      %v2526 = vpop.trf.xlu0
      %v2527 = vpop.trf.xlu0
      %2528 = vxpose.xlu0.b32.start [1/16] %v383, 128
      %2529 = vxpose.xlu0.b32.cont [2/16] %v384, 128
      %2530 = vxpose.xlu0.b32.cont [3/16] %v385, 128
      %2531 = vxpose.xlu0.b32.cont [4/16] %v386, 128
      %2532 = vxpose.xlu0.b32.cont [5/16] %v387, 128
      %2533 = vxpose.xlu0.b32.cont [6/16] %v388, 128
      %2534 = vxpose.xlu0.b32.cont [7/16] %v389, 128
      %2535 = vxpose.xlu0.b32.cont [8/16] %v390, 128
      %2536 = vxpose.xlu0.b32.cont [9/16] %v391, 128
      %2537 = vxpose.xlu0.b32.cont [10/16] %v392, 128
      %2538 = vxpose.xlu0.b32.cont [11/16] %v393, 128
      %2539 = vxpose.xlu0.b32.cont [12/16] %v394, 128
      %2540 = vxpose.xlu0.b32.cont [13/16] %v395, 128
      %2541 = vxpose.xlu0.b32.cont [14/16] %v396, 128
      %2542 = vxpose.xlu0.b32.cont [15/16] %v397, 128
      %2543 = vxpose.xlu0.b32.end [16/16] %v398, 128
      %v2544 = vpop.trf.xlu0
      %v2545 = vpop.trf.xlu0
      %v2546 = vpop.trf.xlu0
      %v2547 = vpop.trf.xlu0
      %v2548 = vpop.trf.xlu0
      %v2549 = vpop.trf.xlu0
      %v2550 = vpop.trf.xlu0
      %v2551 = vpop.trf.xlu0
      %v2552 = vpop.trf.xlu0
      %v2553 = vpop.trf.xlu0
      %v2554 = vpop.trf.xlu0
      %v2555 = vpop.trf.xlu0
      %v2556 = vpop.trf.xlu0
      %v2557 = vpop.trf.xlu0
      %v2558 = vpop.trf.xlu0
      %v2559 = vpop.trf.xlu0
      %2560 = vxpose.xlu0.b32.start [1/16] %v399, 128
      %2561 = vxpose.xlu0.b32.cont [2/16] %v400, 128
      %2562 = vxpose.xlu0.b32.cont [3/16] %v401, 128
      %2563 = vxpose.xlu0.b32.cont [4/16] %v402, 128
      %2564 = vxpose.xlu0.b32.cont [5/16] %v403, 128
      %2565 = vxpose.xlu0.b32.cont [6/16] %v404, 128
      %2566 = vxpose.xlu0.b32.cont [7/16] %v405, 128
      %2567 = vxpose.xlu0.b32.cont [8/16] %v406, 128
      %2568 = vxpose.xlu0.b32.cont [9/16] %v407, 128
      %2569 = vxpose.xlu0.b32.cont [10/16] %v408, 128
      %2570 = vxpose.xlu0.b32.cont [11/16] %v409, 128
      %2571 = vxpose.xlu0.b32.cont [12/16] %v410, 128
      %2572 = vxpose.xlu0.b32.cont [13/16] %v411, 128
      %2573 = vxpose.xlu0.b32.cont [14/16] %v412, 128
      %2574 = vxpose.xlu0.b32.cont [15/16] %v413, 128
      %2575 = vxpose.xlu0.b32.end [16/16] %v414, 128
      %v2576 = vpop.trf.xlu0
      %v2577 = vpop.trf.xlu0
      %v2578 = vpop.trf.xlu0
      %v2579 = vpop.trf.xlu0
      %v2580 = vpop.trf.xlu0
      %v2581 = vpop.trf.xlu0
      %v2582 = vpop.trf.xlu0
      %v2583 = vpop.trf.xlu0
      %v2584 = vpop.trf.xlu0
      %v2585 = vpop.trf.xlu0
      %v2586 = vpop.trf.xlu0
      %v2587 = vpop.trf.xlu0
      %v2588 = vpop.trf.xlu0
      %v2589 = vpop.trf.xlu0
      %v2590 = vpop.trf.xlu0
      %v2591 = vpop.trf.xlu0
      %2592 = vxpose.xlu0.b32.start [1/16] %v415, 128
      %2593 = vxpose.xlu0.b32.cont [2/16] %v416, 128
      %2594 = vxpose.xlu0.b32.cont [3/16] %v417, 128
      %2595 = vxpose.xlu0.b32.cont [4/16] %v418, 128
      %2596 = vxpose.xlu0.b32.cont [5/16] %v419, 128
      %2597 = vxpose.xlu0.b32.cont [6/16] %v420, 128
      %2598 = vxpose.xlu0.b32.cont [7/16] %v421, 128
      %2599 = vxpose.xlu0.b32.cont [8/16] %v422, 128
      %2600 = vxpose.xlu0.b32.cont [9/16] %v423, 128
      %2601 = vxpose.xlu0.b32.cont [10/16] %v424, 128
      %2602 = vxpose.xlu0.b32.cont [11/16] %v425, 128
      %2603 = vxpose.xlu0.b32.cont [12/16] %v426, 128
      %2604 = vxpose.xlu0.b32.cont [13/16] %v427, 128
      %2605 = vxpose.xlu0.b32.cont [14/16] %v428, 128
      %2606 = vxpose.xlu0.b32.cont [15/16] %v429, 128
      %2607 = vxpose.xlu0.b32.end [16/16] %v430, 128
      %v2608 = vpop.trf.xlu0
      %v2609 = vpop.trf.xlu0
      %v2610 = vpop.trf.xlu0
      %v2611 = vpop.trf.xlu0
      %v2612 = vpop.trf.xlu0
      %v2613 = vpop.trf.xlu0
      %v2614 = vpop.trf.xlu0
      %v2615 = vpop.trf.xlu0
      %v2616 = vpop.trf.xlu0
      %v2617 = vpop.trf.xlu0
      %v2618 = vpop.trf.xlu0
      %v2619 = vpop.trf.xlu0
      %v2620 = vpop.trf.xlu0
      %v2621 = vpop.trf.xlu0
      %v2622 = vpop.trf.xlu0
      %v2623 = vpop.trf.xlu0
      %2624 = vxpose.xlu0.b32.start [1/16] %v431, 128
      %2625 = vxpose.xlu0.b32.cont [2/16] %v432, 128
      %2626 = vxpose.xlu0.b32.cont [3/16] %v433, 128
      %2627 = vxpose.xlu0.b32.cont [4/16] %v434, 128
      %2628 = vxpose.xlu0.b32.cont [5/16] %v435, 128
      %2629 = vxpose.xlu0.b32.cont [6/16] %v436, 128
      %2630 = vxpose.xlu0.b32.cont [7/16] %v437, 128
      %2631 = vxpose.xlu0.b32.cont [8/16] %v438, 128
      %2632 = vxpose.xlu0.b32.cont [9/16] %v439, 128
      %2633 = vxpose.xlu0.b32.cont [10/16] %v440, 128
      %2634 = vxpose.xlu0.b32.cont [11/16] %v441, 128
      %2635 = vxpose.xlu0.b32.cont [12/16] %v442, 128
      %2636 = vxpose.xlu0.b32.cont [13/16] %v443, 128
      %2637 = vxpose.xlu0.b32.cont [14/16] %v444, 128
      %2638 = vxpose.xlu0.b32.cont [15/16] %v445, 128
      %2639 = vxpose.xlu0.b32.end [16/16] %v446, 128
      %v2640 = vpop.trf.xlu0
      %v2641 = vpop.trf.xlu0
      %v2642 = vpop.trf.xlu0
      %v2643 = vpop.trf.xlu0
      %v2644 = vpop.trf.xlu0
      %v2645 = vpop.trf.xlu0
      %v2646 = vpop.trf.xlu0
      %v2647 = vpop.trf.xlu0
      %v2648 = vpop.trf.xlu0
      %v2649 = vpop.trf.xlu0
      %v2650 = vpop.trf.xlu0
      %v2651 = vpop.trf.xlu0
      %v2652 = vpop.trf.xlu0
      %v2653 = vpop.trf.xlu0
      %v2654 = vpop.trf.xlu0
      %v2655 = vpop.trf.xlu0
      %2656 = vxpose.xlu0.b32.start [1/16] %v447, 128
      %2657 = vxpose.xlu0.b32.cont [2/16] %v448, 128
      %2658 = vxpose.xlu0.b32.cont [3/16] %v449, 128
      %2659 = vxpose.xlu0.b32.cont [4/16] %v450, 128
      %2660 = vxpose.xlu0.b32.cont [5/16] %v451, 128
      %2661 = vxpose.xlu0.b32.cont [6/16] %v452, 128
      %2662 = vxpose.xlu0.b32.cont [7/16] %v453, 128
      %2663 = vxpose.xlu0.b32.cont [8/16] %v454, 128
      %2664 = vxpose.xlu0.b32.cont [9/16] %v455, 128
      %2665 = vxpose.xlu0.b32.cont [10/16] %v456, 128
      %2666 = vxpose.xlu0.b32.cont [11/16] %v457, 128
      %2667 = vxpose.xlu0.b32.cont [12/16] %v458, 128
      %2668 = vxpose.xlu0.b32.cont [13/16] %v459, 128
      %2669 = vxpose.xlu0.b32.cont [14/16] %v460, 128
      %2670 = vxpose.xlu0.b32.cont [15/16] %v461, 128
      %2671 = vxpose.xlu0.b32.end [16/16] %v462, 128
      %v2672 = vpop.trf.xlu0
      %v2673 = vpop.trf.xlu0
      %v2674 = vpop.trf.xlu0
      %v2675 = vpop.trf.xlu0
      %v2676 = vpop.trf.xlu0
      %v2677 = vpop.trf.xlu0
      %v2678 = vpop.trf.xlu0
      %v2679 = vpop.trf.xlu0
      %v2680 = vpop.trf.xlu0
      %v2681 = vpop.trf.xlu0
      %v2682 = vpop.trf.xlu0
      %v2683 = vpop.trf.xlu0
      %v2684 = vpop.trf.xlu0
      %v2685 = vpop.trf.xlu0
      %v2686 = vpop.trf.xlu0
      %v2687 = vpop.trf.xlu0
      %2688 = vxpose.xlu0.b32.start [1/16] %v463, 128
      %2689 = vxpose.xlu0.b32.cont [2/16] %v464, 128
      %2690 = vxpose.xlu0.b32.cont [3/16] %v465, 128
      %2691 = vxpose.xlu0.b32.cont [4/16] %v466, 128
      %2692 = vxpose.xlu0.b32.cont [5/16] %v467, 128
      %2693 = vxpose.xlu0.b32.cont [6/16] %v468, 128
      %2694 = vxpose.xlu0.b32.cont [7/16] %v469, 128
      %2695 = vxpose.xlu0.b32.cont [8/16] %v470, 128
      %2696 = vxpose.xlu0.b32.cont [9/16] %v471, 128
      %2697 = vxpose.xlu0.b32.cont [10/16] %v472, 128
      %2698 = vxpose.xlu0.b32.cont [11/16] %v473, 128
      %2699 = vxpose.xlu0.b32.cont [12/16] %v474, 128
      %2700 = vxpose.xlu0.b32.cont [13/16] %v475, 128
      %2701 = vxpose.xlu0.b32.cont [14/16] %v476, 128
      %2702 = vxpose.xlu0.b32.cont [15/16] %v477, 128
      %2703 = vxpose.xlu0.b32.end [16/16] %v478, 128
      %v2704 = vpop.trf.xlu0
      %v2705 = vpop.trf.xlu0
      %v2706 = vpop.trf.xlu0
      %v2707 = vpop.trf.xlu0
      %v2708 = vpop.trf.xlu0
      %v2709 = vpop.trf.xlu0
      %v2710 = vpop.trf.xlu0
      %v2711 = vpop.trf.xlu0
      %v2712 = vpop.trf.xlu0
      %v2713 = vpop.trf.xlu0
      %v2714 = vpop.trf.xlu0
      %v2715 = vpop.trf.xlu0
      %v2716 = vpop.trf.xlu0
      %v2717 = vpop.trf.xlu0
      %v2718 = vpop.trf.xlu0
      %v2719 = vpop.trf.xlu0
      %2720 = vxpose.xlu0.b32.start [1/16] %v479, 128
      %2721 = vxpose.xlu0.b32.cont [2/16] %v480, 128
      %2722 = vxpose.xlu0.b32.cont [3/16] %v481, 128
      %2723 = vxpose.xlu0.b32.cont [4/16] %v482, 128
      %2724 = vxpose.xlu0.b32.cont [5/16] %v483, 128
      %2725 = vxpose.xlu0.b32.cont [6/16] %v484, 128
      %2726 = vxpose.xlu0.b32.cont [7/16] %v485, 128
      %2727 = vxpose.xlu0.b32.cont [8/16] %v486, 128
      %2728 = vxpose.xlu0.b32.cont [9/16] %v487, 128
      %2729 = vxpose.xlu0.b32.cont [10/16] %v488, 128
      %2730 = vxpose.xlu0.b32.cont [11/16] %v489, 128
      %2731 = vxpose.xlu0.b32.cont [12/16] %v490, 128
      %2732 = vxpose.xlu0.b32.cont [13/16] %v491, 128
      %2733 = vxpose.xlu0.b32.cont [14/16] %v492, 128
      %2734 = vxpose.xlu0.b32.cont [15/16] %v493, 128
      %2735 = vxpose.xlu0.b32.end [16/16] %v494, 128
      %v2736 = vpop.trf.xlu0
      %v2737 = vpop.trf.xlu0
      %v2738 = vpop.trf.xlu0
      %v2739 = vpop.trf.xlu0
      %v2740 = vpop.trf.xlu0
      %v2741 = vpop.trf.xlu0
      %v2742 = vpop.trf.xlu0
      %v2743 = vpop.trf.xlu0
      %v2744 = vpop.trf.xlu0
      %v2745 = vpop.trf.xlu0
      %v2746 = vpop.trf.xlu0
      %v2747 = vpop.trf.xlu0
      %v2748 = vpop.trf.xlu0
      %v2749 = vpop.trf.xlu0
      %v2750 = vpop.trf.xlu0
      %v2751 = vpop.trf.xlu0
      %2752 = vxpose.xlu0.b32.start [1/16] %v495, 128
      %2753 = vxpose.xlu0.b32.cont [2/16] %v496, 128
      %2754 = vxpose.xlu0.b32.cont [3/16] %v497, 128
      %2755 = vxpose.xlu0.b32.cont [4/16] %v498, 128
      %2756 = vxpose.xlu0.b32.cont [5/16] %v499, 128
      %2757 = vxpose.xlu0.b32.cont [6/16] %v500, 128
      %2758 = vxpose.xlu0.b32.cont [7/16] %v501, 128
      %2759 = vxpose.xlu0.b32.cont [8/16] %v502, 128
      %2760 = vxpose.xlu0.b32.cont [9/16] %v503, 128
      %2761 = vxpose.xlu0.b32.cont [10/16] %v504, 128
      %2762 = vxpose.xlu0.b32.cont [11/16] %v505, 128
      %2763 = vxpose.xlu0.b32.cont [12/16] %v506, 128
      %2764 = vxpose.xlu0.b32.cont [13/16] %v507, 128
      %2765 = vxpose.xlu0.b32.cont [14/16] %v508, 128
      %2766 = vxpose.xlu0.b32.cont [15/16] %v509, 128
      %2767 = vxpose.xlu0.b32.end [16/16] %v510, 128
      %v2768 = vpop.trf.xlu0
      %v2769 = vpop.trf.xlu0
      %v2770 = vpop.trf.xlu0
      %v2771 = vpop.trf.xlu0
      %v2772 = vpop.trf.xlu0
      %v2773 = vpop.trf.xlu0
      %v2774 = vpop.trf.xlu0
      %v2775 = vpop.trf.xlu0
      %v2776 = vpop.trf.xlu0
      %v2777 = vpop.trf.xlu0
      %v2778 = vpop.trf.xlu0
      %v2779 = vpop.trf.xlu0
      %v2780 = vpop.trf.xlu0
      %v2781 = vpop.trf.xlu0
      %v2782 = vpop.trf.xlu0
      %v2783 = vpop.trf.xlu0
      %2784 = vxpose.xlu0.b32.start [1/16] %v511, 128
      %2785 = vxpose.xlu0.b32.cont [2/16] %v512, 128
      %2786 = vxpose.xlu0.b32.cont [3/16] %v513, 128
      %2787 = vxpose.xlu0.b32.cont [4/16] %v514, 128
      %2788 = vxpose.xlu0.b32.cont [5/16] %v515, 128
      %2789 = vxpose.xlu0.b32.cont [6/16] %v516, 128
      %2790 = vxpose.xlu0.b32.cont [7/16] %v517, 128
      %2791 = vxpose.xlu0.b32.cont [8/16] %v518, 128
      %2792 = vxpose.xlu0.b32.cont [9/16] %v519, 128
      %2793 = vxpose.xlu0.b32.cont [10/16] %v520, 128
      %2794 = vxpose.xlu0.b32.cont [11/16] %v521, 128
      %2795 = vxpose.xlu0.b32.cont [12/16] %v522, 128
      %2796 = vxpose.xlu0.b32.cont [13/16] %v523, 128
      %2797 = vxpose.xlu0.b32.cont [14/16] %v524, 128
      %2798 = vxpose.xlu0.b32.cont [15/16] %v525, 128
      %2799 = vxpose.xlu0.b32.end [16/16] %v526, 128
      %v2800 = vpop.trf.xlu0
      %v2801 = vpop.trf.xlu0
      %v2802 = vpop.trf.xlu0
      %v2803 = vpop.trf.xlu0
      %v2804 = vpop.trf.xlu0
      %v2805 = vpop.trf.xlu0
      %v2806 = vpop.trf.xlu0
      %v2807 = vpop.trf.xlu0
      %v2808 = vpop.trf.xlu0
      %v2809 = vpop.trf.xlu0
      %v2810 = vpop.trf.xlu0
      %v2811 = vpop.trf.xlu0
      %v2812 = vpop.trf.xlu0
      %v2813 = vpop.trf.xlu0
      %v2814 = vpop.trf.xlu0
      %v2815 = vpop.trf.xlu0
      %2816 = vxpose.xlu0.b32.start [1/16] %v527, 128
      %2817 = vxpose.xlu0.b32.cont [2/16] %v528, 128
      %2818 = vxpose.xlu0.b32.cont [3/16] %v529, 128
      %2819 = vxpose.xlu0.b32.cont [4/16] %v530, 128
      %2820 = vxpose.xlu0.b32.cont [5/16] %v531, 128
      %2821 = vxpose.xlu0.b32.cont [6/16] %v532, 128
      %2822 = vxpose.xlu0.b32.cont [7/16] %v533, 128
      %2823 = vxpose.xlu0.b32.cont [8/16] %v534, 128
      %2824 = vxpose.xlu0.b32.cont [9/16] %v535, 128
      %2825 = vxpose.xlu0.b32.cont [10/16] %v536, 128
      %2826 = vxpose.xlu0.b32.cont [11/16] %v537, 128
      %2827 = vxpose.xlu0.b32.cont [12/16] %v538, 128
      %2828 = vxpose.xlu0.b32.cont [13/16] %v539, 128
      %2829 = vxpose.xlu0.b32.cont [14/16] %v540, 128
      %2830 = vxpose.xlu0.b32.cont [15/16] %v541, 128
      %2831 = vxpose.xlu0.b32.end [16/16] %v542, 128
      %v2832 = vpop.trf.xlu0
      %v2833 = vpop.trf.xlu0
      %v2834 = vpop.trf.xlu0
      %v2835 = vpop.trf.xlu0
      %v2836 = vpop.trf.xlu0
      %v2837 = vpop.trf.xlu0
      %v2838 = vpop.trf.xlu0
      %v2839 = vpop.trf.xlu0
      %v2840 = vpop.trf.xlu0
      %v2841 = vpop.trf.xlu0
      %v2842 = vpop.trf.xlu0
      %v2843 = vpop.trf.xlu0
      %v2844 = vpop.trf.xlu0
      %v2845 = vpop.trf.xlu0
      %v2846 = vpop.trf.xlu0
      %v2847 = vpop.trf.xlu0
      %2848 = vst [vmem:[%s277] sm:$0xff] %v2352
      %2849 = vst [vmem:[%s277 + $0x8] sm:$0xff] %v2384
      %2850 = vst [vmem:[%s277 + $0x10] sm:$0xff] %v2416
      %2851 = vst [vmem:[%s277 + $0x18] sm:$0xff] %v2448
      %2852 = vst [vmem:[%s277 + $0x20] sm:$0xff] %v2480
      %2853 = vst [vmem:[%s277 + $0x28] sm:$0xff] %v2512
      %2854 = vst [vmem:[%s277 + $0x30] sm:$0xff] %v2544
      %2855 = vst [vmem:[%s277 + $0x38] sm:$0xff] %v2576
      %2856 = vst [vmem:[%s277 + $0x40] sm:$0xff] %v2608
      %2857 = vst [vmem:[%s277 + $0x48] sm:$0xff] %v2640
      %2858 = vst [vmem:[%s277 + $0x50] sm:$0xff] %v2672
      %2859 = vst [vmem:[%s277 + $0x58] sm:$0xff] %v2704
      %2860 = vst [vmem:[%s277 + $0x60] sm:$0xff] %v2736
      %2861 = vst [vmem:[%s277 + $0x68] sm:$0xff] %v2768
      %2862 = vst [vmem:[%s277 + $0x70] sm:$0xff] %v2800
      %2863 = vst [vmem:[%s277 + $0x78] sm:$0xff] %v2832
      %2864 = vst [vmem:[%s277 + $0x80] sm:$0xff] %v2353
      %2865 = vst [vmem:[%s277 + $0x88] sm:$0xff] %v2385
      %2866 = vst [vmem:[%s277 + $0x90] sm:$0xff] %v2417
      %2867 = vst [vmem:[%s277 + $0x98] sm:$0xff] %v2449
      %2868 = vst [vmem:[%s277 + $0xa0] sm:$0xff] %v2481
      %2869 = vst [vmem:[%s277 + $0xa8] sm:$0xff] %v2513
      %2870 = vst [vmem:[%s277 + $0xb0] sm:$0xff] %v2545
      %2871 = vst [vmem:[%s277 + $0xb8] sm:$0xff] %v2577
      %2872 = vst [vmem:[%s277 + $0xc0] sm:$0xff] %v2609
      %2873 = vst [vmem:[%s277 + $0xc8] sm:$0xff] %v2641
      %2874 = vst [vmem:[%s277 + $0xd0] sm:$0xff] %v2673
      %2875 = vst [vmem:[%s277 + $0xd8] sm:$0xff] %v2705
      %2876 = vst [vmem:[%s277 + $0xe0] sm:$0xff] %v2737
      %2877 = vst [vmem:[%s277 + $0xe8] sm:$0xff] %v2769
      %2878 = vst [vmem:[%s277 + $0xf0] sm:$0xff] %v2801
      %2879 = vst [vmem:[%s277 + $0xf8] sm:$0xff] %v2833
      %2880 = vst [vmem:[%s277 + $0x100] sm:$0xff] %v2354
      %2881 = vst [vmem:[%s277 + $0x108] sm:$0xff] %v2386
      %2882 = vst [vmem:[%s277 + $0x110] sm:$0xff] %v2418
      %2883 = vst [vmem:[%s277 + $0x118] sm:$0xff] %v2450
      %2884 = vst [vmem:[%s277 + $0x120] sm:$0xff] %v2482
      %2885 = vst [vmem:[%s277 + $0x128] sm:$0xff] %v2514
      %2886 = vst [vmem:[%s277 + $0x130] sm:$0xff] %v2546
      %2887 = vst [vmem:[%s277 + $0x138] sm:$0xff] %v2578
      %2888 = vst [vmem:[%s277 + $0x140] sm:$0xff] %v2610
      %2889 = vst [vmem:[%s277 + $0x148] sm:$0xff] %v2642
      %2890 = vst [vmem:[%s277 + $0x150] sm:$0xff] %v2674
      %2891 = vst [vmem:[%s277 + $0x158] sm:$0xff] %v2706
      %2892 = vst [vmem:[%s277 + $0x160] sm:$0xff] %v2738
      %2893 = vst [vmem:[%s277 + $0x168] sm:$0xff] %v2770
      %2894 = vst [vmem:[%s277 + $0x170] sm:$0xff] %v2802
      %2895 = vst [vmem:[%s277 + $0x178] sm:$0xff] %v2834
      %2896 = vst [vmem:[%s277 + $0x180] sm:$0xff] %v2355
      %2897 = vst [vmem:[%s277 + $0x188] sm:$0xff] %v2387
      %2898 = vst [vmem:[%s277 + $0x190] sm:$0xff] %v2419
      %2899 = vst [vmem:[%s277 + $0x198] sm:$0xff] %v2451
      %2900 = vst [vmem:[%s277 + $0x1a0] sm:$0xff] %v2483
      %2901 = vst [vmem:[%s277 + $0x1a8] sm:$0xff] %v2515
      %2902 = vst [vmem:[%s277 + $0x1b0] sm:$0xff] %v2547
      %2903 = vst [vmem:[%s277 + $0x1b8] sm:$0xff] %v2579
      %2904 = vst [vmem:[%s277 + $0x1c0] sm:$0xff] %v2611
      %2905 = vst [vmem:[%s277 + $0x1c8] sm:$0xff] %v2643
      %2906 = vst [vmem:[%s277 + $0x1d0] sm:$0xff] %v2675
      %2907 = vst [vmem:[%s277 + $0x1d8] sm:$0xff] %v2707
      %2908 = vst [vmem:[%s277 + $0x1e0] sm:$0xff] %v2739
      %2909 = vst [vmem:[%s277 + $0x1e8] sm:$0xff] %v2771
      %2910 = vst [vmem:[%s277 + $0x1f0] sm:$0xff] %v2803
      %2911 = vst [vmem:[%s277 + $0x1f8] sm:$0xff] %v2835
      %2912 = vst [vmem:[%s277 + $0x200] sm:$0xff] %v2356
      %2913 = vst [vmem:[%s277 + $0x208] sm:$0xff] %v2388
      %2914 = vst [vmem:[%s277 + $0x210] sm:$0xff] %v2420
      %2915 = vst [vmem:[%s277 + $0x218] sm:$0xff] %v2452
      %2916 = vst [vmem:[%s277 + $0x220] sm:$0xff] %v2484
      %2917 = vst [vmem:[%s277 + $0x228] sm:$0xff] %v2516
      %2918 = vst [vmem:[%s277 + $0x230] sm:$0xff] %v2548
      %2919 = vst [vmem:[%s277 + $0x238] sm:$0xff] %v2580
      %2920 = vst [vmem:[%s277 + $0x240] sm:$0xff] %v2612
      %2921 = vst [vmem:[%s277 + $0x248] sm:$0xff] %v2644
      %2922 = vst [vmem:[%s277 + $0x250] sm:$0xff] %v2676
      %2923 = vst [vmem:[%s277 + $0x258] sm:$0xff] %v2708
      %2924 = vst [vmem:[%s277 + $0x260] sm:$0xff] %v2740
      %2925 = vst [vmem:[%s277 + $0x268] sm:$0xff] %v2772
      %2926 = vst [vmem:[%s277 + $0x270] sm:$0xff] %v2804
      %2927 = vst [vmem:[%s277 + $0x278] sm:$0xff] %v2836
      %2928 = vst [vmem:[%s277 + $0x280] sm:$0xff] %v2357
      %2929 = vst [vmem:[%s277 + $0x288] sm:$0xff] %v2389
      %2930 = vst [vmem:[%s277 + $0x290] sm:$0xff] %v2421
      %2931 = vst [vmem:[%s277 + $0x298] sm:$0xff] %v2453
      %2932 = vst [vmem:[%s277 + $0x2a0] sm:$0xff] %v2485
      %2933 = vst [vmem:[%s277 + $0x2a8] sm:$0xff] %v2517
      %2934 = vst [vmem:[%s277 + $0x2b0] sm:$0xff] %v2549
      %2935 = vst [vmem:[%s277 + $0x2b8] sm:$0xff] %v2581
      %2936 = vst [vmem:[%s277 + $0x2c0] sm:$0xff] %v2613
      %2937 = vst [vmem:[%s277 + $0x2c8] sm:$0xff] %v2645
      %2938 = vst [vmem:[%s277 + $0x2d0] sm:$0xff] %v2677
      %2939 = vst [vmem:[%s277 + $0x2d8] sm:$0xff] %v2709
      %2940 = vst [vmem:[%s277 + $0x2e0] sm:$0xff] %v2741
      %2941 = vst [vmem:[%s277 + $0x2e8] sm:$0xff] %v2773
      %2942 = vst [vmem:[%s277 + $0x2f0] sm:$0xff] %v2805
      %2943 = vst [vmem:[%s277 + $0x2f8] sm:$0xff] %v2837
      %2944 = vst [vmem:[%s277 + $0x300] sm:$0x1] %v2358
      %2945 = vst [vmem:[%s277 + $0x308] sm:$0x1] %v2390
      %2946 = vst [vmem:[%s277 + $0x310] sm:$0x1] %v2422
      %2947 = vst [vmem:[%s277 + $0x318] sm:$0x1] %v2454
      %2948 = vst [vmem:[%s277 + $0x320] sm:$0x1] %v2486
      %2949 = vst [vmem:[%s277 + $0x328] sm:$0x1] %v2518
      %2950 = vst [vmem:[%s277 + $0x330] sm:$0x1] %v2550
      %2951 = vst [vmem:[%s277 + $0x338] sm:$0x1] %v2582
      %2952 = vst [vmem:[%s277 + $0x340] sm:$0x1] %v2614
      %2953 = vst [vmem:[%s277 + $0x348] sm:$0x1] %v2646
      %2954 = vst [vmem:[%s277 + $0x350] sm:$0x1] %v2678
      %2955 = vst [vmem:[%s277 + $0x358] sm:$0x1] %v2710
      %2956 = vst [vmem:[%s277 + $0x360] sm:$0x1] %v2742
      %2957 = vst [vmem:[%s277 + $0x368] sm:$0x1] %v2774
      %2958 = vst [vmem:[%s277 + $0x370] sm:$0x1] %v2806
      %2959 = vst [vmem:[%s277 + $0x378] sm:$0x1] %v2838
      %v2960 = vadd.f32 %v2352, %v2353
      %v2961 = vadd.f32 %v2960, %v2354
      %v2962 = vadd.f32 %v2961, %v2355
      %v2963 = vadd.f32 %v2962, %v2356
      %v2964 = vadd.f32 %v2963, %v2357
      %vm2965 = vcmask 1040384
      %v2966 = vsel %vm2965, %v2358, 0.0
      %v2967 = vadd.f32 %v2964, %v2966
      %v2968 = vrot.slane %v2967, 4
      %v2969 = vadd.f32 %v2967, %v2968
      %v2970 = vrot.slane %v2969, 2
      %v2971 = vadd.f32 %v2969, %v2970
      %v2972 = vrot.slane %v2971, 1
      %v2973 = vadd.f32 %v2971, %v2972
      %v2974 = vadd.f32 %v2384, %v2385
      %v2975 = vadd.f32 %v2974, %v2386
      %v2976 = vadd.f32 %v2975, %v2387
      %v2977 = vadd.f32 %v2976, %v2388
      %v2978 = vadd.f32 %v2977, %v2389
      %v2979 = vsel %vm2965, %v2390, 0.0
      %v2980 = vadd.f32 %v2978, %v2979
      %v2981 = vrot.slane %v2980, 4
      %v2982 = vadd.f32 %v2980, %v2981
      %v2983 = vrot.slane %v2982, 2
      %v2984 = vadd.f32 %v2982, %v2983
      %v2985 = vrot.slane %v2984, 1
      %v2986 = vadd.f32 %v2984, %v2985
      %v2987 = vadd.f32 %v2416, %v2417
      %v2988 = vadd.f32 %v2987, %v2418
      %v2989 = vadd.f32 %v2988, %v2419
      %v2990 = vadd.f32 %v2989, %v2420
      %v2991 = vadd.f32 %v2990, %v2421
      %v2992 = vsel %vm2965, %v2422, 0.0
      %v2993 = vadd.f32 %v2991, %v2992
      %v2994 = vrot.slane %v2993, 4
      %v2995 = vadd.f32 %v2993, %v2994
      %v2996 = vrot.slane %v2995, 2
      %v2997 = vadd.f32 %v2995, %v2996
      %v2998 = vrot.slane %v2997, 1
      %v2999 = vadd.f32 %v2997, %v2998
      %v3000 = vadd.f32 %v2448, %v2449
      %v3001 = vadd.f32 %v3000, %v2450
      %v3002 = vadd.f32 %v3001, %v2451
      %v3003 = vadd.f32 %v3002, %v2452
      %v3004 = vadd.f32 %v3003, %v2453
      %v3005 = vsel %vm2965, %v2454, 0.0
      %v3006 = vadd.f32 %v3004, %v3005
      %v3007 = vrot.slane %v3006, 4
      %v3008 = vadd.f32 %v3006, %v3007
      %v3009 = vrot.slane %v3008, 2
      %v3010 = vadd.f32 %v3008, %v3009
      %v3011 = vrot.slane %v3010, 1
      %v3012 = vadd.f32 %v3010, %v3011
      %v3013 = vadd.f32 %v2480, %v2481
      %v3014 = vadd.f32 %v3013, %v2482
      %v3015 = vadd.f32 %v3014, %v2483
      %v3016 = vadd.f32 %v3015, %v2484
      %v3017 = vadd.f32 %v3016, %v2485
      %v3018 = vsel %vm2965, %v2486, 0.0
      %v3019 = vadd.f32 %v3017, %v3018
      %v3020 = vrot.slane %v3019, 4
      %v3021 = vadd.f32 %v3019, %v3020
      %v3022 = vrot.slane %v3021, 2
      %v3023 = vadd.f32 %v3021, %v3022
      %v3024 = vrot.slane %v3023, 1
      %v3025 = vadd.f32 %v3023, %v3024
      %v3026 = vadd.f32 %v2512, %v2513
      %v3027 = vadd.f32 %v3026, %v2514
      %v3028 = vadd.f32 %v3027, %v2515
      %v3029 = vadd.f32 %v3028, %v2516
      %v3030 = vadd.f32 %v3029, %v2517
      %v3031 = vsel %vm2965, %v2518, 0.0
      %v3032 = vadd.f32 %v3030, %v3031
      %v3033 = vrot.slane %v3032, 4
      %v3034 = vadd.f32 %v3032, %v3033
      %v3035 = vrot.slane %v3034, 2
      %v3036 = vadd.f32 %v3034, %v3035
      %v3037 = vrot.slane %v3036, 1
      %v3038 = vadd.f32 %v3036, %v3037
      %v3039 = vadd.f32 %v2544, %v2545
      %v3040 = vadd.f32 %v3039, %v2546
      %v3041 = vadd.f32 %v3040, %v2547
      %v3042 = vadd.f32 %v3041, %v2548
      %v3043 = vadd.f32 %v3042, %v2549
      %v3044 = vsel %vm2965, %v2550, 0.0
      %v3045 = vadd.f32 %v3043, %v3044
      %v3046 = vrot.slane %v3045, 4
      %v3047 = vadd.f32 %v3045, %v3046
      %v3048 = vrot.slane %v3047, 2
      %v3049 = vadd.f32 %v3047, %v3048
      %v3050 = vrot.slane %v3049, 1
      %v3051 = vadd.f32 %v3049, %v3050
      %v3052 = vadd.f32 %v2576, %v2577
      %v3053 = vadd.f32 %v3052, %v2578
      %v3054 = vadd.f32 %v3053, %v2579
      %v3055 = vadd.f32 %v3054, %v2580
      %v3056 = vadd.f32 %v3055, %v2581
      %v3057 = vsel %vm2965, %v2582, 0.0
      %v3058 = vadd.f32 %v3056, %v3057
      %v3059 = vrot.slane %v3058, 4
      %v3060 = vadd.f32 %v3058, %v3059
      %v3061 = vrot.slane %v3060, 2
      %v3062 = vadd.f32 %v3060, %v3061
      %v3063 = vrot.slane %v3062, 1
      %v3064 = vadd.f32 %v3062, %v3063
      %v3065 = vadd.f32 %v2608, %v2609
      %v3066 = vadd.f32 %v3065, %v2610
      %v3067 = vadd.f32 %v3066, %v2611
      %v3068 = vadd.f32 %v3067, %v2612
      %v3069 = vadd.f32 %v3068, %v2613
      %v3070 = vsel %vm2965, %v2614, 0.0
      %v3071 = vadd.f32 %v3069, %v3070
      %v3072 = vrot.slane %v3071, 4
      %v3073 = vadd.f32 %v3071, %v3072
      %v3074 = vrot.slane %v3073, 2
      %v3075 = vadd.f32 %v3073, %v3074
      %v3076 = vrot.slane %v3075, 1
      %v3077 = vadd.f32 %v3075, %v3076
      %v3078 = vadd.f32 %v2640, %v2641
      %v3079 = vadd.f32 %v3078, %v2642
      %v3080 = vadd.f32 %v3079, %v2643
      %v3081 = vadd.f32 %v3080, %v2644
      %v3082 = vadd.f32 %v3081, %v2645
      %v3083 = vsel %vm2965, %v2646, 0.0
      %v3084 = vadd.f32 %v3082, %v3083
      %v3085 = vrot.slane %v3084, 4
      %v3086 = vadd.f32 %v3084, %v3085
      %v3087 = vrot.slane %v3086, 2
      %v3088 = vadd.f32 %v3086, %v3087
      %v3089 = vrot.slane %v3088, 1
      %v3090 = vadd.f32 %v3088, %v3089
      %v3091 = vadd.f32 %v2672, %v2673
      %v3092 = vadd.f32 %v3091, %v2674
      %v3093 = vadd.f32 %v3092, %v2675
      %v3094 = vadd.f32 %v3093, %v2676
      %v3095 = vadd.f32 %v3094, %v2677
      %v3096 = vsel %vm2965, %v2678, 0.0
      %v3097 = vadd.f32 %v3095, %v3096
      %v3098 = vrot.slane %v3097, 4
      %v3099 = vadd.f32 %v3097, %v3098
      %v3100 = vrot.slane %v3099, 2
      %v3101 = vadd.f32 %v3099, %v3100
      %v3102 = vrot.slane %v3101, 1
      %v3103 = vadd.f32 %v3101, %v3102
      %v3104 = vadd.f32 %v2704, %v2705
      %v3105 = vadd.f32 %v3104, %v2706
      %v3106 = vadd.f32 %v3105, %v2707
      %v3107 = vadd.f32 %v3106, %v2708
      %v3108 = vadd.f32 %v3107, %v2709
      %v3109 = vsel %vm2965, %v2710, 0.0
      %v3110 = vadd.f32 %v3108, %v3109
      %v3111 = vrot.slane %v3110, 4
      %v3112 = vadd.f32 %v3110, %v3111
      %v3113 = vrot.slane %v3112, 2
      %v3114 = vadd.f32 %v3112, %v3113
      %v3115 = vrot.slane %v3114, 1
      %v3116 = vadd.f32 %v3114, %v3115
      %v3117 = vadd.f32 %v2736, %v2737
      %v3118 = vadd.f32 %v3117, %v2738
      %v3119 = vadd.f32 %v3118, %v2739
      %v3120 = vadd.f32 %v3119, %v2740
      %v3121 = vadd.f32 %v3120, %v2741
      %v3122 = vsel %vm2965, %v2742, 0.0
      %v3123 = vadd.f32 %v3121, %v3122
      %v3124 = vrot.slane %v3123, 4
      %v3125 = vadd.f32 %v3123, %v3124
      %v3126 = vrot.slane %v3125, 2
      %v3127 = vadd.f32 %v3125, %v3126
      %v3128 = vrot.slane %v3127, 1
      %v3129 = vadd.f32 %v3127, %v3128
      %v3130 = vadd.f32 %v2768, %v2769
      %v3131 = vadd.f32 %v3130, %v2770
      %v3132 = vadd.f32 %v3131, %v2771
      %v3133 = vadd.f32 %v3132, %v2772
      %v3134 = vadd.f32 %v3133, %v2773
      %v3135 = vsel %vm2965, %v2774, 0.0
      %v3136 = vadd.f32 %v3134, %v3135
      %v3137 = vrot.slane %v3136, 4
      %v3138 = vadd.f32 %v3136, %v3137
      %v3139 = vrot.slane %v3138, 2
      %v3140 = vadd.f32 %v3138, %v3139
      %v3141 = vrot.slane %v3140, 1
      %v3142 = vadd.f32 %v3140, %v3141
      %v3143 = vadd.f32 %v2800, %v2801
      %v3144 = vadd.f32 %v3143, %v2802
      %v3145 = vadd.f32 %v3144, %v2803
      %v3146 = vadd.f32 %v3145, %v2804
      %v3147 = vadd.f32 %v3146, %v2805
      %v3148 = vsel %vm2965, %v2806, 0.0
      %v3149 = vadd.f32 %v3147, %v3148
      %v3150 = vrot.slane %v3149, 4
      %v3151 = vadd.f32 %v3149, %v3150
      %v3152 = vrot.slane %v3151, 2
      %v3153 = vadd.f32 %v3151, %v3152
      %v3154 = vrot.slane %v3153, 1
      %v3155 = vadd.f32 %v3153, %v3154
      %v3156 = vadd.f32 %v2832, %v2833
      %v3157 = vadd.f32 %v3156, %v2834
      %v3158 = vadd.f32 %v3157, %v2835
      %v3159 = vadd.f32 %v3158, %v2836
      %v3160 = vadd.f32 %v3159, %v2837
      %v3161 = vsel %vm2965, %v2838, 0.0
      %v3162 = vadd.f32 %v3160, %v3161
      %v3163 = vrot.slane %v3162, 4
      %v3164 = vadd.f32 %v3162, %v3163
      %v3165 = vrot.slane %v3164, 2
      %v3166 = vadd.f32 %v3164, %v3165
      %v3167 = vrot.slane %v3166, 1
      %v3168 = vadd.f32 %v3166, %v3167
      %v3169 = vrcp.pop 49.0
      %v3170 = vmul.f32 49.0, %v3169
      %v3171 = vsub.f32 1.0, %v3170
      %v3172 = vmul.f32 %v3169, %v3171
      %v3173 = vadd.f32 %v3169, %v3172
      %vm3174 = vweird.f32 %v3169
      %v3175 = vsel %vm3174, %v3169, %v3173
      %v3176 = vmul.f32 %v2973, %v3175
      %v3177 = vmul.f32 %v2986, %v3175
      %v3178 = vmul.f32 %v2999, %v3175
      %v3179 = vmul.f32 %v3012, %v3175
      %v3180 = vmul.f32 %v3025, %v3175
      %v3181 = vmul.f32 %v3038, %v3175
      %v3182 = vmul.f32 %v3051, %v3175
      %v3183 = vmul.f32 %v3064, %v3175
      %v3184 = vmul.f32 %v3077, %v3175
      %v3185 = vmul.f32 %v3090, %v3175
      %v3186 = vmul.f32 %v3103, %v3175
      %v3187 = vmul.f32 %v3116, %v3175
      %v3188 = vmul.f32 %v3129, %v3175
      %v3189 = vmul.f32 %v3142, %v3175
      %v3190 = vmul.f32 %v3155, %v3175
      %v3191 = vmul.f32 %v3168, %v3175
      %v3208 = vrot.slane %v3177, 7
      %v3209 = vrot.slane %v3178, 6
      %v3210 = vrot.slane %v3179, 5
      %v3211 = vrot.slane %v3180, 4
      %v3212 = vrot.slane %v3181, 3
      %v3213 = vrot.slane %v3182, 2
      %v3214 = vrot.slane %v3183, 1
      %v3215 = vrot.slane %v3185, 7
      %v3216 = vrot.slane %v3186, 6
      %v3217 = vrot.slane %v3187, 5
      %v3218 = vrot.slane %v3188, 4
      %v3219 = vrot.slane %v3189, 3
      %v3220 = vrot.slane %v3190, 2
      %v3221 = vrot.slane %v3191, 1
      %v3222 = vsel %vm2965, %v3176, %v3208
      %vm3223 = vcmask 1042434
      %v3224 = vsel %vm3223, %v3209, %v3210
      %vm3225 = vcmask 1041408
      %v3226 = vsel %vm3225, %v3222, %v3224
      %vm3227 = vcmask 1044484
      %v3228 = vsel %vm3227, %v3211, %v3212
      %vm3229 = vcmask 1046534
      %v3230 = vsel %vm3229, %v3213, %v3214
      %vm3231 = vcmask 1045508
      %v3232 = vsel %vm3231, %v3228, %v3230
      %vm3233 = vcmask 1043456
      %v3234 = vsel %vm3233, %v3226, %v3232
      %v3235 = vsel %vm2965, %v3184, %v3215
      %v3236 = vsel %vm3223, %v3216, %v3217
      %v3237 = vsel %vm3225, %v3235, %v3236
      %v3238 = vsel %vm3227, %v3218, %v3219
      %v3239 = vsel %vm3229, %v3220, %v3221
      %v3240 = vsel %vm3231, %v3238, %v3239
      %v3241 = vsel %vm3233, %v3237, %v3240
      %3244 = vst [vmem:[%s281] sm:$0xff] %v3234
      %3245 = vst [vmem:[%s281 + $0x8] sm:$0xff] %v3241
      %v3246 = vsel %vm2319, %v2280, 0.0
      %3247 = vadd.xlane.f32.xlu0 %v3246
      %v3248 = vpop.xlane.xlu0 %3247
      %v3249 = vsel %vm2319, %v2282, 0.0
      %3250 = vadd.xlane.f32.xlu0 %v3249
      %v3251 = vpop.xlane.xlu0 %3250
      %v3252 = vsel %vm2319, %v2285, 0.0
      %3253 = vadd.xlane.f32.xlu0 %v3252
      %v3254 = vpop.xlane.xlu0 %3253
      %v3255 = vsel %vm2319, %v2287, 0.0
      %3256 = vadd.xlane.f32.xlu0 %v3255
      %v3257 = vpop.xlane.xlu0 %3256
      %v3258 = vsel %vm2319, %v2290, 0.0
      %3259 = vadd.xlane.f32.xlu0 %v3258
      %v3260 = vpop.xlane.xlu0 %3259
      %v3261 = vsel %vm2319, %v2292, 0.0
      %3262 = vadd.xlane.f32.xlu0 %v3261
      %v3263 = vpop.xlane.xlu0 %3262
      %v3264 = vsel %vm2319, %v2295, 0.0
      %3265 = vadd.xlane.f32.xlu0 %v3264
      %v3266 = vpop.xlane.xlu0 %3265
      %v3267 = vsel %vm2319, %v2297, 0.0
      %3268 = vadd.xlane.f32.xlu0 %v3267
      %v3269 = vpop.xlane.xlu0 %3268
      %v3270 = vsel %vm2319, %v2300, 0.0
      %3271 = vadd.xlane.f32.xlu0 %v3270
      %v3272 = vpop.xlane.xlu0 %3271
      %v3273 = vsel %vm2319, %v2302, 0.0
      %3274 = vadd.xlane.f32.xlu0 %v3273
      %v3275 = vpop.xlane.xlu0 %3274
      %v3276 = vsel %vm2319, %v2305, 0.0
      %3277 = vadd.xlane.f32.xlu0 %v3276
      %v3278 = vpop.xlane.xlu0 %3277
      %v3279 = vsel %vm2319, %v2307, 0.0
      %3280 = vadd.xlane.f32.xlu0 %v3279
      %v3281 = vpop.xlane.xlu0 %3280
      %v3282 = vsel %vm2319, %v2310, 0.0
      %3283 = vadd.xlane.f32.xlu0 %v3282
      %v3284 = vpop.xlane.xlu0 %3283
      %v3285 = vsel %vm2319, %v2312, 0.0
      %3286 = vadd.xlane.f32.xlu0 %v3285
      %v3287 = vpop.xlane.xlu0 %3286
      %v3288 = vsel %vm2319, %v2315, 0.0
      %3289 = vadd.xlane.f32.xlu0 %v3288
      %v3290 = vpop.xlane.xlu0 %3289
      %v3291 = vsel %vm2319, %v2317, 0.0
      %3292 = vadd.xlane.f32.xlu0 %v3291
      %v3293 = vpop.xlane.xlu0 %3292
      %v3294 = vmul.f32 %v3248, %v3175
      %v3295 = vmul.f32 %v3251, %v3175
      %v3296 = vmul.f32 %v3254, %v3175
      %v3297 = vmul.f32 %v3257, %v3175
      %v3298 = vmul.f32 %v3260, %v3175
      %v3299 = vmul.f32 %v3263, %v3175
      %v3300 = vmul.f32 %v3266, %v3175
      %v3301 = vmul.f32 %v3269, %v3175
      %v3302 = vmul.f32 %v3272, %v3175
      %v3303 = vmul.f32 %v3275, %v3175
      %v3304 = vmul.f32 %v3278, %v3175
      %v3305 = vmul.f32 %v3281, %v3175
      %v3306 = vmul.f32 %v3284, %v3175
      %v3307 = vmul.f32 %v3287, %v3175
      %v3308 = vmul.f32 %v3290, %v3175
      %v3309 = vmul.f32 %v3293, %v3175
      %vm3310 = vcmask 7168
      %3311 = vst.msk [vmem:[%s286] sm:$0xff] %vm3310, %v3294
      %3312 = vst.msk [vmem:[%s286 + $0x8] sm:$0xff] %vm3310, %v3295
      %3313 = vst.msk [vmem:[%s286 + $0x10] sm:$0xff] %vm3310, %v3296
      %3314 = vst.msk [vmem:[%s286 + $0x18] sm:$0xff] %vm3310, %v3297
      %3315 = vst.msk [vmem:[%s286 + $0x20] sm:$0xff] %vm3310, %v3298
      %3316 = vst.msk [vmem:[%s286 + $0x28] sm:$0xff] %vm3310, %v3299
      %3317 = vst.msk [vmem:[%s286 + $0x30] sm:$0xff] %vm3310, %v3300
      %3318 = vst.msk [vmem:[%s286 + $0x38] sm:$0xff] %vm3310, %v3301
      %3319 = vst.msk [vmem:[%s286 + $0x40] sm:$0xff] %vm3310, %v3302
      %3320 = vst.msk [vmem:[%s286 + $0x48] sm:$0xff] %vm3310, %v3303
      %3321 = vst.msk [vmem:[%s286 + $0x50] sm:$0xff] %vm3310, %v3304
      %3322 = vst.msk [vmem:[%s286 + $0x58] sm:$0xff] %vm3310, %v3305
      %3323 = vst.msk [vmem:[%s286 + $0x60] sm:$0xff] %vm3310, %v3306
      %3324 = vst.msk [vmem:[%s286 + $0x68] sm:$0xff] %vm3310, %v3307
      %3325 = vst.msk [vmem:[%s286 + $0x70] sm:$0xff] %vm3310, %v3308
      %3326 = vst.msk [vmem:[%s286 + $0x78] sm:$0xff] %vm3310, %v3309
      %p3327 = scmp.lt.s32.totalorder %s18, 1
      %s3328 = scalar_select %p3327, %s18, 1
      %s3329 = smul.addr %s3328, 16
      %s3330 = smul.addr %s3329, 8
      %s3331 = scalar_lea.vmem %s3, %s3330
      %p3332 = scmp.lt.s32.totalorder %s18, 1
      %s3333 = scalar_select %p3332, %s18, 1
      %s3334 = smul.addr %s3333, 112
      %s3335 = smul.addr %s3334, 8
      %s3336 = scalar_lea.vmem %s4, %s3335
      %p3337 = scmp.lt.s32.totalorder %s18, 1
      %s3338 = scalar_select %p3337, %s18, 1
      %s3339 = smul.addr %s3338, 16
      %s3340 = scalar_lea.vmem %s5, %s3339
      %p3341 = scmp.lt.s32.totalorder %s18, 1
      %s3342 = scalar_select %p3341, %s18, 1
      %s3343 = smul.addr %s3342, 16
      %s3344 = smul.addr %s3343, 8
      %s3345 = scalar_lea.vmem %s6, %s3344
      // Predicated region
      $region33: #{visual_extractor_forward.1} parent=31 // pred_check
        %p3346 = pneg %p104
      $region34: #{visual_extractor_forward.1} parent=31 // pred_check_branch
        %3348 = sbr.rel (%p3346) target = $region36
      $region35: #{visual_extractor_forward.1} parent=31 // pred_region
        _
      $region36: #{visual_extractor_forward.1} parent=31 // pred_fallthru
        _
      // Predicated region
      $region37: #{visual_extractor_forward.1} parent=31 // pred_check
        %p3349 = pneg %p130
      $region38: #{visual_extractor_forward.1} parent=31 // pred_check_branch
        %3351 = sbr.rel (%p3349) target = $region40
      $region39: #{visual_extractor_forward.1} parent=31 // pred_region
        _
      $region40: #{visual_extractor_forward.1} parent=31 // pred_fallthru
        _
      // Predicated region
      $region41: #{visual_extractor_forward.1} parent=31 // pred_check
        %p3352 = pneg %p156
      $region42: #{visual_extractor_forward.1} parent=31 // pred_check_branch
        %3354 = sbr.rel (%p3352) target = $region44
      $region43: #{visual_extractor_forward.1} parent=31 // pred_region
        _
      $region44: #{visual_extractor_forward.1} parent=31 // pred_fallthru
        _
      // Predicated region
      $region45: #{visual_extractor_forward.1} parent=31 // pred_check
        %p3355 = pneg %p182
      $region46: #{visual_extractor_forward.1} parent=31 // pred_check_branch
        %3357 = sbr.rel (%p3355) target = $region48
      $region47: #{visual_extractor_forward.1} parent=31 // pred_region
        _
      $region48: #{visual_extractor_forward.1} parent=31 // pred_fallthru
        _
    $region32: #{visual_extractor_forward.1} parent=5 // pred_fallthru
      _
    %p3358 = scmp.le.s32.totalorder 2, %s13
    // Predicated region
    $region49: #{visual_extractor_forward.1} parent=5 // pred_check
      %p3359 = pneg %p3358
    $region50: #{visual_extractor_forward.1} parent=5 // pred_check_branch
      %3361 = sbr.rel (%p3359) target = $region52
    $region51: #{visual_extractor_forward.1} parent=5 // pred_region
      %s3362 = ssub.s32 %s13, 2
      // Predicated region
      $region53: #{visual_extractor_forward.1} parent=51 // pred_check
        %p3363 = pneg %p110
      $region54: #{visual_extractor_forward.1} parent=51 // pred_check_branch
        %3365 = sbr.rel (%p3363) target = $region56
      $region55: #{visual_extractor_forward.1} parent=51 // pred_region
        %p3366 = scmp.lt.s32.totalorder %s19, 1
        %s3367 = scalar_select %p3366, %s19, 1
        %s3368 = smul.addr %s3367, 16
        %s3369 = smul.addr %s3368, 8
        %s3370 = scalar_lea.vmem %s3, %s3369
      $region56: #{visual_extractor_forward.1} parent=51 // pred_fallthru
        _
      // Predicated region
      $region57: #{visual_extractor_forward.1} parent=51 // pred_check
        %p3371 = pneg %p136
      $region58: #{visual_extractor_forward.1} parent=51 // pred_check_branch
        %3373 = sbr.rel (%p3371) target = $region60
      $region59: #{visual_extractor_forward.1} parent=51 // pred_region
        %p3374 = scmp.lt.s32.totalorder %s19, 1
        %s3375 = scalar_select %p3374, %s19, 1
        %s3376 = smul.addr %s3375, 112
        %s3377 = smul.addr %s3376, 8
        %s3378 = scalar_lea.vmem %s4, %s3377
      $region60: #{visual_extractor_forward.1} parent=51 // pred_fallthru
        _
      // Predicated region
      $region61: #{visual_extractor_forward.1} parent=51 // pred_check
        %p3379 = pneg %p162
      $region62: #{visual_extractor_forward.1} parent=51 // pred_check_branch
        %3381 = sbr.rel (%p3379) target = $region64
      $region63: #{visual_extractor_forward.1} parent=51 // pred_region
        %p3382 = scmp.lt.s32.totalorder %s19, 1
        %s3383 = scalar_select %p3382, %s19, 1
        %s3384 = smul.addr %s3383, 16
        %s3385 = scalar_lea.vmem %s5, %s3384
      $region64: #{visual_extractor_forward.1} parent=51 // pred_fallthru
        _
      // Predicated region
      $region65: #{visual_extractor_forward.1} parent=51 // pred_check
        %p3386 = pneg %p188
      $region66: #{visual_extractor_forward.1} parent=51 // pred_check_branch
        %3388 = sbr.rel (%p3386) target = $region68
      $region67: #{visual_extractor_forward.1} parent=51 // pred_region
        %p3389 = scmp.lt.s32.totalorder %s19, 1
        %s3390 = scalar_select %p3389, %s19, 1
        %s3391 = smul.addr %s3390, 16
        %s3392 = smul.addr %s3391, 8
        %s3393 = scalar_lea.vmem %s6, %s3392
      $region68: #{visual_extractor_forward.1} parent=51 // pred_fallthru
        _
    $region52: #{visual_extractor_forward.1} parent=5 // pred_fallthru
      _
  $region6: #{visual_extractor_forward.1} parent=0 // loop_footer
    %s17 = sadd.s32 1, %s13
  $region7: #{visual_extractor_forward.1} parent=0 // loop_footer_branch
    %12 = sbr.rel target = $region3
  $region8: #{visual_extractor_forward.1} parent=0 // loop_exit
    _

</llo_original>
